<compile_context>
chip_gen: v5e
topology: v5e:2x2
jax: 0.10.0
libtpu: 0.0.40
codegen_flags: <defaults>
</compile_context>

<pallas_src>
import functools

import jax
import jax.numpy as jnp
from jax.experimental import pallas as pl
from jax.experimental.pallas import tpu as pltpu

# ----------------------------- tiny T5 config --------------------------------
VOCAB = 128
D_MODEL = 32
N_HEADS = 4
D_KV = 8                 # per-head dim; inner dim = N_HEADS * D_KV = 32
D_FF = 64
N_LAYERS = 2             # encoder layers == decoder layers
REL_BUCKETS = 32
REL_MAX_DIST = 128
EPS = 1e-6
NEG = -1e9


# --------------------------- in-kernel helpers ---------------------------------
def _rms(x, w):
    """T5 RMSNorm: x (N, D) f32, w (1, D)."""
    xf = x.astype(jnp.float32)
    var = jnp.mean(xf * xf, axis=-1, keepdims=True)
    return xf * jax.lax.rsqrt(var + EPS) * w


def _attend(q2d, k2d, v2d, rel_bias, mask_bias, B, Tq, Tk):
    """T5 multi-head attention on 2-D slabs (no 1/sqrt(d) scaling).

    q2d: (B*Tq, inner), k2d/v2d: (B*Tk, inner)
    rel_bias: (H, Tq, Tk) additive (rel-pos [+ causal]) or None
    mask_bias: (B, Tk) additive padding mask or None
    returns (B*Tq, inner)
    """
    batch_rows = []
    for b in range(B):
        head_cols = []
        for h in range(N_HEADS):
            q = q2d[b * Tq:(b + 1) * Tq, h * D_KV:(h + 1) * D_KV]      # (Tq, Dh)
            k = k2d[b * Tk:(b + 1) * Tk, h * D_KV:(h + 1) * D_KV]      # (Tk, Dh)
            v = v2d[b * Tk:(b + 1) * Tk, h * D_KV:(h + 1) * D_KV]      # (Tk, Dh)
            s = jax.lax.dot_general(q, k, (((1,), (1,)), ((), ())),
                                    preferred_element_type=jnp.float32)  # (Tq, Tk)
            if rel_bias is not None:
                s = s + rel_bias[h]
            if mask_bias is not None:
                s = s + mask_bias[b:b + 1, :]
            s = s - jnp.max(s, axis=-1, keepdims=True)
            p = jnp.exp(s)
            p = p * pl.reciprocal(jnp.sum(p, axis=-1, keepdims=True), approx=True)
            head_cols.append(jnp.dot(p, v, preferred_element_type=jnp.float32))
        batch_rows.append(jnp.concatenate(head_cols, axis=-1))          # (Tq, inner)
    return jnp.concatenate(batch_rows, axis=0)                          # (B*Tq, inner)


# ------------------------------ Pallas kernels --------------------------------
def _enc_layer_kernel(x_ref, ln1_ref, wqkv_ref, wo_ref, ln2_ref, wi_ref, wof_ref,
                      bias_ref, mask_ref, lnf_ref, o_ref, *, apply_final):
    """One full T5 encoder block (+ optional final rmsnorm) in a single kernel."""
    inner = N_HEADS * D_KV
    T = bias_ref.shape[1]
    B = x_ref.shape[0] // T

    x = x_ref[...]
    rel_bias = bias_ref[...]          # (H, T, T)
    mask_bias = mask_ref[...]         # (B, T)

    # --- self-attention sub-block (pre-norm, fused QKV) ---
    xn = _rms(x, ln1_ref[...])
    qkv = jnp.dot(xn, wqkv_ref[...], preferred_element_type=jnp.float32)   # (B*T, 3*inner)
    ctx = _attend(qkv[:, 0 * inner:1 * inner],
                  qkv[:, 1 * inner:2 * inner],
                  qkv[:, 2 * inner:3 * inner],
                  rel_bias, mask_bias, B, T, T)
    x = x + jnp.dot(ctx, wo_ref[...], preferred_element_type=jnp.float32)

    # --- FFN sub-block (pre-norm, ReLU: DenseReluDense) ---
    xn = _rms(x, ln2_ref[...])
    hmid = jnp.maximum(jnp.dot(xn, wi_ref[...], preferred_element_type=jnp.float32), 0.0)
    x = x + jnp.dot(hmid, wof_ref[...], preferred_element_type=jnp.float32)

    if apply_final:                   # fold encoder final_layer_norm into last layer call
        x = _rms(x, lnf_ref[...])
    o_ref[...] = x


def _dec_layer_kernel(d_ref, enc_ref, ln1_ref, sa_wqkv_ref, sa_wo_ref,
                      ln2_ref, ca_wq_ref, ca_wkv_ref, ca_wo_ref,
                      ln3_ref, wi_ref, wof_ref, sa_bias_ref, ca_mask_ref, o_ref):
    """One full T5 decoder block (causal self-attn + cross-attn + FFN) in one kernel."""
    inner = N_HEADS * D_KV
    Td = sa_bias_ref.shape[1]
    T = ca_mask_ref.shape[1]
    B = d_ref.shape[0] // Td

    d = d_ref[...]
    enc = enc_ref[...]
    sa_bias = sa_bias_ref[...]        # (H, Td, Td), rel-pos + causal mask
    ca_mask = ca_mask_ref[...]        # (B, T), encoder padding mask

    # --- causal self-attention (fused QKV) ---
    dn = _rms(d, ln1_ref[...])
    qkv = jnp.dot(dn, sa_wqkv_ref[...], preferred_element_type=jnp.float32)
    ctx = _attend(qkv[:, :inner], qkv[:, inner:2 * inner], qkv[:, 2 * inner:],
                  sa_bias, None, B, Td, Td)
    d = d + jnp.dot(ctx, sa_wo_ref[...], preferred_element_type=jnp.float32)

    # --- cross-attention over encoder output (no rel-pos bias, fused KV) ---
    dn = _rms(d, ln2_ref[...])
    q = jnp.dot(dn, ca_wq_ref[...], preferred_element_type=jnp.float32)
    kv = jnp.dot(enc, ca_wkv_ref[...], preferred_element_type=jnp.float32)
    ctx = _attend(q, kv[:, :inner], kv[:, inner:], None, ca_mask, B, Td, T)
    d = d + jnp.dot(ctx, ca_wo_ref[...], preferred_element_type=jnp.float32)

    # --- FFN ---
    dn = _rms(d, ln3_ref[...])
    hmid = jnp.maximum(jnp.dot(dn, wi_ref[...], preferred_element_type=jnp.float32), 0.0)
    d = d + jnp.dot(hmid, wof_ref[...], preferred_element_type=jnp.float32)
    o_ref[...] = d


def _lm_loss_kernel(labels_ref, d_ref, lnf_ref, emb_ref, loss_ref, cnt_ref, logits_scr):
    """Fused: decoder final rmsnorm + tied LM head (scaled) + masked cross-entropy.

    labels_ref lives in SMEM; logits stay in a VMEM scratch (never hit HBM).
    """
    N, D = d_ref.shape
    V = emb_ref.shape[0]

    seq = _rms(d_ref[...], lnf_ref[...]) * (D ** -0.5)      # tied-head scale folded in
    # logits = seq @ embed.T without materializing a transposed embedding
    logits_scr[...] = jax.lax.dot_general(
        seq, emb_ref[...], (((1,), (1,)), ((), ())),
        preferred_element_type=jnp.float32)                  # (N, V)

    col = jax.lax.broadcasted_iota(jnp.int32, (1, V), 1)

    def body(i, carry):
        s, c = carry
        row = logits_scr[pl.ds(i, 1), :]                     # (1, V)
        lbl = labels_ref[i]                                  # scalar (SMEM path)
        m = jnp.max(row, axis=-1, keepdims=True)
        lse = jnp.log(jnp.sum(jnp.exp(row - m), axis=-1, keepdims=True)) + m
        lab = jnp.sum(jnp.where(col == lbl, row, 0.0), axis=-1, keepdims=True)
        valid = lbl != -100
        s = s + jnp.where(valid, lse - lab, 0.0)
        c = c + jnp.where(valid, 1.0, 0.0)
        return s, c

    s, c = jax.lax.fori_loop(
        0, N, body,
        (jnp.zeros((1, 1), jnp.float32), jnp.zeros((1, 1), jnp.float32)))
    loss_ref[...] = s
    cnt_ref[...] = c


# ---------------------------- pallas_call wrappers ------------------------------
def _vspec(shape):
    rank = len(shape)
    return pl.BlockSpec(shape, lambda *_: (0,) * rank)


def enc_layer_call(x, lyr, rel_bias, mask_bias, final_ln, apply_final):
    N, D = x.shape
    inner = N_HEADS * D_KV
    H, T, _ = rel_bias.shape
    kern = functools.partial(_enc_layer_kernel, apply_final=apply_final)
    return pl.pallas_call(
        kern,
        grid=(1,),
        in_specs=[_vspec((N, D)), _vspec((1, D)), _vspec((D, 3 * inner)),
                  _vspec((inner, D)), _vspec((1, D)), _vspec((D, D_FF)),
                  _vspec((D_FF, D)), _vspec((H, T, T)), _vspec((N // T, T)),
                  _vspec((1, D))],
        out_specs=_vspec((N, D)),
        out_shape=jax.ShapeDtypeStruct((N, D), jnp.float32),
    )(x, lyr['ln1'], lyr['wqkv'], lyr['wo'], lyr['ln2'], lyr['wi'], lyr['wo_ff'],
      rel_bias, mask_bias, final_ln)


def dec_layer_call(d, enc, lyr, sa_bias, ca_mask):
    Nd, D = d.shape
    Ne = enc.shape[0]
    inner = N_HEADS * D_KV
    H, Td, _ = sa_bias.shape
    B, T = ca_mask.shape
    return pl.pallas_call(
        _dec_layer_kernel,
        grid=(1,),
        in_specs=[_vspec((Nd, D)), _vspec((Ne, D)), _vspec((1, D)),
                  _vspec((D, 3 * inner)), _vspec((inner, D)), _vspec((1, D)),
                  _vspec((D, inner)), _vspec((D, 2 * inner)), _vspec((inner, D)),
                  _vspec((1, D)), _vspec((D, D_FF)), _vspec((D_FF, D)),
                  _vspec((H, Td, Td)), _vspec((B, T))],
        out_specs=_vspec((Nd, D)),
        out_shape=jax.ShapeDtypeStruct((Nd, D), jnp.float32),
    )(d, enc, lyr['ln1'], lyr['sa_wqkv'], lyr['sa_wo'], lyr['ln2'],
      lyr['ca_wq'], lyr['ca_wkv'], lyr['ca_wo'], lyr['ln3'],
      lyr['wi'], lyr['wo_ff'], sa_bias, ca_mask)


def lm_head_loss_call(d, final_ln, embed, labels_flat):
    N, D = d.shape
    V = embed.shape[0]
    loss_sum, cnt = pl.pallas_call(
        _lm_loss_kernel,
        grid=(1,),
        in_specs=[pl.BlockSpec(memory_space=pltpu.MemorySpace.SMEM),   # labels -> SMEM
                  _vspec((N, D)), _vspec((1, D)), _vspec((V, D))],
        out_specs=(_vspec((1, 1)), _vspec((1, 1))),
        out_shape=(jax.ShapeDtypeStruct((1, 1), jnp.float32),
                   jax.ShapeDtypeStruct((1, 1), jnp.float32)),
        scratch_shapes=[pltpu.VMEM((N, V), jnp.float32)],
    )(labels_flat, d, final_ln, embed)
    return loss_sum[0, 0] / jnp.maximum(cnt[0, 0], 1.0)


# --------------------------- plain-JAX glue (T5) -------------------------------
def relative_position_bucket(relative_position, bidirectional, num_buckets, max_distance):
    relative_buckets = jnp.zeros_like(relative_position)
    if bidirectional:
        num_buckets //= 2
        relative_buckets = relative_buckets + (relative_position > 0).astype(jnp.int32) * num_buckets
        relative_position = jnp.abs(relative_position)
    else:
        relative_position = -jnp.minimum(relative_position, 0)
    max_exact = num_buckets // 2
    is_small = relative_position < max_exact
    rp_f = jnp.maximum(relative_position, 1).astype(jnp.float32)
    rel_if_large = max_exact + (
        jnp.log(rp_f / max_exact) / jnp.log(max_distance / max_exact) * (num_buckets - max_exact)
    ).astype(jnp.int32)
    rel_if_large = jnp.minimum(rel_if_large, num_buckets - 1)
    return relative_buckets + jnp.where(is_small, relative_position, rel_if_large)


def compute_position_bias(rel_emb, q_len, k_len, bidirectional):
    ctx = jnp.arange(q_len)[:, None]
    mem = jnp.arange(k_len)[None, :]
    rel_pos = mem - ctx
    buckets = relative_position_bucket(rel_pos, bidirectional, REL_BUCKETS, REL_MAX_DIST)
    values = rel_emb[buckets]                        # (q, k, H) gather (glue)
    return jnp.transpose(values, (2, 0, 1))          # (H, q, k)


def t5_forward_loss(params, input_ids, attention_mask, labels):
    B, T = input_ids.shape

    # ---------------- encoder ----------------
    h = params['embed'][input_ids.reshape(-1)]                              # (B*T, D) gather (glue)
    enc_mask = (1.0 - attention_mask.astype(jnp.float32)) * NEG             # (B, T) additive
    enc_bias = compute_position_bias(params['enc_rel_bias'], T, T, True)    # (H, T, T)
    n_enc = len(params['enc_layers'])
    for i, lyr in enumerate(params['enc_layers']):
        h = enc_layer_call(h, lyr, enc_bias, enc_mask, params['enc_final_ln'],
                           apply_final=(i == n_enc - 1))
    enc_out = h                                                             # final-normed

    # ---------------- decoder ----------------
    # shift_right(labels) with decoder_start_token_id = 0, -100 -> pad(0)
    dec_ids = jnp.concatenate([jnp.zeros((B, 1), labels.dtype), labels[:, :-1]], axis=1)
    dec_ids = jnp.where(dec_ids == -100, 0, dec_ids)
    Td = dec_ids.shape[1]
    d = params['embed'][dec_ids.reshape(-1)]                                # (B*Td, D)

    causal = (jnp.arange(Td)[None, :] <= jnp.arange(Td)[:, None]).astype(jnp.float32)
    self_bias = compute_position_bias(params['dec_rel_bias'], Td, Td, False) \
        + (1.0 - causal)[None, :, :] * NEG                                  # (H, Td, Td)
    # decoder attends to all its own (non-padded) positions; cross-attn masks encoder padding
    cross_mask = enc_mask                                                   # (B, T)

    for lyr in params['dec_layers']:
        d = dec_layer_call(d, enc_out, lyr, self_bias, cross_mask)

    labels_flat = labels.reshape(-1).astype(jnp.int32)
    return lm_head_loss_call(d, params['dec_final_ln'], params['embed'], labels_flat)


# ------------------------------- init & main -----------------------------------
def init_params(key):
    def norm(k, shape, scale=0.02):
        return scale * jax.random.normal(k, shape, jnp.float32)

    keys = iter(jax.random.split(key, 256))
    inner = N_HEADS * D_KV
    params = {
        'embed': norm(next(keys), (VOCAB, D_MODEL)),
        'enc_rel_bias': norm(next(keys), (REL_BUCKETS, N_HEADS)),
        'dec_rel_bias': norm(next(keys), (REL_BUCKETS, N_HEADS)),
        'enc_final_ln': jnp.ones((1, D_MODEL), jnp.float32),
        'dec_final_ln': jnp.ones((1, D_MODEL), jnp.float32),
        'enc_layers': [],
        'dec_layers': [],
    }
    for _ in range(N_LAYERS):
        params['enc_layers'].append({
            'ln1': jnp.ones((1, D_MODEL), jnp.float32),
            'wqkv': norm(next(keys), (D_MODEL, 3 * inner)),     # fused Q|K|V
            'wo': norm(next(keys), (inner, D_MODEL)),
            'ln2': jnp.ones((1, D_MODEL), jnp.float32),
            'wi': norm(next(keys), (D_MODEL, D_FF)),
            'wo_ff': norm(next(keys), (D_FF, D_MODEL)),
        })
    for _ in range(N_LAYERS):
        params['dec_layers'].append({
            'ln1': jnp.ones((1, D_MODEL), jnp.float32),
            'sa_wqkv': norm(next(keys), (D_MODEL, 3 * inner)),  # fused Q|K|V
            'sa_wo': norm(next(keys), (inner, D_MODEL)),
            'ln2': jnp.ones((1, D_MODEL), jnp.float32),
            'ca_wq': norm(next(keys), (D_MODEL, inner)),
            'ca_wkv': norm(next(keys), (D_MODEL, 2 * inner)),   # fused K|V
            'ca_wo': norm(next(keys), (inner, D_MODEL)),
            'ln3': jnp.ones((1, D_MODEL), jnp.float32),
            'wi': norm(next(keys), (D_MODEL, D_FF)),
            'wo_ff': norm(next(keys), (D_FF, D_MODEL)),
        })
    return params


if __name__ == "__main__":
    key = jax.random.PRNGKey(0)
    k_params, k_in, k_lbl = jax.random.split(key, 3)

    B, T = 2, 8
    params = init_params(k_params)
    input_ids = jax.random.randint(k_in, (B, T), 0, VOCAB, dtype=jnp.int32)
    labels = jax.random.randint(k_lbl, (B, T), 0, VOCAB, dtype=jnp.int32)
    labels = labels.at[0, -1].set(-100)           # exercise ignore_index=-100
    attention_mask = jnp.ones((B, T), jnp.int32)

    loss_fn = jax.jit(t5_forward_loss)
    loss = loss_fn(params, input_ids, attention_mask, labels)
    jax.block_until_ready(loss)
    assert loss.shape == () and jnp.isfinite(loss)
    print("KERNEL_OK")
</pallas_src>

<mosaic_0001>
module attributes {stable_mosaic.version = 11 : i64} {
  func.func @_enc_layer_kernel(%arg0: i32, %arg1: memref<16x32xf32, #tpu.memory_space<vmem>>, %arg2: memref<1x32xf32, #tpu.memory_space<vmem>>, %arg3: memref<32x96xf32, #tpu.memory_space<vmem>>, %arg4: memref<32x32xf32, #tpu.memory_space<vmem>>, %arg5: memref<1x32xf32, #tpu.memory_space<vmem>>, %arg6: memref<32x64xf32, #tpu.memory_space<vmem>>, %arg7: memref<64x32xf32, #tpu.memory_space<vmem>>, %arg8: memref<4x8x8xf32, #tpu.memory_space<vmem>>, %arg9: memref<2x8xf32, #tpu.memory_space<vmem>>, %arg10: memref<1x32xf32, #tpu.memory_space<vmem>>, %arg11: memref<16x32xf32, #tpu.memory_space<vmem>>) attributes {dimension_semantics = [#tpu.dimension_semantics<arbitrary>], iteration_bounds = array<i64: 1>, scalar_prefetch = 0 : i64, scratch_operands = 0 : i64, tpu.core_type = #tpu.core_type<tc>, window_params = [{pipeline_mode = #tpu.pipeline_mode<synchronous>, transform_indices = @transform_0, window_bounds = array<i64: 16, 32>}, {pipeline_mode = #tpu.pipeline_mode<synchronous>, transform_indices = @transform_1, window_bounds = array<i64: 1, 32>}, {pipeline_mode = #tpu.pipeline_mode<synchronous>, transform_indices = @transform_2, window_bounds = array<i64: 32, 96>}, {pipeline_mode = #tpu.pipeline_mode<synchronous>, transform_indices = @transform_3, window_bounds = array<i64: 32, 32>}, {pipeline_mode = #tpu.pipeline_mode<synchronous>, transform_indices = @transform_4, window_bounds = array<i64: 1, 32>}, {pipeline_mode = #tpu.pipeline_mode<synchronous>, transform_indices = @transform_5, window_bounds = array<i64: 32, 64>}, {pipeline_mode = #tpu.pipeline_mode<synchronous>, transform_indices = @transform_6, window_bounds = array<i64: 64, 32>}, {pipeline_mode = #tpu.pipeline_mode<synchronous>, transform_indices = @transform_7, window_bounds = array<i64: 4, 8, 8>}, {pipeline_mode = #tpu.pipeline_mode<synchronous>, transform_indices = @transform_8, window_bounds = array<i64: 2, 8>}, {pipeline_mode = #tpu.pipeline_mode<synchronous>, transform_indices = @transform_9, window_bounds = array<i64: 1, 32>}, {pipeline_mode = #tpu.pipeline_mode<synchronous>, transform_indices = @transform_10, window_bounds = array<i64: 16, 32>}]} {
    %c0 = arith.constant 0 : index
    %c0_0 = arith.constant 0 : index
    %0 = vector.load %arg1[%c0, %c0_0] : memref<16x32xf32, #tpu.memory_space<vmem>>, vector<16x32xf32>
    %c0_1 = arith.constant 0 : index
    %c0_2 = arith.constant 0 : index
    %c0_3 = arith.constant 0 : index
    %1 = vector.load %arg8[%c0_1, %c0_2, %c0_3] : memref<4x8x8xf32, #tpu.memory_space<vmem>>, vector<4x8x8xf32>
    %c0_4 = arith.constant 0 : index
    %c0_5 = arith.constant 0 : index
    %2 = vector.load %arg9[%c0_4, %c0_5] : memref<2x8xf32, #tpu.memory_space<vmem>>, vector<2x8xf32>
    %c0_6 = arith.constant 0 : index
    %c0_7 = arith.constant 0 : index
    %3 = vector.load %arg2[%c0_6, %c0_7] : memref<1x32xf32, #tpu.memory_space<vmem>>, vector<1x32xf32>
    %4 = arith.mulf %0, %0 : vector<16x32xf32>
    %cst = arith.constant dense<0.000000e+00> : vector<16xf32>
    %5 = vector.multi_reduction <add>, %4, %cst [1] : vector<16x32xf32> to vector<16xf32>
    %6 = vector.shape_cast %5 : vector<16xf32> to vector<16x1xf32>
    %cst_8 = arith.constant 3.200000e+01 : f32
    %7 = vector.broadcast %cst_8 : f32 to vector<16x1xf32>
    %8 = arith.divf %6, %7 : vector<16x1xf32>
    %cst_9 = arith.constant 9.99999997E-7 : f32
    %9 = vector.broadcast %cst_9 : f32 to vector<16x1xf32>
    %10 = arith.addf %8, %9 : vector<16x1xf32>
    %11 = math.rsqrt %10 : vector<16x1xf32>
    %12 = vector.broadcast %11 : vector<16x1xf32> to vector<16x32xf32>
    %13 = arith.mulf %0, %12 : vector<16x32xf32>
    %14 = vector.broadcast %3 : vector<1x32xf32> to vector<16x32xf32>
    %15 = arith.mulf %13, %14 : vector<16x32xf32>
    %c0_10 = arith.constant 0 : index
    %c0_11 = arith.constant 0 : index
    %16 = vector.load %arg3[%c0_10, %c0_11] : memref<32x96xf32, #tpu.memory_space<vmem>>, vector<32x96xf32>
    %cst_12 = arith.constant dense<0.000000e+00> : vector<16x96xf32>
    %17 = tpu.matmul %15, %16, %cst_12 {dimension_numbers = #tpu.dot_dimension_numbers<[1], [0], [0], [1], [0, 0, 1, 1], [], []>} : vector<16x32xf32>, vector<32x96xf32>, vector<16x96xf32> -> vector<16x96xf32>
    %18 = vector.extract_strided_slice %17 {offsets = [0, 0], sizes = [16, 32], strides = [1, 1]} : vector<16x96xf32> to vector<16x32xf32>
    %19 = vector.extract_strided_slice %17 {offsets = [0, 32], sizes = [16, 32], strides = [1, 1]} : vector<16x96xf32> to vector<16x32xf32>
    %20 = vector.extract_strided_slice %17 {offsets = [0, 64], sizes = [16, 32], strides = [1, 1]} : vector<16x96xf32> to vector<16x32xf32>
    %21 = vector.extract_strided_slice %18 {offsets = [0, 0], sizes = [8, 8], strides = [1, 1]} : vector<16x32xf32> to vector<8x8xf32>
    %22 = vector.extract_strided_slice %19 {offsets = [0, 0], sizes = [8, 8], strides = [1, 1]} : vector<16x32xf32> to vector<8x8xf32>
    %23 = vector.extract_strided_slice %20 {offsets = [0, 0], sizes = [8, 8], strides = [1, 1]} : vector<16x32xf32> to vector<8x8xf32>
    %cst_13 = arith.constant dense<0.000000e+00> : vector<8x8xf32>
    %24 = tpu.matmul %21, %22, %cst_13 {dimension_numbers = #tpu.dot_dimension_numbers<[1], [1], [0], [0], [0, 0, 1, 0], [], []>} : vector<8x8xf32>, vector<8x8xf32>, vector<8x8xf32> -> vector<8x8xf32>
    %25 = vector.extract_strided_slice %1 {offsets = [0, 0, 0], sizes = [1, 8, 8], strides = [1, 1, 1]} : vector<4x8x8xf32> to vector<1x8x8xf32>
    %26 = vector.shape_cast %25 : vector<1x8x8xf32> to vector<8x8xf32>
    %27 = arith.addf %24, %26 : vector<8x8xf32>
    %28 = vector.extract_strided_slice %2 {offsets = [0, 0], sizes = [1, 8], strides = [1, 1]} : vector<2x8xf32> to vector<1x8xf32>
    %29 = vector.broadcast %28 : vector<1x8xf32> to vector<8x8xf32>
    %30 = arith.addf %27, %29 : vector<8x8xf32>
    %cst_14 = arith.constant dense<0xFF800000> : vector<8xf32>
    %31 = vector.multi_reduction <maximumf>, %30, %cst_14 [1] : vector<8x8xf32> to vector<8xf32>
    %32 = vector.shape_cast %31 : vector<8xf32> to vector<8x1xf32>
    %33 = vector.broadcast %32 : vector<8x1xf32> to vector<8x8xf32>
    %34 = arith.subf %30, %33 : vector<8x8xf32>
    %35 = math.exp %34 : vector<8x8xf32>
    %cst_15 = arith.constant dense<0.000000e+00> : vector<8xf32>
    %36 = vector.multi_reduction <add>, %35, %cst_15 [1] : vector<8x8xf32> to vector<8xf32>
    %37 = vector.shape_cast %36 : vector<8xf32> to vector<8x1xf32>
    %38 = tpu.reciprocal %37 {approx = true} : vector<8x1xf32> -> vector<8x1xf32>
    %39 = vector.broadcast %38 : vector<8x1xf32> to vector<8x8xf32>
    %40 = arith.mulf %35, %39 : vector<8x8xf32>
    %cst_16 = arith.constant dense<0.000000e+00> : vector<8x8xf32>
    %41 = tpu.matmul %40, %23, %cst_16 {dimension_numbers = #tpu.dot_dimension_numbers<[1], [0], [0], [1], [0, 0, 1, 1], [], []>} : vector<8x8xf32>, vector<8x8xf32>, vector<8x8xf32> -> vector<8x8xf32>
    %42 = vector.extract_strided_slice %18 {offsets = [0, 8], sizes = [8, 8], strides = [1, 1]} : vector<16x32xf32> to vector<8x8xf32>
    %43 = vector.extract_strided_slice %19 {offsets = [0, 8], sizes = [8, 8], strides = [1, 1]} : vector<16x32xf32> to vector<8x8xf32>
    %44 = vector.extract_strided_slice %20 {offsets = [0, 8], sizes = [8, 8], strides = [1, 1]} : vector<16x32xf32> to vector<8x8xf32>
    %cst_17 = arith.constant dense<0.000000e+00> : vector<8x8xf32>
    %45 = tpu.matmul %42, %43, %cst_17 {dimension_numbers = #tpu.dot_dimension_numbers<[1], [1], [0], [0], [0, 0, 1, 0], [], []>} : vector<8x8xf32>, vector<8x8xf32>, vector<8x8xf32> -> vector<8x8xf32>
    %46 = vector.extract_strided_slice %1 {offsets = [1, 0, 0], sizes = [1, 8, 8], strides = [1, 1, 1]} : vector<4x8x8xf32> to vector<1x8x8xf32>
    %47 = vector.shape_cast %46 : vector<1x8x8xf32> to vector<8x8xf32>
    %48 = arith.addf %45, %47 : vector<8x8xf32>
    %49 = vector.extract_strided_slice %2 {offsets = [0, 0], sizes = [1, 8], strides = [1, 1]} : vector<2x8xf32> to vector<1x8xf32>
    %50 = vector.broadcast %49 : vector<1x8xf32> to vector<8x8xf32>
    %51 = arith.addf %48, %50 : vector<8x8xf32>
    %cst_18 = arith.constant dense<0xFF800000> : vector<8xf32>
    %52 = vector.multi_reduction <maximumf>, %51, %cst_18 [1] : vector<8x8xf32> to vector<8xf32>
    %53 = vector.shape_cast %52 : vector<8xf32> to vector<8x1xf32>
    %54 = vector.broadcast %53 : vector<8x1xf32> to vector<8x8xf32>
    %55 = arith.subf %51, %54 : vector<8x8xf32>
    %56 = math.exp %55 : vector<8x8xf32>
    %cst_19 = arith.constant dense<0.000000e+00> : vector<8xf32>
    %57 = vector.multi_reduction <add>, %56, %cst_19 [1] : vector<8x8xf32> to vector<8xf32>
    %58 = vector.shape_cast %57 : vector<8xf32> to vector<8x1xf32>
    %59 = tpu.reciprocal %58 {approx = true} : vector<8x1xf32> -> vector<8x1xf32>
    %60 = vector.broadcast %59 : vector<8x1xf32> to vector<8x8xf32>
    %61 = arith.mulf %56, %60 : vector<8x8xf32>
    %cst_20 = arith.constant dense<0.000000e+00> : vector<8x8xf32>
    %62 = tpu.matmul %61, %44, %cst_20 {dimension_numbers = #tpu.dot_dimension_numbers<[1], [0], [0], [1], [0, 0, 1, 1], [], []>} : vector<8x8xf32>, vector<8x8xf32>, vector<8x8xf32> -> vector<8x8xf32>
    %63 = vector.extract_strided_slice %18 {offsets = [0, 16], sizes = [8, 8], strides = [1, 1]} : vector<16x32xf32> to vector<8x8xf32>
    %64 = vector.extract_strided_slice %19 {offsets = [0, 16], sizes = [8, 8], strides = [1, 1]} : vector<16x32xf32> to vector<8x8xf32>
    %65 = vector.extract_strided_slice %20 {offsets = [0, 16], sizes = [8, 8], strides = [1, 1]} : vector<16x32xf32> to vector<8x8xf32>
    %cst_21 = arith.constant dense<0.000000e+00> : vector<8x8xf32>
    %66 = tpu.matmul %63, %64, %cst_21 {dimension_numbers = #tpu.dot_dimension_numbers<[1], [1], [0], [0], [0, 0, 1, 0], [], []>} : vector<8x8xf32>, vector<8x8xf32>, vector<8x8xf32> -> vector<8x8xf32>
    %67 = vector.extract_strided_slice %1 {offsets = [2, 0, 0], sizes = [1, 8, 8], strides = [1, 1, 1]} : vector<4x8x8xf32> to vector<1x8x8xf32>
    %68 = vector.shape_cast %67 : vector<1x8x8xf32> to vector<8x8xf32>
    %69 = arith.addf %66, %68 : vector<8x8xf32>
    %70 = vector.extract_strided_slice %2 {offsets = [0, 0], sizes = [1, 8], strides = [1, 1]} : vector<2x8xf32> to vector<1x8xf32>
    %71 = vector.broadcast %70 : vector<1x8xf32> to vector<8x8xf32>
    %72 = arith.addf %69, %71 : vector<8x8xf32>
    %cst_22 = arith.constant dense<0xFF800000> : vector<8xf32>
    %73 = vector.multi_reduction <maximumf>, %72, %cst_22 [1] : vector<8x8xf32> to vector<8xf32>
    %74 = vector.shape_cast %73 : vector<8xf32> to vector<8x1xf32>
    %75 = vector.broadcast %74 : vector<8x1xf32> to vector<8x8xf32>
    %76 = arith.subf %72, %75 : vector<8x8xf32>
    %77 = math.exp %76 : vector<8x8xf32>
    %cst_23 = arith.constant dense<0.000000e+00> : vector<8xf32>
    %78 = vector.multi_reduction <add>, %77, %cst_23 [1] : vector<8x8xf32> to vector<8xf32>
    %79 = vector.shape_cast %78 : vector<8xf32> to vector<8x1xf32>
    %80 = tpu.reciprocal %79 {approx = true} : vector<8x1xf32> -> vector<8x1xf32>
    %81 = vector.broadcast %80 : vector<8x1xf32> to vector<8x8xf32>
    %82 = arith.mulf %77, %81 : vector<8x8xf32>
    %cst_24 = arith.constant dense<0.000000e+00> : vector<8x8xf32>
    %83 = tpu.matmul %82, %65, %cst_24 {dimension_numbers = #tpu.dot_dimension_numbers<[1], [0], [0], [1], [0, 0, 1, 1], [], []>} : vector<8x8xf32>, vector<8x8xf32>, vector<8x8xf32> -> vector<8x8xf32>
    %84 = vector.extract_strided_slice %18 {offsets = [0, 24], sizes = [8, 8], strides = [1, 1]} : vector<16x32xf32> to vector<8x8xf32>
    %85 = vector.extract_strided_slice %19 {offsets = [0, 24], sizes = [8, 8], strides = [1, 1]} : vector<16x32xf32> to vector<8x8xf32>
    %86 = vector.extract_strided_slice %20 {offsets = [0, 24], sizes = [8, 8], strides = [1, 1]} : vector<16x32xf32> to vector<8x8xf32>
    %cst_25 = arith.constant dense<0.000000e+00> : vector<8x8xf32>
    %87 = tpu.matmul %84, %85, %cst_25 {dimension_numbers = #tpu.dot_dimension_numbers<[1], [1], [0], [0], [0, 0, 1, 0], [], []>} : vector<8x8xf32>, vector<8x8xf32>, vector<8x8xf32> -> vector<8x8xf32>
    %88 = vector.extract_strided_slice %1 {offsets = [3, 0, 0], sizes = [1, 8, 8], strides = [1, 1, 1]} : vector<4x8x8xf32> to vector<1x8x8xf32>
    %89 = vector.shape_cast %88 : vector<1x8x8xf32> to vector<8x8xf32>
    %90 = arith.addf %87, %89 : vector<8x8xf32>
    %91 = vector.extract_strided_slice %2 {offsets = [0, 0], sizes = [1, 8], strides = [1, 1]} : vector<2x8xf32> to vector<1x8xf32>
    %92 = vector.broadcast %91 : vector<1x8xf32> to vector<8x8xf32>
    %93 = arith.addf %90, %92 : vector<8x8xf32>
    %cst_26 = arith.constant dense<0xFF800000> : vector<8xf32>
    %94 = vector.multi_reduction <maximumf>, %93, %cst_26 [1] : vector<8x8xf32> to vector<8xf32>
    %95 = vector.shape_cast %94 : vector<8xf32> to vector<8x1xf32>
    %96 = vector.broadcast %95 : vector<8x1xf32> to vector<8x8xf32>
    %97 = arith.subf %93, %96 : vector<8x8xf32>
    %98 = math.exp %97 : vector<8x8xf32>
    %cst_27 = arith.constant dense<0.000000e+00> : vector<8xf32>
    %99 = vector.multi_reduction <add>, %98, %cst_27 [1] : vector<8x8xf32> to vector<8xf32>
    %100 = vector.shape_cast %99 : vector<8xf32> to vector<8x1xf32>
    %101 = tpu.reciprocal %100 {approx = true} : vector<8x1xf32> -> vector<8x1xf32>
    %102 = vector.broadcast %101 : vector<8x1xf32> to vector<8x8xf32>
    %103 = arith.mulf %98, %102 : vector<8x8xf32>
    %cst_28 = arith.constant dense<0.000000e+00> : vector<8x8xf32>
    %104 = tpu.matmul %103, %86, %cst_28 {dimension_numbers = #tpu.dot_dimension_numbers<[1], [0], [0], [1], [0, 0, 1, 1], [], []>} : vector<8x8xf32>, vector<8x8xf32>, vector<8x8xf32> -> vector<8x8xf32>
    %105 = tpu.concatenate %41, %62, %83, %104 in 1 : vector<8x8xf32>, vector<8x8xf32>, vector<8x8xf32>, vector<8x8xf32> -> vector<8x32xf32>
    %106 = vector.extract_strided_slice %18 {offsets = [8, 0], sizes = [8, 8], strides = [1, 1]} : vector<16x32xf32> to vector<8x8xf32>
    %107 = vector.extract_strided_slice %19 {offsets = [8, 0], sizes = [8, 8], strides = [1, 1]} : vector<16x32xf32> to vector<8x8xf32>
    %108 = vector.extract_strided_slice %20 {offsets = [8, 0], sizes = [8, 8], strides = [1, 1]} : vector<16x32xf32> to vector<8x8xf32>
    %cst_29 = arith.constant dense<0.000000e+00> : vector<8x8xf32>
    %109 = tpu.matmul %106, %107, %cst_29 {dimension_numbers = #tpu.dot_dimension_numbers<[1], [1], [0], [0], [0, 0, 1, 0], [], []>} : vector<8x8xf32>, vector<8x8xf32>, vector<8x8xf32> -> vector<8x8xf32>
    %110 = vector.extract_strided_slice %1 {offsets = [0, 0, 0], sizes = [1, 8, 8], strides = [1, 1, 1]} : vector<4x8x8xf32> to vector<1x8x8xf32>
    %111 = vector.shape_cast %110 : vector<1x8x8xf32> to vector<8x8xf32>
    %112 = arith.addf %109, %111 : vector<8x8xf32>
    %113 = vector.extract_strided_slice %2 {offsets = [1, 0], sizes = [1, 8], strides = [1, 1]} : vector<2x8xf32> to vector<1x8xf32>
    %114 = vector.broadcast %113 : vector<1x8xf32> to vector<8x8xf32>
    %115 = arith.addf %112, %114 : vector<8x8xf32>
    %cst_30 = arith.constant dense<0xFF800000> : vector<8xf32>
    %116 = vector.multi_reduction <maximumf>, %115, %cst_30 [1] : vector<8x8xf32> to vector<8xf32>
    %117 = vector.shape_cast %116 : vector<8xf32> to vector<8x1xf32>
    %118 = vector.broadcast %117 : vector<8x1xf32> to vector<8x8xf32>
    %119 = arith.subf %115, %118 : vector<8x8xf32>
    %120 = math.exp %119 : vector<8x8xf32>
    %cst_31 = arith.constant dense<0.000000e+00> : vector<8xf32>
    %121 = vector.multi_reduction <add>, %120, %cst_31 [1] : vector<8x8xf32> to vector<8xf32>
    %122 = vector.shape_cast %121 : vector<8xf32> to vector<8x1xf32>
    %123 = tpu.reciprocal %122 {approx = true} : vector<8x1xf32> -> vector<8x1xf32>
    %124 = vector.broadcast %123 : vector<8x1xf32> to vector<8x8xf32>
    %125 = arith.mulf %120, %124 : vector<8x8xf32>
    %cst_32 = arith.constant dense<0.000000e+00> : vector<8x8xf32>
    %126 = tpu.matmul %125, %108, %cst_32 {dimension_numbers = #tpu.dot_dimension_numbers<[1], [0], [0], [1], [0, 0, 1, 1], [], []>} : vector<8x8xf32>, vector<8x8xf32>, vector<8x8xf32> -> vector<8x8xf32>
    %127 = vector.extract_strided_slice %18 {offsets = [8, 8], sizes = [8, 8], strides = [1, 1]} : vector<16x32xf32> to vector<8x8xf32>
    %128 = vector.extract_strided_slice %19 {offsets = [8, 8], sizes = [8, 8], strides = [1, 1]} : vector<16x32xf32> to vector<8x8xf32>
    %129 = vector.extract_strided_slice %20 {offsets = [8, 8], sizes = [8, 8], strides = [1, 1]} : vector<16x32xf32> to vector<8x8xf32>
    %cst_33 = arith.constant dense<0.000000e+00> : vector<8x8xf32>
    %130 = tpu.matmul %127, %128, %cst_33 {dimension_numbers = #tpu.dot_dimension_numbers<[1], [1], [0], [0], [0, 0, 1, 0], [], []>} : vector<8x8xf32>, vector<8x8xf32>, vector<8x8xf32> -> vector<8x8xf32>
    %131 = vector.extract_strided_slice %1 {offsets = [1, 0, 0], sizes = [1, 8, 8], strides = [1, 1, 1]} : vector<4x8x8xf32> to vector<1x8x8xf32>
    %132 = vector.shape_cast %131 : vector<1x8x8xf32> to vector<8x8xf32>
    %133 = arith.addf %130, %132 : vector<8x8xf32>
    %134 = vector.extract_strided_slice %2 {offsets = [1, 0], sizes = [1, 8], strides = [1, 1]} : vector<2x8xf32> to vector<1x8xf32>
    %135 = vector.broadcast %134 : vector<1x8xf32> to vector<8x8xf32>
    %136 = arith.addf %133, %135 : vector<8x8xf32>
    %cst_34 = arith.constant dense<0xFF800000> : vector<8xf32>
    %137 = vector.multi_reduction <maximumf>, %136, %cst_34 [1] : vector<8x8xf32> to vector<8xf32>
    %138 = vector.shape_cast %137 : vector<8xf32> to vector<8x1xf32>
    %139 = vector.broadcast %138 : vector<8x1xf32> to vector<8x8xf32>
    %140 = arith.subf %136, %139 : vector<8x8xf32>
    %141 = math.exp %140 : vector<8x8xf32>
    %cst_35 = arith.constant dense<0.000000e+00> : vector<8xf32>
    %142 = vector.multi_reduction <add>, %141, %cst_35 [1] : vector<8x8xf32> to vector<8xf32>
    %143 = vector.shape_cast %142 : vector<8xf32> to vector<8x1xf32>
    %144 = tpu.reciprocal %143 {approx = true} : vector<8x1xf32> -> vector<8x1xf32>
    %145 = vector.broadcast %144 : vector<8x1xf32> to vector<8x8xf32>
    %146 = arith.mulf %141, %145 : vector<8x8xf32>
    %cst_36 = arith.constant dense<0.000000e+00> : vector<8x8xf32>
    %147 = tpu.matmul %146, %129, %cst_36 {dimension_numbers = #tpu.dot_dimension_numbers<[1], [0], [0], [1], [0, 0, 1, 1], [], []>} : vector<8x8xf32>, vector<8x8xf32>, vector<8x8xf32> -> vector<8x8xf32>
    %148 = vector.extract_strided_slice %18 {offsets = [8, 16], sizes = [8, 8], strides = [1, 1]} : vector<16x32xf32> to vector<8x8xf32>
    %149 = vector.extract_strided_slice %19 {offsets = [8, 16], sizes = [8, 8], strides = [1, 1]} : vector<16x32xf32> to vector<8x8xf32>
    %150 = vector.extract_strided_slice %20 {offsets = [8, 16], sizes = [8, 8], strides = [1, 1]} : vector<16x32xf32> to vector<8x8xf32>
    %cst_37 = arith.constant dense<0.000000e+00> : vector<8x8xf32>
    %151 = tpu.matmul %148, %149, %cst_37 {dimension_numbers = #tpu.dot_dimension_numbers<[1], [1], [0], [0], [0, 0, 1, 0], [], []>} : vector<8x8xf32>, vector<8x8xf32>, vector<8x8xf32> -> vector<8x8xf32>
    %152 = vector.extract_strided_slice %1 {offsets = [2, 0, 0], sizes = [1, 8, 8], strides = [1, 1, 1]} : vector<4x8x8xf32> to vector<1x8x8xf32>
    %153 = vector.shape_cast %152 : vector<1x8x8xf32> to vector<8x8xf32>
    %154 = arith.addf %151, %153 : vector<8x8xf32>
    %155 = vector.extract_strided_slice %2 {offsets = [1, 0], sizes = [1, 8], strides = [1, 1]} : vector<2x8xf32> to vector<1x8xf32>
    %156 = vector.broadcast %155 : vector<1x8xf32> to vector<8x8xf32>
    %157 = arith.addf %154, %156 : vector<8x8xf32>
    %cst_38 = arith.constant dense<0xFF800000> : vector<8xf32>
    %158 = vector.multi_reduction <maximumf>, %157, %cst_38 [1] : vector<8x8xf32> to vector<8xf32>
    %159 = vector.shape_cast %158 : vector<8xf32> to vector<8x1xf32>
    %160 = vector.broadcast %159 : vector<8x1xf32> to vector<8x8xf32>
    %161 = arith.subf %157, %160 : vector<8x8xf32>
    %162 = math.exp %161 : vector<8x8xf32>
    %cst_39 = arith.constant dense<0.000000e+00> : vector<8xf32>
    %163 = vector.multi_reduction <add>, %162, %cst_39 [1] : vector<8x8xf32> to vector<8xf32>
    %164 = vector.shape_cast %163 : vector<8xf32> to vector<8x1xf32>
    %165 = tpu.reciprocal %164 {approx = true} : vector<8x1xf32> -> vector<8x1xf32>
    %166 = vector.broadcast %165 : vector<8x1xf32> to vector<8x8xf32>
    %167 = arith.mulf %162, %166 : vector<8x8xf32>
    %cst_40 = arith.constant dense<0.000000e+00> : vector<8x8xf32>
    %168 = tpu.matmul %167, %150, %cst_40 {dimension_numbers = #tpu.dot_dimension_numbers<[1], [0], [0], [1], [0, 0, 1, 1], [], []>} : vector<8x8xf32>, vector<8x8xf32>, vector<8x8xf32> -> vector<8x8xf32>
    %169 = vector.extract_strided_slice %18 {offsets = [8, 24], sizes = [8, 8], strides = [1, 1]} : vector<16x32xf32> to vector<8x8xf32>
    %170 = vector.extract_strided_slice %19 {offsets = [8, 24], sizes = [8, 8], strides = [1, 1]} : vector<16x32xf32> to vector<8x8xf32>
    %171 = vector.extract_strided_slice %20 {offsets = [8, 24], sizes = [8, 8], strides = [1, 1]} : vector<16x32xf32> to vector<8x8xf32>
    %cst_41 = arith.constant dense<0.000000e+00> : vector<8x8xf32>
    %172 = tpu.matmul %169, %170, %cst_41 {dimension_numbers = #tpu.dot_dimension_numbers<[1], [1], [0], [0], [0, 0, 1, 0], [], []>} : vector<8x8xf32>, vector<8x8xf32>, vector<8x8xf32> -> vector<8x8xf32>
    %173 = vector.extract_strided_slice %1 {offsets = [3, 0, 0], sizes = [1, 8, 8], strides = [1, 1, 1]} : vector<4x8x8xf32> to vector<1x8x8xf32>
    %174 = vector.shape_cast %173 : vector<1x8x8xf32> to vector<8x8xf32>
    %175 = arith.addf %172, %174 : vector<8x8xf32>
    %176 = vector.extract_strided_slice %2 {offsets = [1, 0], sizes = [1, 8], strides = [1, 1]} : vector<2x8xf32> to vector<1x8xf32>
    %177 = vector.broadcast %176 : vector<1x8xf32> to vector<8x8xf32>
    %178 = arith.addf %175, %177 : vector<8x8xf32>
    %cst_42 = arith.constant dense<0xFF800000> : vector<8xf32>
    %179 = vector.multi_reduction <maximumf>, %178, %cst_42 [1] : vector<8x8xf32> to vector<8xf32>
    %180 = vector.shape_cast %179 : vector<8xf32> to vector<8x1xf32>
    %181 = vector.broadcast %180 : vector<8x1xf32> to vector<8x8xf32>
    %182 = arith.subf %178, %181 : vector<8x8xf32>
    %183 = math.exp %182 : vector<8x8xf32>
    %cst_43 = arith.constant dense<0.000000e+00> : vector<8xf32>
    %184 = vector.multi_reduction <add>, %183, %cst_43 [1] : vector<8x8xf32> to vector<8xf32>
    %185 = vector.shape_cast %184 : vector<8xf32> to vector<8x1xf32>
    %186 = tpu.reciprocal %185 {approx = true} : vector<8x1xf32> -> vector<8x1xf32>
    %187 = vector.broadcast %186 : vector<8x1xf32> to vector<8x8xf32>
    %188 = arith.mulf %183, %187 : vector<8x8xf32>
    %cst_44 = arith.constant dense<0.000000e+00> : vector<8x8xf32>
    %189 = tpu.matmul %188, %171, %cst_44 {dimension_numbers = #tpu.dot_dimension_numbers<[1], [0], [0], [1], [0, 0, 1, 1], [], []>} : vector<8x8xf32>, vector<8x8xf32>, vector<8x8xf32> -> vector<8x8xf32>
    %190 = tpu.concatenate %126, %147, %168, %189 in 1 : vector<8x8xf32>, vector<8x8xf32>, vector<8x8xf32>, vector<8x8xf32> -> vector<8x32xf32>
    %191 = tpu.concatenate %105, %190 in 0 : vector<8x32xf32>, vector<8x32xf32> -> vector<16x32xf32>
    %c0_45 = arith.constant 0 : index
    %c0_46 = arith.constant 0 : index
    %192 = vector.load %arg4[%c0_45, %c0_46] : memref<32x32xf32, #tpu.memory_space<vmem>>, vector<32x32xf32>
    %cst_47 = arith.constant dense<0.000000e+00> : vector<16x32xf32>
    %193 = tpu.matmul %191, %192, %cst_47 {dimension_numbers = #tpu.dot_dimension_numbers<[1], [0], [0], [1], [0, 0, 1, 1], [], []>} : vector<16x32xf32>, vector<32x32xf32>, vector<16x32xf32> -> vector<16x32xf32>
    %194 = arith.addf %0, %193 : vector<16x32xf32>
    %c0_48 = arith.constant 0 : index
    %c0_49 = arith.constant 0 : index
    %195 = vector.load %arg5[%c0_48, %c0_49] : memref<1x32xf32, #tpu.memory_space<vmem>>, vector<1x32xf32>
    %196 = arith.mulf %194, %194 : vector<16x32xf32>
    %cst_50 = arith.constant dense<0.000000e+00> : vector<16xf32>
    %197 = vector.multi_reduction <add>, %196, %cst_50 [1] : vector<16x32xf32> to vector<16xf32>
    %198 = vector.shape_cast %197 : vector<16xf32> to vector<16x1xf32>
    %cst_51 = arith.constant 3.200000e+01 : f32
    %199 = vector.broadcast %cst_51 : f32 to vector<16x1xf32>
    %200 = arith.divf %198, %199 : vector<16x1xf32>
    %cst_52 = arith.constant 9.99999997E-7 : f32
    %201 = vector.broadcast %cst_52 : f32 to vector<16x1xf32>
    %202 = arith.addf %200, %201 : vector<16x1xf32>
    %203 = math.rsqrt %202 : vector<16x1xf32>
    %204 = vector.broadcast %203 : vector<16x1xf32> to vector<16x32xf32>
    %205 = arith.mulf %194, %204 : vector<16x32xf32>
    %206 = vector.broadcast %195 : vector<1x32xf32> to vector<16x32xf32>
    %207 = arith.mulf %205, %206 : vector<16x32xf32>
    %c0_53 = arith.constant 0 : index
    %c0_54 = arith.constant 0 : index
    %208 = vector.load %arg6[%c0_53, %c0_54] : memref<32x64xf32, #tpu.memory_space<vmem>>, vector<32x64xf32>
    %cst_55 = arith.constant dense<0.000000e+00> : vector<16x64xf32>
    %209 = tpu.matmul %207, %208, %cst_55 {dimension_numbers = #tpu.dot_dimension_numbers<[1], [0], [0], [1], [0, 0, 1, 1], [], []>} : vector<16x32xf32>, vector<32x64xf32>, vector<16x64xf32> -> vector<16x64xf32>
    %cst_56 = arith.constant 0.000000e+00 : f32
    %210 = vector.broadcast %cst_56 : f32 to vector<16x64xf32>
    %211 = arith.maximumf %209, %210 : vector<16x64xf32>
    %c0_57 = arith.constant 0 : index
    %c0_58 = arith.constant 0 : index
    %212 = vector.load %arg7[%c0_57, %c0_58] : memref<64x32xf32, #tpu.memory_space<vmem>>, vector<64x32xf32>
    %cst_59 = arith.constant dense<0.000000e+00> : vector<16x32xf32>
    %213 = tpu.matmul %211, %212, %cst_59 {dimension_numbers = #tpu.dot_dimension_numbers<[1], [0], [0], [1], [0, 0, 1, 1], [], []>} : vector<16x64xf32>, vector<64x32xf32>, vector<16x32xf32> -> vector<16x32xf32>
    %214 = arith.addf %194, %213 : vector<16x32xf32>
    %c0_60 = arith.constant 0 : index
    %c0_61 = arith.constant 0 : index
    %215 = vector.load %arg11[%c0_60, %c0_61] : memref<16x32xf32, #tpu.memory_space<vmem>>, vector<16x32xf32>
    tpu.vector_store %arg11[%c0_60, %c0_61], %214 {strides = array<i32>} : memref<16x32xf32, #tpu.memory_space<vmem>>, vector<16x32xf32>,
    return
  }
  func.func @transform_0(%arg0: i32) -> (i32, i32) {
    %c0_i32 = arith.constant 0 : i32
    %c0_i32_0 = arith.constant 0 : i32
    %c0_i32_1 = arith.constant 0 : i32
    return %c0_i32, %c0_i32_0 : i32, i32
  }
  func.func @transform_1(%arg0: i32) -> (i32, i32) {
    %c0_i32 = arith.constant 0 : i32
    %c0_i32_0 = arith.constant 0 : i32
    %c0_i32_1 = arith.constant 0 : i32
    return %c0_i32, %c0_i32_0 : i32, i32
  }
  func.func @transform_2(%arg0: i32) -> (i32, i32) {
    %c0_i32 = arith.constant 0 : i32
    %c0_i32_0 = arith.constant 0 : i32
    %c0_i32_1 = arith.constant 0 : i32
    return %c0_i32, %c0_i32_0 : i32, i32
  }
  func.func @transform_3(%arg0: i32) -> (i32, i32) {
    %c0_i32 = arith.constant 0 : i32
    %c0_i32_0 = arith.constant 0 : i32
    %c0_i32_1 = arith.constant 0 : i32
    return %c0_i32, %c0_i32_0 : i32, i32
  }
  func.func @transform_4(%arg0: i32) -> (i32, i32) {
    %c0_i32 = arith.constant 0 : i32
    %c0_i32_0 = arith.constant 0 : i32
    %c0_i32_1 = arith.constant 0 : i32
    return %c0_i32, %c0_i32_0 : i32, i32
  }
  func.func @transform_5(%arg0: i32) -> (i32, i32) {
    %c0_i32 = arith.constant 0 : i32
    %c0_i32_0 = arith.constant 0 : i32
    %c0_i32_1 = arith.constant 0 : i32
    return %c0_i32, %c0_i32_0 : i32, i32
  }
  func.func @transform_6(%arg0: i32) -> (i32, i32) {
    %c0_i32 = arith.constant 0 : i32
    %c0_i32_0 = arith.constant 0 : i32
    %c0_i32_1 = arith.constant 0 : i32
    return %c0_i32, %c0_i32_0 : i32, i32
  }
  func.func @transform_7(%arg0: i32) -> (i32, i32, i32) {
    %c0_i32 = arith.constant 0 : i32
    %c0_i32_0 = arith.constant 0 : i32
    %c0_i32_1 = arith.constant 0 : i32
    %c0_i32_2 = arith.constant 0 : i32
    return %c0_i32, %c0_i32_0, %c0_i32_1 : i32, i32, i32
  }
  func.func @transform_8(%arg0: i32) -> (i32, i32) {
    %c0_i32 = arith.constant 0 : i32
    %c0_i32_0 = arith.constant 0 : i32
    %c0_i32_1 = arith.constant 0 : i32
    return %c0_i32, %c0_i32_0 : i32, i32
  }
  func.func @transform_9(%arg0: i32) -> (i32, i32) {
    %c0_i32 = arith.constant 0 : i32
    %c0_i32_0 = arith.constant 0 : i32
    %c0_i32_1 = arith.constant 0 : i32
    return %c0_i32, %c0_i32_0 : i32, i32
  }
  func.func @transform_10(%arg0: i32) -> (i32, i32) {
    %c0_i32 = arith.constant 0 : i32
    %c0_i32_0 = arith.constant 0 : i32
    %c0_i32_1 = arith.constant 0 : i32
    return %c0_i32, %c0_i32_0 : i32, i32
  }
}

module attributes {stable_mosaic.version = 11 : i64} {
  func.func @_enc_layer_kernel(%arg0: i32, %arg1: memref<16x32xf32, #tpu.memory_space<vmem>>, %arg2: memref<1x32xf32, #tpu.memory_space<vmem>>, %arg3: memref<32x96xf32, #tpu.memory_space<vmem>>, %arg4: memref<32x32xf32, #tpu.memory_space<vmem>>, %arg5: memref<1x32xf32, #tpu.memory_space<vmem>>, %arg6: memref<32x64xf32, #tpu.memory_space<vmem>>, %arg7: memref<64x32xf32, #tpu.memory_space<vmem>>, %arg8: memref<4x8x8xf32, #tpu.memory_space<vmem>>, %arg9: memref<2x8xf32, #tpu.memory_space<vmem>>, %arg10: memref<1x32xf32, #tpu.memory_space<vmem>>, %arg11: memref<16x32xf32, #tpu.memory_space<vmem>>) attributes {dimension_semantics = [#tpu.dimension_semantics<arbitrary>], iteration_bounds = array<i64: 1>, scalar_prefetch = 0 : i64, scratch_operands = 0 : i64, tpu.core_type = #tpu.core_type<tc>, window_params = [{pipeline_mode = #tpu.pipeline_mode<synchronous>, transform_indices = @transform_0, window_bounds = array<i64: 16, 32>}, {pipeline_mode = #tpu.pipeline_mode<synchronous>, transform_indices = @transform_1, window_bounds = array<i64: 1, 32>}, {pipeline_mode = #tpu.pipeline_mode<synchronous>, transform_indices = @transform_2, window_bounds = array<i64: 32, 96>}, {pipeline_mode = #tpu.pipeline_mode<synchronous>, transform_indices = @transform_3, window_bounds = array<i64: 32, 32>}, {pipeline_mode = #tpu.pipeline_mode<synchronous>, transform_indices = @transform_4, window_bounds = array<i64: 1, 32>}, {pipeline_mode = #tpu.pipeline_mode<synchronous>, transform_indices = @transform_5, window_bounds = array<i64: 32, 64>}, {pipeline_mode = #tpu.pipeline_mode<synchronous>, transform_indices = @transform_6, window_bounds = array<i64: 64, 32>}, {pipeline_mode = #tpu.pipeline_mode<synchronous>, transform_indices = @transform_7, window_bounds = array<i64: 4, 8, 8>}, {pipeline_mode = #tpu.pipeline_mode<synchronous>, transform_indices = @transform_8, window_bounds = array<i64: 2, 8>}, {pipeline_mode = #tpu.pipeline_mode<synchronous>, transform_indices = @transform_9, window_bounds = array<i64: 1, 32>}, {pipeline_mode = #tpu.pipeline_mode<synchronous>, transform_indices = @transform_10, window_bounds = array<i64: 16, 32>}]} {
    %c0 = arith.constant 0 : index
    %c0_0 = arith.constant 0 : index
    %0 = vector.load %arg1[%c0, %c0_0] : memref<16x32xf32, #tpu.memory_space<vmem>>, vector<16x32xf32>
    %c0_1 = arith.constant 0 : index
    %c0_2 = arith.constant 0 : index
    %c0_3 = arith.constant 0 : index
    %1 = vector.load %arg8[%c0_1, %c0_2, %c0_3] : memref<4x8x8xf32, #tpu.memory_space<vmem>>, vector<4x8x8xf32>
    %c0_4 = arith.constant 0 : index
    %c0_5 = arith.constant 0 : index
    %2 = vector.load %arg9[%c0_4, %c0_5] : memref<2x8xf32, #tpu.memory_space<vmem>>, vector<2x8xf32>
    %c0_6 = arith.constant 0 : index
    %c0_7 = arith.constant 0 : index
    %3 = vector.load %arg2[%c0_6, %c0_7] : memref<1x32xf32, #tpu.memory_space<vmem>>, vector<1x32xf32>
    %4 = arith.mulf %0, %0 : vector<16x32xf32>
    %cst = arith.constant dense<0.000000e+00> : vector<16xf32>
    %5 = vector.multi_reduction <add>, %4, %cst [1] : vector<16x32xf32> to vector<16xf32>
    %6 = vector.shape_cast %5 : vector<16xf32> to vector<16x1xf32>
    %cst_8 = arith.constant 3.200000e+01 : f32
    %7 = vector.broadcast %cst_8 : f32 to vector<16x1xf32>
    %8 = arith.divf %6, %7 : vector<16x1xf32>
    %cst_9 = arith.constant 9.99999997E-7 : f32
    %9 = vector.broadcast %cst_9 : f32 to vector<16x1xf32>
    %10 = arith.addf %8, %9 : vector<16x1xf32>
    %11 = math.rsqrt %10 : vector<16x1xf32>
    %12 = vector.broadcast %11 : vector<16x1xf32> to vector<16x32xf32>
    %13 = arith.mulf %0, %12 : vector<16x32xf32>
    %14 = vector.broadcast %3 : vector<1x32xf32> to vector<16x32xf32>
    %15 = arith.mulf %13, %14 : vector<16x32xf32>
    %c0_10 = arith.constant 0 : index
    %c0_11 = arith.constant 0 : index
    %16 = vector.load %arg3[%c0_10, %c0_11] : memref<32x96xf32, #tpu.memory_space<vmem>>, vector<32x96xf32>
    %cst_12 = arith.constant dense<0.000000e+00> : vector<16x96xf32>
    %17 = tpu.matmul %15, %16, %cst_12 {dimension_numbers = #tpu.dot_dimension_numbers<[1], [0], [0], [1], [0, 0, 1, 1], [], []>} : vector<16x32xf32>, vector<32x96xf32>, vector<16x96xf32> -> vector<16x96xf32>
    %18 = vector.extract_strided_slice %17 {offsets = [0, 0], sizes = [16, 32], strides = [1, 1]} : vector<16x96xf32> to vector<16x32xf32>
    %19 = vector.extract_strided_slice %17 {offsets = [0, 32], sizes = [16, 32], strides = [1, 1]} : vector<16x96xf32> to vector<16x32xf32>
    %20 = vector.extract_strided_slice %17 {offsets = [0, 64], sizes = [16, 32], strides = [1, 1]} : vector<16x96xf32> to vector<16x32xf32>
    %21 = vector.extract_strided_slice %18 {offsets = [0, 0], sizes = [8, 8], strides = [1, 1]} : vector<16x32xf32> to vector<8x8xf32>
    %22 = vector.extract_strided_slice %19 {offsets = [0, 0], sizes = [8, 8], strides = [1, 1]} : vector<16x32xf32> to vector<8x8xf32>
    %23 = vector.extract_strided_slice %20 {offsets = [0, 0], sizes = [8, 8], strides = [1, 1]} : vector<16x32xf32> to vector<8x8xf32>
    %cst_13 = arith.constant dense<0.000000e+00> : vector<8x8xf32>
    %24 = tpu.matmul %21, %22, %cst_13 {dimension_numbers = #tpu.dot_dimension_numbers<[1], [1], [0], [0], [0, 0, 1, 0], [], []>} : vector<8x8xf32>, vector<8x8xf32>, vector<8x8xf32> -> vector<8x8xf32>
    %25 = vector.extract_strided_slice %1 {offsets = [0, 0, 0], sizes = [1, 8, 8], strides = [1, 1, 1]} : vector<4x8x8xf32> to vector<1x8x8xf32>
    %26 = vector.shape_cast %25 : vector<1x8x8xf32> to vector<8x8xf32>
    %27 = arith.addf %24, %26 : vector<8x8xf32>
    %28 = vector.extract_strided_slice %2 {offsets = [0, 0], sizes = [1, 8], strides = [1, 1]} : vector<2x8xf32> to vector<1x8xf32>
    %29 = vector.broadcast %28 : vector<1x8xf32> to vector<8x8xf32>
    %30 = arith.addf %27, %29 : vector<8x8xf32>
    %cst_14 = arith.constant dense<0xFF800000> : vector<8xf32>
    %31 = vector.multi_reduction <maximumf>, %30, %cst_14 [1] : vector<8x8xf32> to vector<8xf32>
    %32 = vector.shape_cast %31 : vector<8xf32> to vector<8x1xf32>
    %33 = vector.broadcast %32 : vector<8x1xf32> to vector<8x8xf32>
    %34 = arith.subf %30, %33 : vector<8x8xf32>
    %35 = math.exp %34 : vector<8x8xf32>
    %cst_15 = arith.constant dense<0.000000e+00> : vector<8xf32>
    %36 = vector.multi_reduction <add>, %35, %cst_15 [1] : vector<8x8xf32> to vector<8xf32>
    %37 = vector.shape_cast %36 : vector<8xf32> to vector<8x1xf32>
    %38 = tpu.reciprocal %37 {approx = true} : vector<8x1xf32> -> vector<8x1xf32>
    %39 = vector.broadcast %38 : vector<8x1xf32> to vector<8x8xf32>
    %40 = arith.mulf %35, %39 : vector<8x8xf32>
    %cst_16 = arith.constant dense<0.000000e+00> : vector<8x8xf32>
    %41 = tpu.matmul %40, %23, %cst_16 {dimension_numbers = #tpu.dot_dimension_numbers<[1], [0], [0], [1], [0, 0, 1, 1], [], []>} : vector<8x8xf32>, vector<8x8xf32>, vector<8x8xf32> -> vector<8x8xf32>
    %42 = vector.extract_strided_slice %18 {offsets = [0, 8], sizes = [8, 8], strides = [1, 1]} : vector<16x32xf32> to vector<8x8xf32>
    %43 = vector.extract_strided_slice %19 {offsets = [0, 8], sizes = [8, 8], strides = [1, 1]} : vector<16x32xf32> to vector<8x8xf32>
    %44 = vector.extract_strided_slice %20 {offsets = [0, 8], sizes = [8, 8], strides = [1, 1]} : vector<16x32xf32> to vector<8x8xf32>
    %cst_17 = arith.constant dense<0.000000e+00> : vector<8x8xf32>
    %45 = tpu.matmul %42, %43, %cst_17 {dimension_numbers = #tpu.dot_dimension_numbers<[1], [1], [0], [0], [0, 0, 1, 0], [], []>} : vector<8x8xf32>, vector<8x8xf32>, vector<8x8xf32> -> vector<8x8xf32>
    %46 = vector.extract_strided_slice %1 {offsets = [1, 0, 0], sizes = [1, 8, 8], strides = [1, 1, 1]} : vector<4x8x8xf32> to vector<1x8x8xf32>
    %47 = vector.shape_cast %46 : vector<1x8x8xf32> to vector<8x8xf32>
    %48 = arith.addf %45, %47 : vector<8x8xf32>
    %49 = vector.extract_strided_slice %2 {offsets = [0, 0], sizes = [1, 8], strides = [1, 1]} : vector<2x8xf32> to vector<1x8xf32>
    %50 = vector.broadcast %49 : vector<1x8xf32> to vector<8x8xf32>
    %51 = arith.addf %48, %50 : vector<8x8xf32>
    %cst_18 = arith.constant dense<0xFF800000> : vector<8xf32>
    %52 = vector.multi_reduction <maximumf>, %51, %cst_18 [1] : vector<8x8xf32> to vector<8xf32>
    %53 = vector.shape_cast %52 : vector<8xf32> to vector<8x1xf32>
    %54 = vector.broadcast %53 : vector<8x1xf32> to vector<8x8xf32>
    %55 = arith.subf %51, %54 : vector<8x8xf32>
    %56 = math.exp %55 : vector<8x8xf32>
    %cst_19 = arith.constant dense<0.000000e+00> : vector<8xf32>
    %57 = vector.multi_reduction <add>, %56, %cst_19 [1] : vector<8x8xf32> to vector<8xf32>
    %58 = vector.shape_cast %57 : vector<8xf32> to vector<8x1xf32>
    %59 = tpu.reciprocal %58 {approx = true} : vector<8x1xf32> -> vector<8x1xf32>
    %60 = vector.broadcast %59 : vector<8x1xf32> to vector<8x8xf32>
    %61 = arith.mulf %56, %60 : vector<8x8xf32>
    %cst_20 = arith.constant dense<0.000000e+00> : vector<8x8xf32>
    %62 = tpu.matmul %61, %44, %cst_20 {dimension_numbers = #tpu.dot_dimension_numbers<[1], [0], [0], [1], [0, 0, 1, 1], [], []>} : vector<8x8xf32>, vector<8x8xf32>, vector<8x8xf32> -> vector<8x8xf32>
    %63 = vector.extract_strided_slice %18 {offsets = [0, 16], sizes = [8, 8], strides = [1, 1]} : vector<16x32xf32> to vector<8x8xf32>
    %64 = vector.extract_strided_slice %19 {offsets = [0, 16], sizes = [8, 8], strides = [1, 1]} : vector<16x32xf32> to vector<8x8xf32>
    %65 = vector.extract_strided_slice %20 {offsets = [0, 16], sizes = [8, 8], strides = [1, 1]} : vector<16x32xf32> to vector<8x8xf32>
    %cst_21 = arith.constant dense<0.000000e+00> : vector<8x8xf32>
    %66 = tpu.matmul %63, %64, %cst_21 {dimension_numbers = #tpu.dot_dimension_numbers<[1], [1], [0], [0], [0, 0, 1, 0], [], []>} : vector<8x8xf32>, vector<8x8xf32>, vector<8x8xf32> -> vector<8x8xf32>
    %67 = vector.extract_strided_slice %1 {offsets = [2, 0, 0], sizes = [1, 8, 8], strides = [1, 1, 1]} : vector<4x8x8xf32> to vector<1x8x8xf32>
    %68 = vector.shape_cast %67 : vector<1x8x8xf32> to vector<8x8xf32>
    %69 = arith.addf %66, %68 : vector<8x8xf32>
    %70 = vector.extract_strided_slice %2 {offsets = [0, 0], sizes = [1, 8], strides = [1, 1]} : vector<2x8xf32> to vector<1x8xf32>
    %71 = vector.broadcast %70 : vector<1x8xf32> to vector<8x8xf32>
    %72 = arith.addf %69, %71 : vector<8x8xf32>
    %cst_22 = arith.constant dense<0xFF800000> : vector<8xf32>
    %73 = vector.multi_reduction <maximumf>, %72, %cst_22 [1] : vector<8x8xf32> to vector<8xf32>
    %74 = vector.shape_cast %73 : vector<8xf32> to vector<8x1xf32>
    %75 = vector.broadcast %74 : vector<8x1xf32> to vector<8x8xf32>
    %76 = arith.subf %72, %75 : vector<8x8xf32>
    %77 = math.exp %76 : vector<8x8xf32>
    %cst_23 = arith.constant dense<0.000000e+00> : vector<8xf32>
    %78 = vector.multi_reduction <add>, %77, %cst_23 [1] : vector<8x8xf32> to vector<8xf32>
    %79 = vector.shape_cast %78 : vector<8xf32> to vector<8x1xf32>
    %80 = tpu.reciprocal %79 {approx = true} : vector<8x1xf32> -> vector<8x1xf32>
    %81 = vector.broadcast %80 : vector<8x1xf32> to vector<8x8xf32>
    %82 = arith.mulf %77, %81 : vector<8x8xf32>
    %cst_24 = arith.constant dense<0.000000e+00> : vector<8x8xf32>
    %83 = tpu.matmul %82, %65, %cst_24 {dimension_numbers = #tpu.dot_dimension_numbers<[1], [0], [0], [1], [0, 0, 1, 1], [], []>} : vector<8x8xf32>, vector<8x8xf32>, vector<8x8xf32> -> vector<8x8xf32>
    %84 = vector.extract_strided_slice %18 {offsets = [0, 24], sizes = [8, 8], strides = [1, 1]} : vector<16x32xf32> to vector<8x8xf32>
    %85 = vector.extract_strided_slice %19 {offsets = [0, 24], sizes = [8, 8], strides = [1, 1]} : vector<16x32xf32> to vector<8x8xf32>
    %86 = vector.extract_strided_slice %20 {offsets = [0, 24], sizes = [8, 8], strides = [1, 1]} : vector<16x32xf32> to vector<8x8xf32>
    %cst_25 = arith.constant dense<0.000000e+00> : vector<8x8xf32>
    %87 = tpu.matmul %84, %85, %cst_25 {dimension_numbers = #tpu.dot_dimension_numbers<[1], [1], [0], [0], [0, 0, 1, 0], [], []>} : vector<8x8xf32>, vector<8x8xf32>, vector<8x8xf32> -> vector<8x8xf32>
    %88 = vector.extract_strided_slice %1 {offsets = [3, 0, 0], sizes = [1, 8, 8], strides = [1, 1, 1]} : vector<4x8x8xf32> to vector<1x8x8xf32>
    %89 = vector.shape_cast %88 : vector<1x8x8xf32> to vector<8x8xf32>
    %90 = arith.addf %87, %89 : vector<8x8xf32>
    %91 = vector.extract_strided_slice %2 {offsets = [0, 0], sizes = [1, 8], strides = [1, 1]} : vector<2x8xf32> to vector<1x8xf32>
    %92 = vector.broadcast %91 : vector<1x8xf32> to vector<8x8xf32>
    %93 = arith.addf %90, %92 : vector<8x8xf32>
    %cst_26 = arith.constant dense<0xFF800000> : vector<8xf32>
    %94 = vector.multi_reduction <maximumf>, %93, %cst_26 [1] : vector<8x8xf32> to vector<8xf32>
    %95 = vector.shape_cast %94 : vector<8xf32> to vector<8x1xf32>
    %96 = vector.broadcast %95 : vector<8x1xf32> to vector<8x8xf32>
    %97 = arith.subf %93, %96 : vector<8x8xf32>
    %98 = math.exp %97 : vector<8x8xf32>
    %cst_27 = arith.constant dense<0.000000e+00> : vector<8xf32>
    %99 = vector.multi_reduction <add>, %98, %cst_27 [1] : vector<8x8xf32> to vector<8xf32>
    %100 = vector.shape_cast %99 : vector<8xf32> to vector<8x1xf32>
    %101 = tpu.reciprocal %100 {approx = true} : vector<8x1xf32> -> vector<8x1xf32>
    %102 = vector.broadcast %101 : vector<8x1xf32> to vector<8x8xf32>
    %103 = arith.mulf %98, %102 : vector<8x8xf32>
    %cst_28 = arith.constant dense<0.000000e+00> : vector<8x8xf32>
    %104 = tpu.matmul %103, %86, %cst_28 {dimension_numbers = #tpu.dot_dimension_numbers<[1], [0], [0], [1], [0, 0, 1, 1], [], []>} : vector<8x8xf32>, vector<8x8xf32>, vector<8x8xf32> -> vector<8x8xf32>
    %105 = tpu.concatenate %41, %62, %83, %104 in 1 : vector<8x8xf32>, vector<8x8xf32>, vector<8x8xf32>, vector<8x8xf32> -> vector<8x32xf32>
    %106 = vector.extract_strided_slice %18 {offsets = [8, 0], sizes = [8, 8], strides = [1, 1]} : vector<16x32xf32> to vector<8x8xf32>
    %107 = vector.extract_strided_slice %19 {offsets = [8, 0], sizes = [8, 8], strides = [1, 1]} : vector<16x32xf32> to vector<8x8xf32>
    %108 = vector.extract_strided_slice %20 {offsets = [8, 0], sizes = [8, 8], strides = [1, 1]} : vector<16x32xf32> to vector<8x8xf32>
    %cst_29 = arith.constant dense<0.000000e+00> : vector<8x8xf32>
    %109 = tpu.matmul %106, %107, %cst_29 {dimension_numbers = #tpu.dot_dimension_numbers<[1], [1], [0], [0], [0, 0, 1, 0], [], []>} : vector<8x8xf32>, vector<8x8xf32>, vector<8x8xf32> -> vector<8x8xf32>
    %110 = vector.extract_strided_slice %1 {offsets = [0, 0, 0], sizes = [1, 8, 8], strides = [1, 1, 1]} : vector<4x8x8xf32> to vector<1x8x8xf32>
    %111 = vector.shape_cast %110 : vector<1x8x8xf32> to vector<8x8xf32>
    %112 = arith.addf %109, %111 : vector<8x8xf32>
    %113 = vector.extract_strided_slice %2 {offsets = [1, 0], sizes = [1, 8], strides = [1, 1]} : vector<2x8xf32> to vector<1x8xf32>
    %114 = vector.broadcast %113 : vector<1x8xf32> to vector<8x8xf32>
    %115 = arith.addf %112, %114 : vector<8x8xf32>
    %cst_30 = arith.constant dense<0xFF800000> : vector<8xf32>
    %116 = vector.multi_reduction <maximumf>, %115, %cst_30 [1] : vector<8x8xf32> to vector<8xf32>
    %117 = vector.shape_cast %116 : vector<8xf32> to vector<8x1xf32>
    %118 = vector.broadcast %117 : vector<8x1xf32> to vector<8x8xf32>
    %119 = arith.subf %115, %118 : vector<8x8xf32>
    %120 = math.exp %119 : vector<8x8xf32>
    %cst_31 = arith.constant dense<0.000000e+00> : vector<8xf32>
    %121 = vector.multi_reduction <add>, %120, %cst_31 [1] : vector<8x8xf32> to vector<8xf32>
    %122 = vector.shape_cast %121 : vector<8xf32> to vector<8x1xf32>
    %123 = tpu.reciprocal %122 {approx = true} : vector<8x1xf32> -> vector<8x1xf32>
    %124 = vector.broadcast %123 : vector<8x1xf32> to vector<8x8xf32>
    %125 = arith.mulf %120, %124 : vector<8x8xf32>
    %cst_32 = arith.constant dense<0.000000e+00> : vector<8x8xf32>
    %126 = tpu.matmul %125, %108, %cst_32 {dimension_numbers = #tpu.dot_dimension_numbers<[1], [0], [0], [1], [0, 0, 1, 1], [], []>} : vector<8x8xf32>, vector<8x8xf32>, vector<8x8xf32> -> vector<8x8xf32>
    %127 = vector.extract_strided_slice %18 {offsets = [8, 8], sizes = [8, 8], strides = [1, 1]} : vector<16x32xf32> to vector<8x8xf32>
    %128 = vector.extract_strided_slice %19 {offsets = [8, 8], sizes = [8, 8], strides = [1, 1]} : vector<16x32xf32> to vector<8x8xf32>
    %129 = vector.extract_strided_slice %20 {offsets = [8, 8], sizes = [8, 8], strides = [1, 1]} : vector<16x32xf32> to vector<8x8xf32>
    %cst_33 = arith.constant dense<0.000000e+00> : vector<8x8xf32>
    %130 = tpu.matmul %127, %128, %cst_33 {dimension_numbers = #tpu.dot_dimension_numbers<[1], [1], [0], [0], [0, 0, 1, 0], [], []>} : vector<8x8xf32>, vector<8x8xf32>, vector<8x8xf32> -> vector<8x8xf32>
    %131 = vector.extract_strided_slice %1 {offsets = [1, 0, 0], sizes = [1, 8, 8], strides = [1, 1, 1]} : vector<4x8x8xf32> to vector<1x8x8xf32>
    %132 = vector.shape_cast %131 : vector<1x8x8xf32> to vector<8x8xf32>
    %133 = arith.addf %130, %132 : vector<8x8xf32>
    %134 = vector.extract_strided_slice %2 {offsets = [1, 0], sizes = [1, 8], strides = [1, 1]} : vector<2x8xf32> to vector<1x8xf32>
    %135 = vector.broadcast %134 : vector<1x8xf32> to vector<8x8xf32>
    %136 = arith.addf %133, %135 : vector<8x8xf32>
    %cst_34 = arith.constant dense<0xFF800000> : vector<8xf32>
    %137 = vector.multi_reduction <maximumf>, %136, %cst_34 [1] : vector<8x8xf32> to vector<8xf32>
    %138 = vector.shape_cast %137 : vector<8xf32> to vector<8x1xf32>
    %139 = vector.broadcast %138 : vector<8x1xf32> to vector<8x8xf32>
    %140 = arith.subf %136, %139 : vector<8x8xf32>
    %141 = math.exp %140 : vector<8x8xf32>
    %cst_35 = arith.constant dense<0.000000e+00> : vector<8xf32>
    %142 = vector.multi_reduction <add>, %141, %cst_35 [1] : vector<8x8xf32> to vector<8xf32>
    %143 = vector.shape_cast %142 : vector<8xf32> to vector<8x1xf32>
    %144 = tpu.reciprocal %143 {approx = true} : vector<8x1xf32> -> vector<8x1xf32>
    %145 = vector.broadcast %144 : vector<8x1xf32> to vector<8x8xf32>
    %146 = arith.mulf %141, %145 : vector<8x8xf32>
    %cst_36 = arith.constant dense<0.000000e+00> : vector<8x8xf32>
    %147 = tpu.matmul %146, %129, %cst_36 {dimension_numbers = #tpu.dot_dimension_numbers<[1], [0], [0], [1], [0, 0, 1, 1], [], []>} : vector<8x8xf32>, vector<8x8xf32>, vector<8x8xf32> -> vector<8x8xf32>
    %148 = vector.extract_strided_slice %18 {offsets = [8, 16], sizes = [8, 8], strides = [1, 1]} : vector<16x32xf32> to vector<8x8xf32>
    %149 = vector.extract_strided_slice %19 {offsets = [8, 16], sizes = [8, 8], strides = [1, 1]} : vector<16x32xf32> to vector<8x8xf32>
    %150 = vector.extract_strided_slice %20 {offsets = [8, 16], sizes = [8, 8], strides = [1, 1]} : vector<16x32xf32> to vector<8x8xf32>
    %cst_37 = arith.constant dense<0.000000e+00> : vector<8x8xf32>
    %151 = tpu.matmul %148, %149, %cst_37 {dimension_numbers = #tpu.dot_dimension_numbers<[1], [1], [0], [0], [0, 0, 1, 0], [], []>} : vector<8x8xf32>, vector<8x8xf32>, vector<8x8xf32> -> vector<8x8xf32>
    %152 = vector.extract_strided_slice %1 {offsets = [2, 0, 0], sizes = [1, 8, 8], strides = [1, 1, 1]} : vector<4x8x8xf32> to vector<1x8x8xf32>
    %153 = vector.shape_cast %152 : vector<1x8x8xf32> to vector<8x8xf32>
    %154 = arith.addf %151, %153 : vector<8x8xf32>
    %155 = vector.extract_strided_slice %2 {offsets = [1, 0], sizes = [1, 8], strides = [1, 1]} : vector<2x8xf32> to vector<1x8xf32>
    %156 = vector.broadcast %155 : vector<1x8xf32> to vector<8x8xf32>
    %157 = arith.addf %154, %156 : vector<8x8xf32>
    %cst_38 = arith.constant dense<0xFF800000> : vector<8xf32>
    %158 = vector.multi_reduction <maximumf>, %157, %cst_38 [1] : vector<8x8xf32> to vector<8xf32>
    %159 = vector.shape_cast %158 : vector<8xf32> to vector<8x1xf32>
    %160 = vector.broadcast %159 : vector<8x1xf32> to vector<8x8xf32>
    %161 = arith.subf %157, %160 : vector<8x8xf32>
    %162 = math.exp %161 : vector<8x8xf32>
    %cst_39 = arith.constant dense<0.000000e+00> : vector<8xf32>
    %163 = vector.multi_reduction <add>, %162, %cst_39 [1] : vector<8x8xf32> to vector<8xf32>
    %164 = vector.shape_cast %163 : vector<8xf32> to vector<8x1xf32>
    %165 = tpu.reciprocal %164 {approx = true} : vector<8x1xf32> -> vector<8x1xf32>
    %166 = vector.broadcast %165 : vector<8x1xf32> to vector<8x8xf32>
    %167 = arith.mulf %162, %166 : vector<8x8xf32>
    %cst_40 = arith.constant dense<0.000000e+00> : vector<8x8xf32>
    %168 = tpu.matmul %167, %150, %cst_40 {dimension_numbers = #tpu.dot_dimension_numbers<[1], [0], [0], [1], [0, 0, 1, 1], [], []>} : vector<8x8xf32>, vector<8x8xf32>, vector<8x8xf32> -> vector<8x8xf32>
    %169 = vector.extract_strided_slice %18 {offsets = [8, 24], sizes = [8, 8], strides = [1, 1]} : vector<16x32xf32> to vector<8x8xf32>
    %170 = vector.extract_strided_slice %19 {offsets = [8, 24], sizes = [8, 8], strides = [1, 1]} : vector<16x32xf32> to vector<8x8xf32>
    %171 = vector.extract_strided_slice %20 {offsets = [8, 24], sizes = [8, 8], strides = [1, 1]} : vector<16x32xf32> to vector<8x8xf32>
    %cst_41 = arith.constant dense<0.000000e+00> : vector<8x8xf32>
    %172 = tpu.matmul %169, %170, %cst_41 {dimension_numbers = #tpu.dot_dimension_numbers<[1], [1], [0], [0], [0, 0, 1, 0], [], []>} : vector<8x8xf32>, vector<8x8xf32>, vector<8x8xf32> -> vector<8x8xf32>
    %173 = vector.extract_strided_slice %1 {offsets = [3, 0, 0], sizes = [1, 8, 8], strides = [1, 1, 1]} : vector<4x8x8xf32> to vector<1x8x8xf32>
    %174 = vector.shape_cast %173 : vector<1x8x8xf32> to vector<8x8xf32>
    %175 = arith.addf %172, %174 : vector<8x8xf32>
    %176 = vector.extract_strided_slice %2 {offsets = [1, 0], sizes = [1, 8], strides = [1, 1]} : vector<2x8xf32> to vector<1x8xf32>
    %177 = vector.broadcast %176 : vector<1x8xf32> to vector<8x8xf32>
    %178 = arith.addf %175, %177 : vector<8x8xf32>
    %cst_42 = arith.constant dense<0xFF800000> : vector<8xf32>
    %179 = vector.multi_reduction <maximumf>, %178, %cst_42 [1] : vector<8x8xf32> to vector<8xf32>
    %180 = vector.shape_cast %179 : vector<8xf32> to vector<8x1xf32>
    %181 = vector.broadcast %180 : vector<8x1xf32> to vector<8x8xf32>
    %182 = arith.subf %178, %181 : vector<8x8xf32>
    %183 = math.exp %182 : vector<8x8xf32>
    %cst_43 = arith.constant dense<0.000000e+00> : vector<8xf32>
    %184 = vector.multi_reduction <add>, %183, %cst_43 [1] : vector<8x8xf32> to vector<8xf32>
    %185 = vector.shape_cast %184 : vector<8xf32> to vector<8x1xf32>
    %186 = tpu.reciprocal %185 {approx = true} : vector<8x1xf32> -> vector<8x1xf32>
    %187 = vector.broadcast %186 : vector<8x1xf32> to vector<8x8xf32>
    %188 = arith.mulf %183, %187 : vector<8x8xf32>
    %cst_44 = arith.constant dense<0.000000e+00> : vector<8x8xf32>
    %189 = tpu.matmul %188, %171, %cst_44 {dimension_numbers = #tpu.dot_dimension_numbers<[1], [0], [0], [1], [0, 0, 1, 1], [], []>} : vector<8x8xf32>, vector<8x8xf32>, vector<8x8xf32> -> vector<8x8xf32>
    %190 = tpu.concatenate %126, %147, %168, %189 in 1 : vector<8x8xf32>, vector<8x8xf32>, vector<8x8xf32>, vector<8x8xf32> -> vector<8x32xf32>
    %191 = tpu.concatenate %105, %190 in 0 : vector<8x32xf32>, vector<8x32xf32> -> vector<16x32xf32>
    %c0_45 = arith.constant 0 : index
    %c0_46 = arith.constant 0 : index
    %192 = vector.load %arg4[%c0_45, %c0_46] : memref<32x32xf32, #tpu.memory_space<vmem>>, vector<32x32xf32>
    %cst_47 = arith.constant dense<0.000000e+00> : vector<16x32xf32>
    %193 = tpu.matmul %191, %192, %cst_47 {dimension_numbers = #tpu.dot_dimension_numbers<[1], [0], [0], [1], [0, 0, 1, 1], [], []>} : vector<16x32xf32>, vector<32x32xf32>, vector<16x32xf32> -> vector<16x32xf32>
    %194 = arith.addf %0, %193 : vector<16x32xf32>
    %c0_48 = arith.constant 0 : index
    %c0_49 = arith.constant 0 : index
    %195 = vector.load %arg5[%c0_48, %c0_49] : memref<1x32xf32, #tpu.memory_space<vmem>>, vector<1x32xf32>
    %196 = arith.mulf %194, %194 : vector<16x32xf32>
    %cst_50 = arith.constant dense<0.000000e+00> : vector<16xf32>
    %197 = vector.multi_reduction <add>, %196, %cst_50 [1] : vector<16x32xf32> to vector<16xf32>
    %198 = vector.shape_cast %197 : vector<16xf32> to vector<16x1xf32>
    %cst_51 = arith.constant 3.200000e+01 : f32
    %199 = vector.broadcast %cst_51 : f32 to vector<16x1xf32>
    %200 = arith.divf %198, %199 : vector<16x1xf32>
    %cst_52 = arith.constant 9.99999997E-7 : f32
    %201 = vector.broadcast %cst_52 : f32 to vector<16x1xf32>
    %202 = arith.addf %200, %201 : vector<16x1xf32>
    %203 = math.rsqrt %202 : vector<16x1xf32>
    %204 = vector.broadcast %203 : vector<16x1xf32> to vector<16x32xf32>
    %205 = arith.mulf %194, %204 : vector<16x32xf32>
    %206 = vector.broadcast %195 : vector<1x32xf32> to vector<16x32xf32>
    %207 = arith.mulf %205, %206 : vector<16x32xf32>
    %c0_53 = arith.constant 0 : index
    %c0_54 = arith.constant 0 : index
    %208 = vector.load %arg6[%c0_53, %c0_54] : memref<32x64xf32, #tpu.memory_space<vmem>>, vector<32x64xf32>
    %cst_55 = arith.constant dense<0.000000e+00> : vector<16x64xf32>
    %209 = tpu.matmul %207, %208, %cst_55 {dimension_numbers = #tpu.dot_dimension_numbers<[1], [0], [0], [1], [0, 0, 1, 1], [], []>} : vector<16x32xf32>, vector<32x64xf32>, vector<16x64xf32> -> vector<16x64xf32>
    %cst_56 = arith.constant 0.000000e+00 : f32
    %210 = vector.broadcast %cst_56 : f32 to vector<16x64xf32>
    %211 = arith.maximumf %209, %210 : vector<16x64xf32>
    %c0_57 = arith.constant 0 : index
    %c0_58 = arith.constant 0 : index
    %212 = vector.load %arg7[%c0_57, %c0_58] : memref<64x32xf32, #tpu.memory_space<vmem>>, vector<64x32xf32>
    %cst_59 = arith.constant dense<0.000000e+00> : vector<16x32xf32>
    %213 = tpu.matmul %211, %212, %cst_59 {dimension_numbers = #tpu.dot_dimension_numbers<[1], [0], [0], [1], [0, 0, 1, 1], [], []>} : vector<16x64xf32>, vector<64x32xf32>, vector<16x32xf32> -> vector<16x32xf32>
    %214 = arith.addf %194, %213 : vector<16x32xf32>
    %c0_60 = arith.constant 0 : index
    %c0_61 = arith.constant 0 : index
    %215 = vector.load %arg10[%c0_60, %c0_61] : memref<1x32xf32, #tpu.memory_space<vmem>>, vector<1x32xf32>
    %216 = arith.mulf %214, %214 : vector<16x32xf32>
    %cst_62 = arith.constant dense<0.000000e+00> : vector<16xf32>
    %217 = vector.multi_reduction <add>, %216, %cst_62 [1] : vector<16x32xf32> to vector<16xf32>
    %218 = vector.shape_cast %217 : vector<16xf32> to vector<16x1xf32>
    %cst_63 = arith.constant 3.200000e+01 : f32
    %219 = vector.broadcast %cst_63 : f32 to vector<16x1xf32>
    %220 = arith.divf %218, %219 : vector<16x1xf32>
    %cst_64 = arith.constant 9.99999997E-7 : f32
    %221 = vector.broadcast %cst_64 : f32 to vector<16x1xf32>
    %222 = arith.addf %220, %221 : vector<16x1xf32>
    %223 = math.rsqrt %222 : vector<16x1xf32>
    %224 = vector.broadcast %223 : vector<16x1xf32> to vector<16x32xf32>
    %225 = arith.mulf %214, %224 : vector<16x32xf32>
    %226 = vector.broadcast %215 : vector<1x32xf32> to vector<16x32xf32>
    %227 = arith.mulf %225, %226 : vector<16x32xf32>
    %c0_65 = arith.constant 0 : index
    %c0_66 = arith.constant 0 : index
    %228 = vector.load %arg11[%c0_65, %c0_66] : memref<16x32xf32, #tpu.memory_space<vmem>>, vector<16x32xf32>
    tpu.vector_store %arg11[%c0_65, %c0_66], %227 {strides = array<i32>} : memref<16x32xf32, #tpu.memory_space<vmem>>, vector<16x32xf32>,
    return
  }
  func.func @transform_0(%arg0: i32) -> (i32, i32) {
    %c0_i32 = arith.constant 0 : i32
    %c0_i32_0 = arith.constant 0 : i32
    %c0_i32_1 = arith.constant 0 : i32
    return %c0_i32, %c0_i32_0 : i32, i32
  }
  func.func @transform_1(%arg0: i32) -> (i32, i32) {
    %c0_i32 = arith.constant 0 : i32
    %c0_i32_0 = arith.constant 0 : i32
    %c0_i32_1 = arith.constant 0 : i32
    return %c0_i32, %c0_i32_0 : i32, i32
  }
  func.func @transform_2(%arg0: i32) -> (i32, i32) {
    %c0_i32 = arith.constant 0 : i32
    %c0_i32_0 = arith.constant 0 : i32
    %c0_i32_1 = arith.constant 0 : i32
    return %c0_i32, %c0_i32_0 : i32, i32
  }
  func.func @transform_3(%arg0: i32) -> (i32, i32) {
    %c0_i32 = arith.constant 0 : i32
    %c0_i32_0 = arith.constant 0 : i32
    %c0_i32_1 = arith.constant 0 : i32
    return %c0_i32, %c0_i32_0 : i32, i32
  }
  func.func @transform_4(%arg0: i32) -> (i32, i32) {
    %c0_i32 = arith.constant 0 : i32
    %c0_i32_0 = arith.constant 0 : i32
    %c0_i32_1 = arith.constant 0 : i32
    return %c0_i32, %c0_i32_0 : i32, i32
  }
  func.func @transform_5(%arg0: i32) -> (i32, i32) {
    %c0_i32 = arith.constant 0 : i32
    %c0_i32_0 = arith.constant 0 : i32
    %c0_i32_1 = arith.constant 0 : i32
    return %c0_i32, %c0_i32_0 : i32, i32
  }
  func.func @transform_6(%arg0: i32) -> (i32, i32) {
    %c0_i32 = arith.constant 0 : i32
    %c0_i32_0 = arith.constant 0 : i32
    %c0_i32_1 = arith.constant 0 : i32
    return %c0_i32, %c0_i32_0 : i32, i32
  }
  func.func @transform_7(%arg0: i32) -> (i32, i32, i32) {
    %c0_i32 = arith.constant 0 : i32
    %c0_i32_0 = arith.constant 0 : i32
    %c0_i32_1 = arith.constant 0 : i32
    %c0_i32_2 = arith.constant 0 : i32
    return %c0_i32, %c0_i32_0, %c0_i32_1 : i32, i32, i32
  }
  func.func @transform_8(%arg0: i32) -> (i32, i32) {
    %c0_i32 = arith.constant 0 : i32
    %c0_i32_0 = arith.constant 0 : i32
    %c0_i32_1 = arith.constant 0 : i32
    return %c0_i32, %c0_i32_0 : i32, i32
  }
  func.func @transform_9(%arg0: i32) -> (i32, i32) {
    %c0_i32 = arith.constant 0 : i32
    %c0_i32_0 = arith.constant 0 : i32
    %c0_i32_1 = arith.constant 0 : i32
    return %c0_i32, %c0_i32_0 : i32, i32
  }
  func.func @transform_10(%arg0: i32) -> (i32, i32) {
    %c0_i32 = arith.constant 0 : i32
    %c0_i32_0 = arith.constant 0 : i32
    %c0_i32_1 = arith.constant 0 : i32
    return %c0_i32, %c0_i32_0 : i32, i32
  }
}

module attributes {stable_mosaic.version = 11 : i64} {
  func.func @_lm_loss_kernel(%arg0: i32, %arg1: memref<16xi32, #tpu.memory_space<smem>>, %arg2: memref<16x32xf32, #tpu.memory_space<vmem>>, %arg3: memref<1x32xf32, #tpu.memory_space<vmem>>, %arg4: memref<128x32xf32, #tpu.memory_space<vmem>>, %arg5: memref<1x1xf32, #tpu.memory_space<vmem>>, %arg6: memref<1x1xf32, #tpu.memory_space<vmem>>, %arg7: memref<16x128xf32, #tpu.memory_space<vmem>>) attributes {dimension_semantics = [#tpu.dimension_semantics<arbitrary>], iteration_bounds = array<i64: 1>, scalar_prefetch = 0 : i64, scratch_operands = 1 : i64, tpu.core_type = #tpu.core_type<tc>, window_params = [{transform_indices = @transform_0, window_bounds = array<i64: 16>}, {pipeline_mode = #tpu.pipeline_mode<synchronous>, transform_indices = @transform_1, window_bounds = array<i64: 16, 32>}, {pipeline_mode = #tpu.pipeline_mode<synchronous>, transform_indices = @transform_2, window_bounds = array<i64: 1, 32>}, {pipeline_mode = #tpu.pipeline_mode<synchronous>, transform_indices = @transform_3, window_bounds = array<i64: 128, 32>}, {pipeline_mode = #tpu.pipeline_mode<synchronous>, transform_indices = @transform_4, window_bounds = array<i64: 1, 1>}, {pipeline_mode = #tpu.pipeline_mode<synchronous>, transform_indices = @transform_5, window_bounds = array<i64: 1, 1>}]} {
    %c0 = arith.constant 0 : index
    %c0_0 = arith.constant 0 : index
    %0 = vector.load %arg2[%c0, %c0_0] : memref<16x32xf32, #tpu.memory_space<vmem>>, vector<16x32xf32>
    %c0_1 = arith.constant 0 : index
    %c0_2 = arith.constant 0 : index
    %1 = vector.load %arg3[%c0_1, %c0_2] : memref<1x32xf32, #tpu.memory_space<vmem>>, vector<1x32xf32>
    %2 = arith.mulf %0, %0 : vector<16x32xf32>
    %cst = arith.constant dense<0.000000e+00> : vector<16xf32>
    %3 = vector.multi_reduction <add>, %2, %cst [1] : vector<16x32xf32> to vector<16xf32>
    %4 = vector.shape_cast %3 : vector<16xf32> to vector<16x1xf32>
    %cst_3 = arith.constant 3.200000e+01 : f32
    %5 = vector.broadcast %cst_3 : f32 to vector<16x1xf32>
    %6 = arith.divf %4, %5 : vector<16x1xf32>
    %cst_4 = arith.constant 9.99999997E-7 : f32
    %7 = vector.broadcast %cst_4 : f32 to vector<16x1xf32>
    %8 = arith.addf %6, %7 : vector<16x1xf32>
    %9 = math.rsqrt %8 : vector<16x1xf32>
    %10 = vector.broadcast %9 : vector<16x1xf32> to vector<16x32xf32>
    %11 = arith.mulf %0, %10 : vector<16x32xf32>
    %12 = vector.broadcast %1 : vector<1x32xf32> to vector<16x32xf32>
    %13 = arith.mulf %11, %12 : vector<16x32xf32>
    %cst_5 = arith.constant 0.176776692 : f32
    %14 = vector.broadcast %cst_5 : f32 to vector<16x32xf32>
    %15 = arith.mulf %13, %14 : vector<16x32xf32>
    %c0_6 = arith.constant 0 : index
    %c0_7 = arith.constant 0 : index
    %16 = vector.load %arg4[%c0_6, %c0_7] : memref<128x32xf32, #tpu.memory_space<vmem>>, vector<128x32xf32>
    %cst_8 = arith.constant dense<0.000000e+00> : vector<16x128xf32>
    %17 = tpu.matmul %15, %16, %cst_8 {dimension_numbers = #tpu.dot_dimension_numbers<[1], [1], [0], [0], [0, 0, 1, 0], [], []>} : vector<16x32xf32>, vector<128x32xf32>, vector<16x128xf32> -> vector<16x128xf32>
    %c0_9 = arith.constant 0 : index
    %c0_10 = arith.constant 0 : index
    %18 = vector.load %arg7[%c0_9, %c0_10] : memref<16x128xf32, #tpu.memory_space<vmem>>, vector<16x128xf32>
    tpu.vector_store %arg7[%c0_9, %c0_10], %17 {strides = array<i32>} : memref<16x128xf32, #tpu.memory_space<vmem>>, vector<16x128xf32>,
    %19 = tpu.iota {dimensions = array<i32: 1>} : vector<1x128xi32>
    %cst_11 = arith.constant 0.000000e+00 : f32
    %20 = vector.broadcast %cst_11 : f32 to vector<1x1xf32>
    %cst_12 = arith.constant 0.000000e+00 : f32
    %21 = vector.broadcast %cst_12 : f32 to vector<1x1xf32>
    %c0_i32 = arith.constant 0 : i32
    %c16_i32 = arith.constant 16 : i32
    %22 = arith.addi %c0_i32, %c16_i32 : i32
    %c1_i32 = arith.constant 1 : i32
    %23:2 = scf.for %arg8 = %c0_i32 to %22 step %c1_i32 iter_args(%arg9 = %20, %arg10 = %21) -> (vector<1x1xf32>, vector<1x1xf32>)  : i32 {
      %26 = arith.index_cast %arg8 : i32 to index
      %c0_18 = arith.constant 0 : index
      %27 = vector.load %arg7[%26, %c0_18] : memref<16x128xf32, #tpu.memory_space<vmem>>, vector<1x128xf32>
      %28 = arith.index_cast %arg8 : i32 to index
      %29 = memref.load %arg1[%28] : memref<16xi32, #tpu.memory_space<smem>>
      %cst_19 = arith.constant dense<0xFF800000> : vector<1xf32>
      %30 = vector.multi_reduction <maximumf>, %27, %cst_19 [1] : vector<1x128xf32> to vector<1xf32>
      %31 = vector.shape_cast %30 : vector<1xf32> to vector<1x1xf32>
      %32 = vector.broadcast %31 : vector<1x1xf32> to vector<1x128xf32>
      %33 = arith.subf %27, %32 : vector<1x128xf32>
      %34 = math.exp %33 : vector<1x128xf32>
      %cst_20 = arith.constant dense<0.000000e+00> : vector<1xf32>
      %35 = vector.multi_reduction <add>, %34, %cst_20 [1] : vector<1x128xf32> to vector<1xf32>
      %36 = vector.shape_cast %35 : vector<1xf32> to vector<1x1xf32>
      %37 = math.log %36 : vector<1x1xf32>
      %38 = arith.addf %37, %31 : vector<1x1xf32>
      %39 = vector.broadcast %29 : i32 to vector<1x128xi32>
      %40 = arith.cmpi eq, %19, %39 : vector<1x128xi32>
      %cst_21 = arith.constant 0.000000e+00 : f32
      %41 = vector.broadcast %cst_21 : f32 to vector<1x128xf32>
      %42 = arith.select %40, %27, %41 : vector<1x128xi1>, vector<1x128xf32>
      %cst_22 = arith.constant dense<0.000000e+00> : vector<1xf32>
      %43 = vector.multi_reduction <add>, %42, %cst_22 [1] : vector<1x128xf32> to vector<1xf32>
      %44 = vector.shape_cast %43 : vector<1xf32> to vector<1x1xf32>
      %c-100_i32 = arith.constant -100 : i32
      %45 = arith.cmpi ne, %29, %c-100_i32 : i32
      %46 = arith.subf %38, %44 : vector<1x1xf32>
      %cst_23 = arith.constant 0.000000e+00 : f32
      %47 = vector.broadcast %cst_23 : f32 to vector<1x1xf32>
      %48 = arith.select %45, %46, %47 : vector<1x1xf32>
      %49 = arith.addf %arg9, %48 : vector<1x1xf32>
      %cst_24 = arith.constant 1.000000e+00 : f32
      %cst_25 = arith.constant 0.000000e+00 : f32
      %50 = arith.select %45, %cst_24, %cst_25 : f32
      %51 = vector.broadcast %50 : f32 to vector<1x1xf32>
      %52 = arith.addf %arg10, %51 : vector<1x1xf32>
      scf.yield %49, %52 : vector<1x1xf32>, vector<1x1xf32>
    }
    %c16_i32_13 = arith.constant 16 : i32
    %c0_14 = arith.constant 0 : index
    %c0_15 = arith.constant 0 : index
    %24 = vector.load %arg5[%c0_14, %c0_15] : memref<1x1xf32, #tpu.memory_space<vmem>>, vector<1x1xf32>
    tpu.vector_store %arg5[%c0_14, %c0_15], %23#0 {strides = array<i32>} : memref<1x1xf32, #tpu.memory_space<vmem>>, vector<1x1xf32>,
    %c0_16 = arith.constant 0 : index
    %c0_17 = arith.constant 0 : index
    %25 = vector.load %arg6[%c0_16, %c0_17] : memref<1x1xf32, #tpu.memory_space<vmem>>, vector<1x1xf32>
    tpu.vector_store %arg6[%c0_16, %c0_17], %23#1 {strides = array<i32>} : memref<1x1xf32, #tpu.memory_space<vmem>>, vector<1x1xf32>,
    return
  }
  func.func @transform_0(%arg0: i32) -> i32 {
    %c0_i32 = arith.constant 0 : i32
    %c0_i32_0 = arith.constant 0 : i32
    return %c0_i32 : i32
  }
  func.func @transform_1(%arg0: i32) -> (i32, i32) {
    %c0_i32 = arith.constant 0 : i32
    %c0_i32_0 = arith.constant 0 : i32
    %c0_i32_1 = arith.constant 0 : i32
    return %c0_i32, %c0_i32_0 : i32, i32
  }
  func.func @transform_2(%arg0: i32) -> (i32, i32) {
    %c0_i32 = arith.constant 0 : i32
    %c0_i32_0 = arith.constant 0 : i32
    %c0_i32_1 = arith.constant 0 : i32
    return %c0_i32, %c0_i32_0 : i32, i32
  }
  func.func @transform_3(%arg0: i32) -> (i32, i32) {
    %c0_i32 = arith.constant 0 : i32
    %c0_i32_0 = arith.constant 0 : i32
    %c0_i32_1 = arith.constant 0 : i32
    return %c0_i32, %c0_i32_0 : i32, i32
  }
  func.func @transform_4(%arg0: i32) -> (i32, i32) {
    %c0_i32 = arith.constant 0 : i32
    %c0_i32_0 = arith.constant 0 : i32
    %c0_i32_1 = arith.constant 0 : i32
    return %c0_i32, %c0_i32_0 : i32, i32
  }
  func.func @transform_5(%arg0: i32) -> (i32, i32) {
    %c0_i32 = arith.constant 0 : i32
    %c0_i32_0 = arith.constant 0 : i32
    %c0_i32_1 = arith.constant 0 : i32
    return %c0_i32, %c0_i32_0 : i32, i32
  }
}

module attributes {stable_mosaic.version = 11 : i64} {
  func.func @_dec_layer_kernel(%arg0: i32, %arg1: memref<16x32xf32, #tpu.memory_space<vmem>>, %arg2: memref<16x32xf32, #tpu.memory_space<vmem>>, %arg3: memref<1x32xf32, #tpu.memory_space<vmem>>, %arg4: memref<32x96xf32, #tpu.memory_space<vmem>>, %arg5: memref<32x32xf32, #tpu.memory_space<vmem>>, %arg6: memref<1x32xf32, #tpu.memory_space<vmem>>, %arg7: memref<32x32xf32, #tpu.memory_space<vmem>>, %arg8: memref<32x64xf32, #tpu.memory_space<vmem>>, %arg9: memref<32x32xf32, #tpu.memory_space<vmem>>, %arg10: memref<1x32xf32, #tpu.memory_space<vmem>>, %arg11: memref<32x64xf32, #tpu.memory_space<vmem>>, %arg12: memref<64x32xf32, #tpu.memory_space<vmem>>, %arg13: memref<4x8x8xf32, #tpu.memory_space<vmem>>, %arg14: memref<2x8xf32, #tpu.memory_space<vmem>>, %arg15: memref<16x32xf32, #tpu.memory_space<vmem>>) attributes {dimension_semantics = [#tpu.dimension_semantics<arbitrary>], iteration_bounds = array<i64: 1>, scalar_prefetch = 0 : i64, scratch_operands = 0 : i64, tpu.core_type = #tpu.core_type<tc>, window_params = [{pipeline_mode = #tpu.pipeline_mode<synchronous>, transform_indices = @transform_0, window_bounds = array<i64: 16, 32>}, {pipeline_mode = #tpu.pipeline_mode<synchronous>, transform_indices = @transform_1, window_bounds = array<i64: 16, 32>}, {pipeline_mode = #tpu.pipeline_mode<synchronous>, transform_indices = @transform_2, window_bounds = array<i64: 1, 32>}, {pipeline_mode = #tpu.pipeline_mode<synchronous>, transform_indices = @transform_3, window_bounds = array<i64: 32, 96>}, {pipeline_mode = #tpu.pipeline_mode<synchronous>, transform_indices = @transform_4, window_bounds = array<i64: 32, 32>}, {pipeline_mode = #tpu.pipeline_mode<synchronous>, transform_indices = @transform_5, window_bounds = array<i64: 1, 32>}, {pipeline_mode = #tpu.pipeline_mode<synchronous>, transform_indices = @transform_6, window_bounds = array<i64: 32, 32>}, {pipeline_mode = #tpu.pipeline_mode<synchronous>, transform_indices = @transform_7, window_bounds = array<i64: 32, 64>}, {pipeline_mode = #tpu.pipeline_mode<synchronous>, transform_indices = @transform_8, window_bounds = array<i64: 32, 32>}, {pipeline_mode = #tpu.pipeline_mode<synchronous>, transform_indices = @transform_9, window_bounds = array<i64: 1, 32>}, {pipeline_mode = #tpu.pipeline_mode<synchronous>, transform_indices = @transform_10, window_bounds = array<i64: 32, 64>}, {pipeline_mode = #tpu.pipeline_mode<synchronous>, transform_indices = @transform_11, window_bounds = array<i64: 64, 32>}, {pipeline_mode = #tpu.pipeline_mode<synchronous>, transform_indices = @transform_12, window_bounds = array<i64: 4, 8, 8>}, {pipeline_mode = #tpu.pipeline_mode<synchronous>, transform_indices = @transform_13, window_bounds = array<i64: 2, 8>}, {pipeline_mode = #tpu.pipeline_mode<synchronous>, transform_indices = @transform_14, window_bounds = array<i64: 16, 32>}]} {
    %c0 = arith.constant 0 : index
    %c0_0 = arith.constant 0 : index
    %0 = vector.load %arg1[%c0, %c0_0] : memref<16x32xf32, #tpu.memory_space<vmem>>, vector<16x32xf32>
    %c0_1 = arith.constant 0 : index
    %c0_2 = arith.constant 0 : index
    %1 = vector.load %arg2[%c0_1, %c0_2] : memref<16x32xf32, #tpu.memory_space<vmem>>, vector<16x32xf32>
    %c0_3 = arith.constant 0 : index
    %c0_4 = arith.constant 0 : index
    %c0_5 = arith.constant 0 : index
    %2 = vector.load %arg13[%c0_3, %c0_4, %c0_5] : memref<4x8x8xf32, #tpu.memory_space<vmem>>, vector<4x8x8xf32>
    %c0_6 = arith.constant 0 : index
    %c0_7 = arith.constant 0 : index
    %3 = vector.load %arg14[%c0_6, %c0_7] : memref<2x8xf32, #tpu.memory_space<vmem>>, vector<2x8xf32>
    %c0_8 = arith.constant 0 : index
    %c0_9 = arith.constant 0 : index
    %4 = vector.load %arg3[%c0_8, %c0_9] : memref<1x32xf32, #tpu.memory_space<vmem>>, vector<1x32xf32>
    %5 = arith.mulf %0, %0 : vector<16x32xf32>
    %cst = arith.constant dense<0.000000e+00> : vector<16xf32>
    %6 = vector.multi_reduction <add>, %5, %cst [1] : vector<16x32xf32> to vector<16xf32>
    %7 = vector.shape_cast %6 : vector<16xf32> to vector<16x1xf32>
    %cst_10 = arith.constant 3.200000e+01 : f32
    %8 = vector.broadcast %cst_10 : f32 to vector<16x1xf32>
    %9 = arith.divf %7, %8 : vector<16x1xf32>
    %cst_11 = arith.constant 9.99999997E-7 : f32
    %10 = vector.broadcast %cst_11 : f32 to vector<16x1xf32>
    %11 = arith.addf %9, %10 : vector<16x1xf32>
    %12 = math.rsqrt %11 : vector<16x1xf32>
    %13 = vector.broadcast %12 : vector<16x1xf32> to vector<16x32xf32>
    %14 = arith.mulf %0, %13 : vector<16x32xf32>
    %15 = vector.broadcast %4 : vector<1x32xf32> to vector<16x32xf32>
    %16 = arith.mulf %14, %15 : vector<16x32xf32>
    %c0_12 = arith.constant 0 : index
    %c0_13 = arith.constant 0 : index
    %17 = vector.load %arg4[%c0_12, %c0_13] : memref<32x96xf32, #tpu.memory_space<vmem>>, vector<32x96xf32>
    %cst_14 = arith.constant dense<0.000000e+00> : vector<16x96xf32>
    %18 = tpu.matmul %16, %17, %cst_14 {dimension_numbers = #tpu.dot_dimension_numbers<[1], [0], [0], [1], [0, 0, 1, 1], [], []>} : vector<16x32xf32>, vector<32x96xf32>, vector<16x96xf32> -> vector<16x96xf32>
    %19 = vector.extract_strided_slice %18 {offsets = [0, 0], sizes = [16, 32], strides = [1, 1]} : vector<16x96xf32> to vector<16x32xf32>
    %20 = vector.extract_strided_slice %18 {offsets = [0, 32], sizes = [16, 32], strides = [1, 1]} : vector<16x96xf32> to vector<16x32xf32>
    %21 = vector.extract_strided_slice %18 {offsets = [0, 64], sizes = [16, 32], strides = [1, 1]} : vector<16x96xf32> to vector<16x32xf32>
    %22 = vector.extract_strided_slice %19 {offsets = [0, 0], sizes = [8, 8], strides = [1, 1]} : vector<16x32xf32> to vector<8x8xf32>
    %23 = vector.extract_strided_slice %20 {offsets = [0, 0], sizes = [8, 8], strides = [1, 1]} : vector<16x32xf32> to vector<8x8xf32>
    %24 = vector.extract_strided_slice %21 {offsets = [0, 0], sizes = [8, 8], strides = [1, 1]} : vector<16x32xf32> to vector<8x8xf32>
    %cst_15 = arith.constant dense<0.000000e+00> : vector<8x8xf32>
    %25 = tpu.matmul %22, %23, %cst_15 {dimension_numbers = #tpu.dot_dimension_numbers<[1], [1], [0], [0], [0, 0, 1, 0], [], []>} : vector<8x8xf32>, vector<8x8xf32>, vector<8x8xf32> -> vector<8x8xf32>
    %26 = vector.extract_strided_slice %2 {offsets = [0, 0, 0], sizes = [1, 8, 8], strides = [1, 1, 1]} : vector<4x8x8xf32> to vector<1x8x8xf32>
    %27 = vector.shape_cast %26 : vector<1x8x8xf32> to vector<8x8xf32>
    %28 = arith.addf %25, %27 : vector<8x8xf32>
    %cst_16 = arith.constant dense<0xFF800000> : vector<8xf32>
    %29 = vector.multi_reduction <maximumf>, %28, %cst_16 [1] : vector<8x8xf32> to vector<8xf32>
    %30 = vector.shape_cast %29 : vector<8xf32> to vector<8x1xf32>
    %31 = vector.broadcast %30 : vector<8x1xf32> to vector<8x8xf32>
    %32 = arith.subf %28, %31 : vector<8x8xf32>
    %33 = math.exp %32 : vector<8x8xf32>
    %cst_17 = arith.constant dense<0.000000e+00> : vector<8xf32>
    %34 = vector.multi_reduction <add>, %33, %cst_17 [1] : vector<8x8xf32> to vector<8xf32>
    %35 = vector.shape_cast %34 : vector<8xf32> to vector<8x1xf32>
    %36 = tpu.reciprocal %35 {approx = true} : vector<8x1xf32> -> vector<8x1xf32>
    %37 = vector.broadcast %36 : vector<8x1xf32> to vector<8x8xf32>
    %38 = arith.mulf %33, %37 : vector<8x8xf32>
    %cst_18 = arith.constant dense<0.000000e+00> : vector<8x8xf32>
    %39 = tpu.matmul %38, %24, %cst_18 {dimension_numbers = #tpu.dot_dimension_numbers<[1], [0], [0], [1], [0, 0, 1, 1], [], []>} : vector<8x8xf32>, vector<8x8xf32>, vector<8x8xf32> -> vector<8x8xf32>
    %40 = vector.extract_strided_slice %19 {offsets = [0, 8], sizes = [8, 8], strides = [1, 1]} : vector<16x32xf32> to vector<8x8xf32>
    %41 = vector.extract_strided_slice %20 {offsets = [0, 8], sizes = [8, 8], strides = [1, 1]} : vector<16x32xf32> to vector<8x8xf32>
    %42 = vector.extract_strided_slice %21 {offsets = [0, 8], sizes = [8, 8], strides = [1, 1]} : vector<16x32xf32> to vector<8x8xf32>
    %cst_19 = arith.constant dense<0.000000e+00> : vector<8x8xf32>
    %43 = tpu.matmul %40, %41, %cst_19 {dimension_numbers = #tpu.dot_dimension_numbers<[1], [1], [0], [0], [0, 0, 1, 0], [], []>} : vector<8x8xf32>, vector<8x8xf32>, vector<8x8xf32> -> vector<8x8xf32>
    %44 = vector.extract_strided_slice %2 {offsets = [1, 0, 0], sizes = [1, 8, 8], strides = [1, 1, 1]} : vector<4x8x8xf32> to vector<1x8x8xf32>
    %45 = vector.shape_cast %44 : vector<1x8x8xf32> to vector<8x8xf32>
    %46 = arith.addf %43, %45 : vector<8x8xf32>
    %cst_20 = arith.constant dense<0xFF800000> : vector<8xf32>
    %47 = vector.multi_reduction <maximumf>, %46, %cst_20 [1] : vector<8x8xf32> to vector<8xf32>
    %48 = vector.shape_cast %47 : vector<8xf32> to vector<8x1xf32>
    %49 = vector.broadcast %48 : vector<8x1xf32> to vector<8x8xf32>
    %50 = arith.subf %46, %49 : vector<8x8xf32>
    %51 = math.exp %50 : vector<8x8xf32>
    %cst_21 = arith.constant dense<0.000000e+00> : vector<8xf32>
    %52 = vector.multi_reduction <add>, %51, %cst_21 [1] : vector<8x8xf32> to vector<8xf32>
    %53 = vector.shape_cast %52 : vector<8xf32> to vector<8x1xf32>
    %54 = tpu.reciprocal %53 {approx = true} : vector<8x1xf32> -> vector<8x1xf32>
    %55 = vector.broadcast %54 : vector<8x1xf32> to vector<8x8xf32>
    %56 = arith.mulf %51, %55 : vector<8x8xf32>
    %cst_22 = arith.constant dense<0.000000e+00> : vector<8x8xf32>
    %57 = tpu.matmul %56, %42, %cst_22 {dimension_numbers = #tpu.dot_dimension_numbers<[1], [0], [0], [1], [0, 0, 1, 1], [], []>} : vector<8x8xf32>, vector<8x8xf32>, vector<8x8xf32> -> vector<8x8xf32>
    %58 = vector.extract_strided_slice %19 {offsets = [0, 16], sizes = [8, 8], strides = [1, 1]} : vector<16x32xf32> to vector<8x8xf32>
    %59 = vector.extract_strided_slice %20 {offsets = [0, 16], sizes = [8, 8], strides = [1, 1]} : vector<16x32xf32> to vector<8x8xf32>
    %60 = vector.extract_strided_slice %21 {offsets = [0, 16], sizes = [8, 8], strides = [1, 1]} : vector<16x32xf32> to vector<8x8xf32>
    %cst_23 = arith.constant dense<0.000000e+00> : vector<8x8xf32>
    %61 = tpu.matmul %58, %59, %cst_23 {dimension_numbers = #tpu.dot_dimension_numbers<[1], [1], [0], [0], [0, 0, 1, 0], [], []>} : vector<8x8xf32>, vector<8x8xf32>, vector<8x8xf32> -> vector<8x8xf32>
    %62 = vector.extract_strided_slice %2 {offsets = [2, 0, 0], sizes = [1, 8, 8], strides = [1, 1, 1]} : vector<4x8x8xf32> to vector<1x8x8xf32>
    %63 = vector.shape_cast %62 : vector<1x8x8xf32> to vector<8x8xf32>
    %64 = arith.addf %61, %63 : vector<8x8xf32>
    %cst_24 = arith.constant dense<0xFF800000> : vector<8xf32>
    %65 = vector.multi_reduction <maximumf>, %64, %cst_24 [1] : vector<8x8xf32> to vector<8xf32>
    %66 = vector.shape_cast %65 : vector<8xf32> to vector<8x1xf32>
    %67 = vector.broadcast %66 : vector<8x1xf32> to vector<8x8xf32>
    %68 = arith.subf %64, %67 : vector<8x8xf32>
    %69 = math.exp %68 : vector<8x8xf32>
    %cst_25 = arith.constant dense<0.000000e+00> : vector<8xf32>
    %70 = vector.multi_reduction <add>, %69, %cst_25 [1] : vector<8x8xf32> to vector<8xf32>
    %71 = vector.shape_cast %70 : vector<8xf32> to vector<8x1xf32>
    %72 = tpu.reciprocal %71 {approx = true} : vector<8x1xf32> -> vector<8x1xf32>
    %73 = vector.broadcast %72 : vector<8x1xf32> to vector<8x8xf32>
    %74 = arith.mulf %69, %73 : vector<8x8xf32>
    %cst_26 = arith.constant dense<0.000000e+00> : vector<8x8xf32>
    %75 = tpu.matmul %74, %60, %cst_26 {dimension_numbers = #tpu.dot_dimension_numbers<[1], [0], [0], [1], [0, 0, 1, 1], [], []>} : vector<8x8xf32>, vector<8x8xf32>, vector<8x8xf32> -> vector<8x8xf32>
    %76 = vector.extract_strided_slice %19 {offsets = [0, 24], sizes = [8, 8], strides = [1, 1]} : vector<16x32xf32> to vector<8x8xf32>
    %77 = vector.extract_strided_slice %20 {offsets = [0, 24], sizes = [8, 8], strides = [1, 1]} : vector<16x32xf32> to vector<8x8xf32>
    %78 = vector.extract_strided_slice %21 {offsets = [0, 24], sizes = [8, 8], strides = [1, 1]} : vector<16x32xf32> to vector<8x8xf32>
    %cst_27 = arith.constant dense<0.000000e+00> : vector<8x8xf32>
    %79 = tpu.matmul %76, %77, %cst_27 {dimension_numbers = #tpu.dot_dimension_numbers<[1], [1], [0], [0], [0, 0, 1, 0], [], []>} : vector<8x8xf32>, vector<8x8xf32>, vector<8x8xf32> -> vector<8x8xf32>
    %80 = vector.extract_strided_slice %2 {offsets = [3, 0, 0], sizes = [1, 8, 8], strides = [1, 1, 1]} : vector<4x8x8xf32> to vector<1x8x8xf32>
    %81 = vector.shape_cast %80 : vector<1x8x8xf32> to vector<8x8xf32>
    %82 = arith.addf %79, %81 : vector<8x8xf32>
    %cst_28 = arith.constant dense<0xFF800000> : vector<8xf32>
    %83 = vector.multi_reduction <maximumf>, %82, %cst_28 [1] : vector<8x8xf32> to vector<8xf32>
    %84 = vector.shape_cast %83 : vector<8xf32> to vector<8x1xf32>
    %85 = vector.broadcast %84 : vector<8x1xf32> to vector<8x8xf32>
    %86 = arith.subf %82, %85 : vector<8x8xf32>
    %87 = math.exp %86 : vector<8x8xf32>
    %cst_29 = arith.constant dense<0.000000e+00> : vector<8xf32>
    %88 = vector.multi_reduction <add>, %87, %cst_29 [1] : vector<8x8xf32> to vector<8xf32>
    %89 = vector.shape_cast %88 : vector<8xf32> to vector<8x1xf32>
    %90 = tpu.reciprocal %89 {approx = true} : vector<8x1xf32> -> vector<8x1xf32>
    %91 = vector.broadcast %90 : vector<8x1xf32> to vector<8x8xf32>
    %92 = arith.mulf %87, %91 : vector<8x8xf32>
    %cst_30 = arith.constant dense<0.000000e+00> : vector<8x8xf32>
    %93 = tpu.matmul %92, %78, %cst_30 {dimension_numbers = #tpu.dot_dimension_numbers<[1], [0], [0], [1], [0, 0, 1, 1], [], []>} : vector<8x8xf32>, vector<8x8xf32>, vector<8x8xf32> -> vector<8x8xf32>
    %94 = tpu.concatenate %39, %57, %75, %93 in 1 : vector<8x8xf32>, vector<8x8xf32>, vector<8x8xf32>, vector<8x8xf32> -> vector<8x32xf32>
    %95 = vector.extract_strided_slice %19 {offsets = [8, 0], sizes = [8, 8], strides = [1, 1]} : vector<16x32xf32> to vector<8x8xf32>
    %96 = vector.extract_strided_slice %20 {offsets = [8, 0], sizes = [8, 8], strides = [1, 1]} : vector<16x32xf32> to vector<8x8xf32>
    %97 = vector.extract_strided_slice %21 {offsets = [8, 0], sizes = [8, 8], strides = [1, 1]} : vector<16x32xf32> to vector<8x8xf32>
    %cst_31 = arith.constant dense<0.000000e+00> : vector<8x8xf32>
    %98 = tpu.matmul %95, %96, %cst_31 {dimension_numbers = #tpu.dot_dimension_numbers<[1], [1], [0], [0], [0, 0, 1, 0], [], []>} : vector<8x8xf32>, vector<8x8xf32>, vector<8x8xf32> -> vector<8x8xf32>
    %99 = vector.extract_strided_slice %2 {offsets = [0, 0, 0], sizes = [1, 8, 8], strides = [1, 1, 1]} : vector<4x8x8xf32> to vector<1x8x8xf32>
    %100 = vector.shape_cast %99 : vector<1x8x8xf32> to vector<8x8xf32>
    %101 = arith.addf %98, %100 : vector<8x8xf32>
    %cst_32 = arith.constant dense<0xFF800000> : vector<8xf32>
    %102 = vector.multi_reduction <maximumf>, %101, %cst_32 [1] : vector<8x8xf32> to vector<8xf32>
    %103 = vector.shape_cast %102 : vector<8xf32> to vector<8x1xf32>
    %104 = vector.broadcast %103 : vector<8x1xf32> to vector<8x8xf32>
    %105 = arith.subf %101, %104 : vector<8x8xf32>
    %106 = math.exp %105 : vector<8x8xf32>
    %cst_33 = arith.constant dense<0.000000e+00> : vector<8xf32>
    %107 = vector.multi_reduction <add>, %106, %cst_33 [1] : vector<8x8xf32> to vector<8xf32>
    %108 = vector.shape_cast %107 : vector<8xf32> to vector<8x1xf32>
    %109 = tpu.reciprocal %108 {approx = true} : vector<8x1xf32> -> vector<8x1xf32>
    %110 = vector.broadcast %109 : vector<8x1xf32> to vector<8x8xf32>
    %111 = arith.mulf %106, %110 : vector<8x8xf32>
    %cst_34 = arith.constant dense<0.000000e+00> : vector<8x8xf32>
    %112 = tpu.matmul %111, %97, %cst_34 {dimension_numbers = #tpu.dot_dimension_numbers<[1], [0], [0], [1], [0, 0, 1, 1], [], []>} : vector<8x8xf32>, vector<8x8xf32>, vector<8x8xf32> -> vector<8x8xf32>
    %113 = vector.extract_strided_slice %19 {offsets = [8, 8], sizes = [8, 8], strides = [1, 1]} : vector<16x32xf32> to vector<8x8xf32>
    %114 = vector.extract_strided_slice %20 {offsets = [8, 8], sizes = [8, 8], strides = [1, 1]} : vector<16x32xf32> to vector<8x8xf32>
    %115 = vector.extract_strided_slice %21 {offsets = [8, 8], sizes = [8, 8], strides = [1, 1]} : vector<16x32xf32> to vector<8x8xf32>
    %cst_35 = arith.constant dense<0.000000e+00> : vector<8x8xf32>
    %116 = tpu.matmul %113, %114, %cst_35 {dimension_numbers = #tpu.dot_dimension_numbers<[1], [1], [0], [0], [0, 0, 1, 0], [], []>} : vector<8x8xf32>, vector<8x8xf32>, vector<8x8xf32> -> vector<8x8xf32>
    %117 = vector.extract_strided_slice %2 {offsets = [1, 0, 0], sizes = [1, 8, 8], strides = [1, 1, 1]} : vector<4x8x8xf32> to vector<1x8x8xf32>
    %118 = vector.shape_cast %117 : vector<1x8x8xf32> to vector<8x8xf32>
    %119 = arith.addf %116, %118 : vector<8x8xf32>
    %cst_36 = arith.constant dense<0xFF800000> : vector<8xf32>
    %120 = vector.multi_reduction <maximumf>, %119, %cst_36 [1] : vector<8x8xf32> to vector<8xf32>
    %121 = vector.shape_cast %120 : vector<8xf32> to vector<8x1xf32>
    %122 = vector.broadcast %121 : vector<8x1xf32> to vector<8x8xf32>
    %123 = arith.subf %119, %122 : vector<8x8xf32>
    %124 = math.exp %123 : vector<8x8xf32>
    %cst_37 = arith.constant dense<0.000000e+00> : vector<8xf32>
    %125 = vector.multi_reduction <add>, %124, %cst_37 [1] : vector<8x8xf32> to vector<8xf32>
    %126 = vector.shape_cast %125 : vector<8xf32> to vector<8x1xf32>
    %127 = tpu.reciprocal %126 {approx = true} : vector<8x1xf32> -> vector<8x1xf32>
    %128 = vector.broadcast %127 : vector<8x1xf32> to vector<8x8xf32>
    %129 = arith.mulf %124, %128 : vector<8x8xf32>
    %cst_38 = arith.constant dense<0.000000e+00> : vector<8x8xf32>
    %130 = tpu.matmul %129, %115, %cst_38 {dimension_numbers = #tpu.dot_dimension_numbers<[1], [0], [0], [1], [0, 0, 1, 1], [], []>} : vector<8x8xf32>, vector<8x8xf32>, vector<8x8xf32> -> vector<8x8xf32>
    %131 = vector.extract_strided_slice %19 {offsets = [8, 16], sizes = [8, 8], strides = [1, 1]} : vector<16x32xf32> to vector<8x8xf32>
    %132 = vector.extract_strided_slice %20 {offsets = [8, 16], sizes = [8, 8], strides = [1, 1]} : vector<16x32xf32> to vector<8x8xf32>
    %133 = vector.extract_strided_slice %21 {offsets = [8, 16], sizes = [8, 8], strides = [1, 1]} : vector<16x32xf32> to vector<8x8xf32>
    %cst_39 = arith.constant dense<0.000000e+00> : vector<8x8xf32>
    %134 = tpu.matmul %131, %132, %cst_39 {dimension_numbers = #tpu.dot_dimension_numbers<[1], [1], [0], [0], [0, 0, 1, 0], [], []>} : vector<8x8xf32>, vector<8x8xf32>, vector<8x8xf32> -> vector<8x8xf32>
    %135 = vector.extract_strided_slice %2 {offsets = [2, 0, 0], sizes = [1, 8, 8], strides = [1, 1, 1]} : vector<4x8x8xf32> to vector<1x8x8xf32>
    %136 = vector.shape_cast %135 : vector<1x8x8xf32> to vector<8x8xf32>
    %137 = arith.addf %134, %136 : vector<8x8xf32>
    %cst_40 = arith.constant dense<0xFF800000> : vector<8xf32>
    %138 = vector.multi_reduction <maximumf>, %137, %cst_40 [1] : vector<8x8xf32> to vector<8xf32>
    %139 = vector.shape_cast %138 : vector<8xf32> to vector<8x1xf32>
    %140 = vector.broadcast %139 : vector<8x1xf32> to vector<8x8xf32>
    %141 = arith.subf %137, %140 : vector<8x8xf32>
    %142 = math.exp %141 : vector<8x8xf32>
    %cst_41 = arith.constant dense<0.000000e+00> : vector<8xf32>
    %143 = vector.multi_reduction <add>, %142, %cst_41 [1] : vector<8x8xf32> to vector<8xf32>
    %144 = vector.shape_cast %143 : vector<8xf32> to vector<8x1xf32>
    %145 = tpu.reciprocal %144 {approx = true} : vector<8x1xf32> -> vector<8x1xf32>
    %146 = vector.broadcast %145 : vector<8x1xf32> to vector<8x8xf32>
    %147 = arith.mulf %142, %146 : vector<8x8xf32>
    %cst_42 = arith.constant dense<0.000000e+00> : vector<8x8xf32>
    %148 = tpu.matmul %147, %133, %cst_42 {dimension_numbers = #tpu.dot_dimension_numbers<[1], [0], [0], [1], [0, 0, 1, 1], [], []>} : vector<8x8xf32>, vector<8x8xf32>, vector<8x8xf32> -> vector<8x8xf32>
    %149 = vector.extract_strided_slice %19 {offsets = [8, 24], sizes = [8, 8], strides = [1, 1]} : vector<16x32xf32> to vector<8x8xf32>
    %150 = vector.extract_strided_slice %20 {offsets = [8, 24], sizes = [8, 8], strides = [1, 1]} : vector<16x32xf32> to vector<8x8xf32>
    %151 = vector.extract_strided_slice %21 {offsets = [8, 24], sizes = [8, 8], strides = [1, 1]} : vector<16x32xf32> to vector<8x8xf32>
    %cst_43 = arith.constant dense<0.000000e+00> : vector<8x8xf32>
    %152 = tpu.matmul %149, %150, %cst_43 {dimension_numbers = #tpu.dot_dimension_numbers<[1], [1], [0], [0], [0, 0, 1, 0], [], []>} : vector<8x8xf32>, vector<8x8xf32>, vector<8x8xf32> -> vector<8x8xf32>
    %153 = vector.extract_strided_slice %2 {offsets = [3, 0, 0], sizes = [1, 8, 8], strides = [1, 1, 1]} : vector<4x8x8xf32> to vector<1x8x8xf32>
    %154 = vector.shape_cast %153 : vector<1x8x8xf32> to vector<8x8xf32>
    %155 = arith.addf %152, %154 : vector<8x8xf32>
    %cst_44 = arith.constant dense<0xFF800000> : vector<8xf32>
    %156 = vector.multi_reduction <maximumf>, %155, %cst_44 [1] : vector<8x8xf32> to vector<8xf32>
    %157 = vector.shape_cast %156 : vector<8xf32> to vector<8x1xf32>
    %158 = vector.broadcast %157 : vector<8x1xf32> to vector<8x8xf32>
    %159 = arith.subf %155, %158 : vector<8x8xf32>
    %160 = math.exp %159 : vector<8x8xf32>
    %cst_45 = arith.constant dense<0.000000e+00> : vector<8xf32>
    %161 = vector.multi_reduction <add>, %160, %cst_45 [1] : vector<8x8xf32> to vector<8xf32>
    %162 = vector.shape_cast %161 : vector<8xf32> to vector<8x1xf32>
    %163 = tpu.reciprocal %162 {approx = true} : vector<8x1xf32> -> vector<8x1xf32>
    %164 = vector.broadcast %163 : vector<8x1xf32> to vector<8x8xf32>
    %165 = arith.mulf %160, %164 : vector<8x8xf32>
    %cst_46 = arith.constant dense<0.000000e+00> : vector<8x8xf32>
    %166 = tpu.matmul %165, %151, %cst_46 {dimension_numbers = #tpu.dot_dimension_numbers<[1], [0], [0], [1], [0, 0, 1, 1], [], []>} : vector<8x8xf32>, vector<8x8xf32>, vector<8x8xf32> -> vector<8x8xf32>
    %167 = tpu.concatenate %112, %130, %148, %166 in 1 : vector<8x8xf32>, vector<8x8xf32>, vector<8x8xf32>, vector<8x8xf32> -> vector<8x32xf32>
    %168 = tpu.concatenate %94, %167 in 0 : vector<8x32xf32>, vector<8x32xf32> -> vector<16x32xf32>
    %c0_47 = arith.constant 0 : index
    %c0_48 = arith.constant 0 : index
    %169 = vector.load %arg5[%c0_47, %c0_48] : memref<32x32xf32, #tpu.memory_space<vmem>>, vector<32x32xf32>
    %cst_49 = arith.constant dense<0.000000e+00> : vector<16x32xf32>
    %170 = tpu.matmul %168, %169, %cst_49 {dimension_numbers = #tpu.dot_dimension_numbers<[1], [0], [0], [1], [0, 0, 1, 1], [], []>} : vector<16x32xf32>, vector<32x32xf32>, vector<16x32xf32> -> vector<16x32xf32>
    %171 = arith.addf %0, %170 : vector<16x32xf32>
    %c0_50 = arith.constant 0 : index
    %c0_51 = arith.constant 0 : index
    %172 = vector.load %arg6[%c0_50, %c0_51] : memref<1x32xf32, #tpu.memory_space<vmem>>, vector<1x32xf32>
    %173 = arith.mulf %171, %171 : vector<16x32xf32>
    %cst_52 = arith.constant dense<0.000000e+00> : vector<16xf32>
    %174 = vector.multi_reduction <add>, %173, %cst_52 [1] : vector<16x32xf32> to vector<16xf32>
    %175 = vector.shape_cast %174 : vector<16xf32> to vector<16x1xf32>
    %cst_53 = arith.constant 3.200000e+01 : f32
    %176 = vector.broadcast %cst_53 : f32 to vector<16x1xf32>
    %177 = arith.divf %175, %176 : vector<16x1xf32>
    %cst_54 = arith.constant 9.99999997E-7 : f32
    %178 = vector.broadcast %cst_54 : f32 to vector<16x1xf32>
    %179 = arith.addf %177, %178 : vector<16x1xf32>
    %180 = math.rsqrt %179 : vector<16x1xf32>
    %181 = vector.broadcast %180 : vector<16x1xf32> to vector<16x32xf32>
    %182 = arith.mulf %171, %181 : vector<16x32xf32>
    %183 = vector.broadcast %172 : vector<1x32xf32> to vector<16x32xf32>
    %184 = arith.mulf %182, %183 : vector<16x32xf32>
    %c0_55 = arith.constant 0 : index
    %c0_56 = arith.constant 0 : index
    %185 = vector.load %arg7[%c0_55, %c0_56] : memref<32x32xf32, #tpu.memory_space<vmem>>, vector<32x32xf32>
    %cst_57 = arith.constant dense<0.000000e+00> : vector<16x32xf32>
    %186 = tpu.matmul %184, %185, %cst_57 {dimension_numbers = #tpu.dot_dimension_numbers<[1], [0], [0], [1], [0, 0, 1, 1], [], []>} : vector<16x32xf32>, vector<32x32xf32>, vector<16x32xf32> -> vector<16x32xf32>
    %c0_58 = arith.constant 0 : index
    %c0_59 = arith.constant 0 : index
    %187 = vector.load %arg8[%c0_58, %c0_59] : memref<32x64xf32, #tpu.memory_space<vmem>>, vector<32x64xf32>
    %cst_60 = arith.constant dense<0.000000e+00> : vector<16x64xf32>
    %188 = tpu.matmul %1, %187, %cst_60 {dimension_numbers = #tpu.dot_dimension_numbers<[1], [0], [0], [1], [0, 0, 1, 1], [], []>} : vector<16x32xf32>, vector<32x64xf32>, vector<16x64xf32> -> vector<16x64xf32>
    %189 = vector.extract_strided_slice %188 {offsets = [0, 0], sizes = [16, 32], strides = [1, 1]} : vector<16x64xf32> to vector<16x32xf32>
    %190 = vector.extract_strided_slice %188 {offsets = [0, 32], sizes = [16, 32], strides = [1, 1]} : vector<16x64xf32> to vector<16x32xf32>
    %191 = vector.extract_strided_slice %186 {offsets = [0, 0], sizes = [8, 8], strides = [1, 1]} : vector<16x32xf32> to vector<8x8xf32>
    %192 = vector.extract_strided_slice %189 {offsets = [0, 0], sizes = [8, 8], strides = [1, 1]} : vector<16x32xf32> to vector<8x8xf32>
    %193 = vector.extract_strided_slice %190 {offsets = [0, 0], sizes = [8, 8], strides = [1, 1]} : vector<16x32xf32> to vector<8x8xf32>
    %cst_61 = arith.constant dense<0.000000e+00> : vector<8x8xf32>
    %194 = tpu.matmul %191, %192, %cst_61 {dimension_numbers = #tpu.dot_dimension_numbers<[1], [1], [0], [0], [0, 0, 1, 0], [], []>} : vector<8x8xf32>, vector<8x8xf32>, vector<8x8xf32> -> vector<8x8xf32>
    %195 = vector.extract_strided_slice %3 {offsets = [0, 0], sizes = [1, 8], strides = [1, 1]} : vector<2x8xf32> to vector<1x8xf32>
    %196 = vector.broadcast %195 : vector<1x8xf32> to vector<8x8xf32>
    %197 = arith.addf %194, %196 : vector<8x8xf32>
    %cst_62 = arith.constant dense<0xFF800000> : vector<8xf32>
    %198 = vector.multi_reduction <maximumf>, %197, %cst_62 [1] : vector<8x8xf32> to vector<8xf32>
    %199 = vector.shape_cast %198 : vector<8xf32> to vector<8x1xf32>
    %200 = vector.broadcast %199 : vector<8x1xf32> to vector<8x8xf32>
    %201 = arith.subf %197, %200 : vector<8x8xf32>
    %202 = math.exp %201 : vector<8x8xf32>
    %cst_63 = arith.constant dense<0.000000e+00> : vector<8xf32>
    %203 = vector.multi_reduction <add>, %202, %cst_63 [1] : vector<8x8xf32> to vector<8xf32>
    %204 = vector.shape_cast %203 : vector<8xf32> to vector<8x1xf32>
    %205 = tpu.reciprocal %204 {approx = true} : vector<8x1xf32> -> vector<8x1xf32>
    %206 = vector.broadcast %205 : vector<8x1xf32> to vector<8x8xf32>
    %207 = arith.mulf %202, %206 : vector<8x8xf32>
    %cst_64 = arith.constant dense<0.000000e+00> : vector<8x8xf32>
    %208 = tpu.matmul %207, %193, %cst_64 {dimension_numbers = #tpu.dot_dimension_numbers<[1], [0], [0], [1], [0, 0, 1, 1], [], []>} : vector<8x8xf32>, vector<8x8xf32>, vector<8x8xf32> -> vector<8x8xf32>
    %209 = vector.extract_strided_slice %186 {offsets = [0, 8], sizes = [8, 8], strides = [1, 1]} : vector<16x32xf32> to vector<8x8xf32>
    %210 = vector.extract_strided_slice %189 {offsets = [0, 8], sizes = [8, 8], strides = [1, 1]} : vector<16x32xf32> to vector<8x8xf32>
    %211 = vector.extract_strided_slice %190 {offsets = [0, 8], sizes = [8, 8], strides = [1, 1]} : vector<16x32xf32> to vector<8x8xf32>
    %cst_65 = arith.constant dense<0.000000e+00> : vector<8x8xf32>
    %212 = tpu.matmul %209, %210, %cst_65 {dimension_numbers = #tpu.dot_dimension_numbers<[1], [1], [0], [0], [0, 0, 1, 0], [], []>} : vector<8x8xf32>, vector<8x8xf32>, vector<8x8xf32> -> vector<8x8xf32>
    %213 = vector.extract_strided_slice %3 {offsets = [0, 0], sizes = [1, 8], strides = [1, 1]} : vector<2x8xf32> to vector<1x8xf32>
    %214 = vector.broadcast %213 : vector<1x8xf32> to vector<8x8xf32>
    %215 = arith.addf %212, %214 : vector<8x8xf32>
    %cst_66 = arith.constant dense<0xFF800000> : vector<8xf32>
    %216 = vector.multi_reduction <maximumf>, %215, %cst_66 [1] : vector<8x8xf32> to vector<8xf32>
    %217 = vector.shape_cast %216 : vector<8xf32> to vector<8x1xf32>
    %218 = vector.broadcast %217 : vector<8x1xf32> to vector<8x8xf32>
    %219 = arith.subf %215, %218 : vector<8x8xf32>
    %220 = math.exp %219 : vector<8x8xf32>
    %cst_67 = arith.constant dense<0.000000e+00> : vector<8xf32>
    %221 = vector.multi_reduction <add>, %220, %cst_67 [1] : vector<8x8xf32> to vector<8xf32>
    %222 = vector.shape_cast %221 : vector<8xf32> to vector<8x1xf32>
    %223 = tpu.reciprocal %222 {approx = true} : vector<8x1xf32> -> vector<8x1xf32>
    %224 = vector.broadcast %223 : vector<8x1xf32> to vector<8x8xf32>
    %225 = arith.mulf %220, %224 : vector<8x8xf32>
    %cst_68 = arith.constant dense<0.000000e+00> : vector<8x8xf32>
    %226 = tpu.matmul %225, %211, %cst_68 {dimension_numbers = #tpu.dot_dimension_numbers<[1], [0], [0], [1], [0, 0, 1, 1], [], []>} : vector<8x8xf32>, vector<8x8xf32>, vector<8x8xf32> -> vector<8x8xf32>
    %227 = vector.extract_strided_slice %186 {offsets = [0, 16], sizes = [8, 8], strides = [1, 1]} : vector<16x32xf32> to vector<8x8xf32>
    %228 = vector.extract_strided_slice %189 {offsets = [0, 16], sizes = [8, 8], strides = [1, 1]} : vector<16x32xf32> to vector<8x8xf32>
    %229 = vector.extract_strided_slice %190 {offsets = [0, 16], sizes = [8, 8], strides = [1, 1]} : vector<16x32xf32> to vector<8x8xf32>
    %cst_69 = arith.constant dense<0.000000e+00> : vector<8x8xf32>
    %230 = tpu.matmul %227, %228, %cst_69 {dimension_numbers = #tpu.dot_dimension_numbers<[1], [1], [0], [0], [0, 0, 1, 0], [], []>} : vector<8x8xf32>, vector<8x8xf32>, vector<8x8xf32> -> vector<8x8xf32>
    %231 = vector.extract_strided_slice %3 {offsets = [0, 0], sizes = [1, 8], strides = [1, 1]} : vector<2x8xf32> to vector<1x8xf32>
    %232 = vector.broadcast %231 : vector<1x8xf32> to vector<8x8xf32>
    %233 = arith.addf %230, %232 : vector<8x8xf32>
    %cst_70 = arith.constant dense<0xFF800000> : vector<8xf32>
    %234 = vector.multi_reduction <maximumf>, %233, %cst_70 [1] : vector<8x8xf32> to vector<8xf32>
    %235 = vector.shape_cast %234 : vector<8xf32> to vector<8x1xf32>
    %236 = vector.broadcast %235 : vector<8x1xf32> to vector<8x8xf32>
    %237 = arith.subf %233, %236 : vector<8x8xf32>
    %238 = math.exp %237 : vector<8x8xf32>
    %cst_71 = arith.constant dense<0.000000e+00> : vector<8xf32>
    %239 = vector.multi_reduction <add>, %238, %cst_71 [1] : vector<8x8xf32> to vector<8xf32>
    %240 = vector.shape_cast %239 : vector<8xf32> to vector<8x1xf32>
    %241 = tpu.reciprocal %240 {approx = true} : vector<8x1xf32> -> vector<8x1xf32>
    %242 = vector.broadcast %241 : vector<8x1xf32> to vector<8x8xf32>
    %243 = arith.mulf %238, %242 : vector<8x8xf32>
    %cst_72 = arith.constant dense<0.000000e+00> : vector<8x8xf32>
    %244 = tpu.matmul %243, %229, %cst_72 {dimension_numbers = #tpu.dot_dimension_numbers<[1], [0], [0], [1], [0, 0, 1, 1], [], []>} : vector<8x8xf32>, vector<8x8xf32>, vector<8x8xf32> -> vector<8x8xf32>
    %245 = vector.extract_strided_slice %186 {offsets = [0, 24], sizes = [8, 8], strides = [1, 1]} : vector<16x32xf32> to vector<8x8xf32>
    %246 = vector.extract_strided_slice %189 {offsets = [0, 24], sizes = [8, 8], strides = [1, 1]} : vector<16x32xf32> to vector<8x8xf32>
    %247 = vector.extract_strided_slice %190 {offsets = [0, 24], sizes = [8, 8], strides = [1, 1]} : vector<16x32xf32> to vector<8x8xf32>
    %cst_73 = arith.constant dense<0.000000e+00> : vector<8x8xf32>
    %248 = tpu.matmul %245, %246, %cst_73 {dimension_numbers = #tpu.dot_dimension_numbers<[1], [1], [0], [0], [0, 0, 1, 0], [], []>} : vector<8x8xf32>, vector<8x8xf32>, vector<8x8xf32> -> vector<8x8xf32>
    %249 = vector.extract_strided_slice %3 {offsets = [0, 0], sizes = [1, 8], strides = [1, 1]} : vector<2x8xf32> to vector<1x8xf32>
    %250 = vector.broadcast %249 : vector<1x8xf32> to vector<8x8xf32>
    %251 = arith.addf %248, %250 : vector<8x8xf32>
    %cst_74 = arith.constant dense<0xFF800000> : vector<8xf32>
    %252 = vector.multi_reduction <maximumf>, %251, %cst_74 [1] : vector<8x8xf32> to vector<8xf32>
    %253 = vector.shape_cast %252 : vector<8xf32> to vector<8x1xf32>
    %254 = vector.broadcast %253 : vector<8x1xf32> to vector<8x8xf32>
    %255 = arith.subf %251, %254 : vector<8x8xf32>
    %256 = math.exp %255 : vector<8x8xf32>
    %cst_75 = arith.constant dense<0.000000e+00> : vector<8xf32>
    %257 = vector.multi_reduction <add>, %256, %cst_75 [1] : vector<8x8xf32> to vector<8xf32>
    %258 = vector.shape_cast %257 : vector<8xf32> to vector<8x1xf32>
    %259 = tpu.reciprocal %258 {approx = true} : vector<8x1xf32> -> vector<8x1xf32>
    %260 = vector.broadcast %259 : vector<8x1xf32> to vector<8x8xf32>
    %261 = arith.mulf %256, %260 : vector<8x8xf32>
    %cst_76 = arith.constant dense<0.000000e+00> : vector<8x8xf32>
    %262 = tpu.matmul %261, %247, %cst_76 {dimension_numbers = #tpu.dot_dimension_numbers<[1], [0], [0], [1], [0, 0, 1, 1], [], []>} : vector<8x8xf32>, vector<8x8xf32>, vector<8x8xf32> -> vector<8x8xf32>
    %263 = tpu.concatenate %208, %226, %244, %262 in 1 : vector<8x8xf32>, vector<8x8xf32>, vector<8x8xf32>, vector<8x8xf32> -> vector<8x32xf32>
    %264 = vector.extract_strided_slice %186 {offsets = [8, 0], sizes = [8, 8], strides = [1, 1]} : vector<16x32xf32> to vector<8x8xf32>
    %265 = vector.extract_strided_slice %189 {offsets = [8, 0], sizes = [8, 8], strides = [1, 1]} : vector<16x32xf32> to vector<8x8xf32>
    %266 = vector.extract_strided_slice %190 {offsets = [8, 0], sizes = [8, 8], strides = [1, 1]} : vector<16x32xf32> to vector<8x8xf32>
    %cst_77 = arith.constant dense<0.000000e+00> : vector<8x8xf32>
    %267 = tpu.matmul %264, %265, %cst_77 {dimension_numbers = #tpu.dot_dimension_numbers<[1], [1], [0], [0], [0, 0, 1, 0], [], []>} : vector<8x8xf32>, vector<8x8xf32>, vector<8x8xf32> -> vector<8x8xf32>
    %268 = vector.extract_strided_slice %3 {offsets = [1, 0], sizes = [1, 8], strides = [1, 1]} : vector<2x8xf32> to vector<1x8xf32>
    %269 = vector.broadcast %268 : vector<1x8xf32> to vector<8x8xf32>
    %270 = arith.addf %267, %269 : vector<8x8xf32>
    %cst_78 = arith.constant dense<0xFF800000> : vector<8xf32>
    %271 = vector.multi_reduction <maximumf>, %270, %cst_78 [1] : vector<8x8xf32> to vector<8xf32>
    %272 = vector.shape_cast %271 : vector<8xf32> to vector<8x1xf32>
    %273 = vector.broadcast %272 : vector<8x1xf32> to vector<8x8xf32>
    %274 = arith.subf %270, %273 : vector<8x8xf32>
    %275 = math.exp %274 : vector<8x8xf32>
    %cst_79 = arith.constant dense<0.000000e+00> : vector<8xf32>
    %276 = vector.multi_reduction <add>, %275, %cst_79 [1] : vector<8x8xf32> to vector<8xf32>
    %277 = vector.shape_cast %276 : vector<8xf32> to vector<8x1xf32>
    %278 = tpu.reciprocal %277 {approx = true} : vector<8x1xf32> -> vector<8x1xf32>
    %279 = vector.broadcast %278 : vector<8x1xf32> to vector<8x8xf32>
    %280 = arith.mulf %275, %279 : vector<8x8xf32>
    %cst_80 = arith.constant dense<0.000000e+00> : vector<8x8xf32>
    %281 = tpu.matmul %280, %266, %cst_80 {dimension_numbers = #tpu.dot_dimension_numbers<[1], [0], [0], [1], [0, 0, 1, 1], [], []>} : vector<8x8xf32>, vector<8x8xf32>, vector<8x8xf32> -> vector<8x8xf32>
    %282 = vector.extract_strided_slice %186 {offsets = [8, 8], sizes = [8, 8], strides = [1, 1]} : vector<16x32xf32> to vector<8x8xf32>
    %283 = vector.extract_strided_slice %189 {offsets = [8, 8], sizes = [8, 8], strides = [1, 1]} : vector<16x32xf32> to vector<8x8xf32>
    %284 = vector.extract_strided_slice %190 {offsets = [8, 8], sizes = [8, 8], strides = [1, 1]} : vector<16x32xf32> to vector<8x8xf32>
    %cst_81 = arith.constant dense<0.000000e+00> : vector<8x8xf32>
    %285 = tpu.matmul %282, %283, %cst_81 {dimension_numbers = #tpu.dot_dimension_numbers<[1], [1], [0], [0], [0, 0, 1, 0], [], []>} : vector<8x8xf32>, vector<8x8xf32>, vector<8x8xf32> -> vector<8x8xf32>
    %286 = vector.extract_strided_slice %3 {offsets = [1, 0], sizes = [1, 8], strides = [1, 1]} : vector<2x8xf32> to vector<1x8xf32>
    %287 = vector.broadcast %286 : vector<1x8xf32> to vector<8x8xf32>
    %288 = arith.addf %285, %287 : vector<8x8xf32>
    %cst_82 = arith.constant dense<0xFF800000> : vector<8xf32>
    %289 = vector.multi_reduction <maximumf>, %288, %cst_82 [1] : vector<8x8xf32> to vector<8xf32>
    %290 = vector.shape_cast %289 : vector<8xf32> to vector<8x1xf32>
    %291 = vector.broadcast %290 : vector<8x1xf32> to vector<8x8xf32>
    %292 = arith.subf %288, %291 : vector<8x8xf32>
    %293 = math.exp %292 : vector<8x8xf32>
    %cst_83 = arith.constant dense<0.000000e+00> : vector<8xf32>
    %294 = vector.multi_reduction <add>, %293, %cst_83 [1] : vector<8x8xf32> to vector<8xf32>
    %295 = vector.shape_cast %294 : vector<8xf32> to vector<8x1xf32>
    %296 = tpu.reciprocal %295 {approx = true} : vector<8x1xf32> -> vector<8x1xf32>
    %297 = vector.broadcast %296 : vector<8x1xf32> to vector<8x8xf32>
    %298 = arith.mulf %293, %297 : vector<8x8xf32>
    %cst_84 = arith.constant dense<0.000000e+00> : vector<8x8xf32>
    %299 = tpu.matmul %298, %284, %cst_84 {dimension_numbers = #tpu.dot_dimension_numbers<[1], [0], [0], [1], [0, 0, 1, 1], [], []>} : vector<8x8xf32>, vector<8x8xf32>, vector<8x8xf32> -> vector<8x8xf32>
    %300 = vector.extract_strided_slice %186 {offsets = [8, 16], sizes = [8, 8], strides = [1, 1]} : vector<16x32xf32> to vector<8x8xf32>
    %301 = vector.extract_strided_slice %189 {offsets = [8, 16], sizes = [8, 8], strides = [1, 1]} : vector<16x32xf32> to vector<8x8xf32>
    %302 = vector.extract_strided_slice %190 {offsets = [8, 16], sizes = [8, 8], strides = [1, 1]} : vector<16x32xf32> to vector<8x8xf32>
    %cst_85 = arith.constant dense<0.000000e+00> : vector<8x8xf32>
    %303 = tpu.matmul %300, %301, %cst_85 {dimension_numbers = #tpu.dot_dimension_numbers<[1], [1], [0], [0], [0, 0, 1, 0], [], []>} : vector<8x8xf32>, vector<8x8xf32>, vector<8x8xf32> -> vector<8x8xf32>
    %304 = vector.extract_strided_slice %3 {offsets = [1, 0], sizes = [1, 8], strides = [1, 1]} : vector<2x8xf32> to vector<1x8xf32>
    %305 = vector.broadcast %304 : vector<1x8xf32> to vector<8x8xf32>
    %306 = arith.addf %303, %305 : vector<8x8xf32>
    %cst_86 = arith.constant dense<0xFF800000> : vector<8xf32>
    %307 = vector.multi_reduction <maximumf>, %306, %cst_86 [1] : vector<8x8xf32> to vector<8xf32>
    %308 = vector.shape_cast %307 : vector<8xf32> to vector<8x1xf32>
    %309 = vector.broadcast %308 : vector<8x1xf32> to vector<8x8xf32>
    %310 = arith.subf %306, %309 : vector<8x8xf32>
    %311 = math.exp %310 : vector<8x8xf32>
    %cst_87 = arith.constant dense<0.000000e+00> : vector<8xf32>
    %312 = vector.multi_reduction <add>, %311, %cst_87 [1] : vector<8x8xf32> to vector<8xf32>
    %313 = vector.shape_cast %312 : vector<8xf32> to vector<8x1xf32>
    %314 = tpu.reciprocal %313 {approx = true} : vector<8x1xf32> -> vector<8x1xf32>
    %315 = vector.broadcast %314 : vector<8x1xf32> to vector<8x8xf32>
    %316 = arith.mulf %311, %315 : vector<8x8xf32>
    %cst_88 = arith.constant dense<0.000000e+00> : vector<8x8xf32>
    %317 = tpu.matmul %316, %302, %cst_88 {dimension_numbers = #tpu.dot_dimension_numbers<[1], [0], [0], [1], [0, 0, 1, 1], [], []>} : vector<8x8xf32>, vector<8x8xf32>, vector<8x8xf32> -> vector<8x8xf32>
    %318 = vector.extract_strided_slice %186 {offsets = [8, 24], sizes = [8, 8], strides = [1, 1]} : vector<16x32xf32> to vector<8x8xf32>
    %319 = vector.extract_strided_slice %189 {offsets = [8, 24], sizes = [8, 8], strides = [1, 1]} : vector<16x32xf32> to vector<8x8xf32>
    %320 = vector.extract_strided_slice %190 {offsets = [8, 24], sizes = [8, 8], strides = [1, 1]} : vector<16x32xf32> to vector<8x8xf32>
    %cst_89 = arith.constant dense<0.000000e+00> : vector<8x8xf32>
    %321 = tpu.matmul %318, %319, %cst_89 {dimension_numbers = #tpu.dot_dimension_numbers<[1], [1], [0], [0], [0, 0, 1, 0], [], []>} : vector<8x8xf32>, vector<8x8xf32>, vector<8x8xf32> -> vector<8x8xf32>
    %322 = vector.extract_strided_slice %3 {offsets = [1, 0], sizes = [1, 8], strides = [1, 1]} : vector<2x8xf32> to vector<1x8xf32>
    %323 = vector.broadcast %322 : vector<1x8xf32> to vector<8x8xf32>
    %324 = arith.addf %321, %323 : vector<8x8xf32>
    %cst_90 = arith.constant dense<0xFF800000> : vector<8xf32>
    %325 = vector.multi_reduction <maximumf>, %324, %cst_90 [1] : vector<8x8xf32> to vector<8xf32>
    %326 = vector.shape_cast %325 : vector<8xf32> to vector<8x1xf32>
    %327 = vector.broadcast %326 : vector<8x1xf32> to vector<8x8xf32>
    %328 = arith.subf %324, %327 : vector<8x8xf32>
    %329 = math.exp %328 : vector<8x8xf32>
    %cst_91 = arith.constant dense<0.000000e+00> : vector<8xf32>
    %330 = vector.multi_reduction <add>, %329, %cst_91 [1] : vector<8x8xf32> to vector<8xf32>
    %331 = vector.shape_cast %330 : vector<8xf32> to vector<8x1xf32>
    %332 = tpu.reciprocal %331 {approx = true} : vector<8x1xf32> -> vector<8x1xf32>
    %333 = vector.broadcast %332 : vector<8x1xf32> to vector<8x8xf32>
    %334 = arith.mulf %329, %333 : vector<8x8xf32>
    %cst_92 = arith.constant dense<0.000000e+00> : vector<8x8xf32>
    %335 = tpu.matmul %334, %320, %cst_92 {dimension_numbers = #tpu.dot_dimension_numbers<[1], [0], [0], [1], [0, 0, 1, 1], [], []>} : vector<8x8xf32>, vector<8x8xf32>, vector<8x8xf32> -> vector<8x8xf32>
    %336 = tpu.concatenate %281, %299, %317, %335 in 1 : vector<8x8xf32>, vector<8x8xf32>, vector<8x8xf32>, vector<8x8xf32> -> vector<8x32xf32>
    %337 = tpu.concatenate %263, %336 in 0 : vector<8x32xf32>, vector<8x32xf32> -> vector<16x32xf32>
    %c0_93 = arith.constant 0 : index
    %c0_94 = arith.constant 0 : index
    %338 = vector.load %arg9[%c0_93, %c0_94] : memref<32x32xf32, #tpu.memory_space<vmem>>, vector<32x32xf32>
    %cst_95 = arith.constant dense<0.000000e+00> : vector<16x32xf32>
    %339 = tpu.matmul %337, %338, %cst_95 {dimension_numbers = #tpu.dot_dimension_numbers<[1], [0], [0], [1], [0, 0, 1, 1], [], []>} : vector<16x32xf32>, vector<32x32xf32>, vector<16x32xf32> -> vector<16x32xf32>
    %340 = arith.addf %171, %339 : vector<16x32xf32>
    %c0_96 = arith.constant 0 : index
    %c0_97 = arith.constant 0 : index
    %341 = vector.load %arg10[%c0_96, %c0_97] : memref<1x32xf32, #tpu.memory_space<vmem>>, vector<1x32xf32>
    %342 = arith.mulf %340, %340 : vector<16x32xf32>
    %cst_98 = arith.constant dense<0.000000e+00> : vector<16xf32>
    %343 = vector.multi_reduction <add>, %342, %cst_98 [1] : vector<16x32xf32> to vector<16xf32>
    %344 = vector.shape_cast %343 : vector<16xf32> to vector<16x1xf32>
    %cst_99 = arith.constant 3.200000e+01 : f32
    %345 = vector.broadcast %cst_99 : f32 to vector<16x1xf32>
    %346 = arith.divf %344, %345 : vector<16x1xf32>
    %cst_100 = arith.constant 9.99999997E-7 : f32
    %347 = vector.broadcast %cst_100 : f32 to vector<16x1xf32>
    %348 = arith.addf %346, %347 : vector<16x1xf32>
    %349 = math.rsqrt %348 : vector<16x1xf32>
    %350 = vector.broadcast %349 : vector<16x1xf32> to vector<16x32xf32>
    %351 = arith.mulf %340, %350 : vector<16x32xf32>
    %352 = vector.broadcast %341 : vector<1x32xf32> to vector<16x32xf32>
    %353 = arith.mulf %351, %352 : vector<16x32xf32>
    %c0_101 = arith.constant 0 : index
    %c0_102 = arith.constant 0 : index
    %354 = vector.load %arg11[%c0_101, %c0_102] : memref<32x64xf32, #tpu.memory_space<vmem>>, vector<32x64xf32>
    %cst_103 = arith.constant dense<0.000000e+00> : vector<16x64xf32>
    %355 = tpu.matmul %353, %354, %cst_103 {dimension_numbers = #tpu.dot_dimension_numbers<[1], [0], [0], [1], [0, 0, 1, 1], [], []>} : vector<16x32xf32>, vector<32x64xf32>, vector<16x64xf32> -> vector<16x64xf32>
    %cst_104 = arith.constant 0.000000e+00 : f32
    %356 = vector.broadcast %cst_104 : f32 to vector<16x64xf32>
    %357 = arith.maximumf %355, %356 : vector<16x64xf32>
    %c0_105 = arith.constant 0 : index
    %c0_106 = arith.constant 0 : index
    %358 = vector.load %arg12[%c0_105, %c0_106] : memref<64x32xf32, #tpu.memory_space<vmem>>, vector<64x32xf32>
    %cst_107 = arith.constant dense<0.000000e+00> : vector<16x32xf32>
    %359 = tpu.matmul %357, %358, %cst_107 {dimension_numbers = #tpu.dot_dimension_numbers<[1], [0], [0], [1], [0, 0, 1, 1], [], []>} : vector<16x64xf32>, vector<64x32xf32>, vector<16x32xf32> -> vector<16x32xf32>
    %360 = arith.addf %340, %359 : vector<16x32xf32>
    %c0_108 = arith.constant 0 : index
    %c0_109 = arith.constant 0 : index
    %361 = vector.load %arg15[%c0_108, %c0_109] : memref<16x32xf32, #tpu.memory_space<vmem>>, vector<16x32xf32>
    tpu.vector_store %arg15[%c0_108, %c0_109], %360 {strides = array<i32>} : memref<16x32xf32, #tpu.memory_space<vmem>>, vector<16x32xf32>,
    return
  }
  func.func @transform_0(%arg0: i32) -> (i32, i32) {
    %c0_i32 = arith.constant 0 : i32
    %c0_i32_0 = arith.constant 0 : i32
    %c0_i32_1 = arith.constant 0 : i32
    return %c0_i32, %c0_i32_0 : i32, i32
  }
  func.func @transform_1(%arg0: i32) -> (i32, i32) {
    %c0_i32 = arith.constant 0 : i32
    %c0_i32_0 = arith.constant 0 : i32
    %c0_i32_1 = arith.constant 0 : i32
    return %c0_i32, %c0_i32_0 : i32, i32
  }
  func.func @transform_2(%arg0: i32) -> (i32, i32) {
    %c0_i32 = arith.constant 0 : i32
    %c0_i32_0 = arith.constant 0 : i32
    %c0_i32_1 = arith.constant 0 : i32
    return %c0_i32, %c0_i32_0 : i32, i32
  }
  func.func @transform_3(%arg0: i32) -> (i32, i32) {
    %c0_i32 = arith.constant 0 : i32
    %c0_i32_0 = arith.constant 0 : i32
    %c0_i32_1 = arith.constant 0 : i32
    return %c0_i32, %c0_i32_0 : i32, i32
  }
  func.func @transform_4(%arg0: i32) -> (i32, i32) {
    %c0_i32 = arith.constant 0 : i32
    %c0_i32_0 = arith.constant 0 : i32
    %c0_i32_1 = arith.constant 0 : i32
    return %c0_i32, %c0_i32_0 : i32, i32
  }
  func.func @transform_5(%arg0: i32) -> (i32, i32) {
    %c0_i32 = arith.constant 0 : i32
    %c0_i32_0 = arith.constant 0 : i32
    %c0_i32_1 = arith.constant 0 : i32
    return %c0_i32, %c0_i32_0 : i32, i32
  }
  func.func @transform_6(%arg0: i32) -> (i32, i32) {
    %c0_i32 = arith.constant 0 : i32
    %c0_i32_0 = arith.constant 0 : i32
    %c0_i32_1 = arith.constant 0 : i32
    return %c0_i32, %c0_i32_0 : i32, i32
  }
  func.func @transform_7(%arg0: i32) -> (i32, i32) {
    %c0_i32 = arith.constant 0 : i32
    %c0_i32_0 = arith.constant 0 : i32
    %c0_i32_1 = arith.constant 0 : i32
    return %c0_i32, %c0_i32_0 : i32, i32
  }
  func.func @transform_8(%arg0: i32) -> (i32, i32) {
    %c0_i32 = arith.constant 0 : i32
    %c0_i32_0 = arith.constant 0 : i32
    %c0_i32_1 = arith.constant 0 : i32
    return %c0_i32, %c0_i32_0 : i32, i32
  }
  func.func @transform_9(%arg0: i32) -> (i32, i32) {
    %c0_i32 = arith.constant 0 : i32
    %c0_i32_0 = arith.constant 0 : i32
    %c0_i32_1 = arith.constant 0 : i32
    return %c0_i32, %c0_i32_0 : i32, i32
  }
  func.func @transform_10(%arg0: i32) -> (i32, i32) {
    %c0_i32 = arith.constant 0 : i32
    %c0_i32_0 = arith.constant 0 : i32
    %c0_i32_1 = arith.constant 0 : i32
    return %c0_i32, %c0_i32_0 : i32, i32
  }
  func.func @transform_11(%arg0: i32) -> (i32, i32) {
    %c0_i32 = arith.constant 0 : i32
    %c0_i32_0 = arith.constant 0 : i32
    %c0_i32_1 = arith.constant 0 : i32
    return %c0_i32, %c0_i32_0 : i32, i32
  }
  func.func @transform_12(%arg0: i32) -> (i32, i32, i32) {
    %c0_i32 = arith.constant 0 : i32
    %c0_i32_0 = arith.constant 0 : i32
    %c0_i32_1 = arith.constant 0 : i32
    %c0_i32_2 = arith.constant 0 : i32
    return %c0_i32, %c0_i32_0, %c0_i32_1 : i32, i32, i32
  }
  func.func @transform_13(%arg0: i32) -> (i32, i32) {
    %c0_i32 = arith.constant 0 : i32
    %c0_i32_0 = arith.constant 0 : i32
    %c0_i32_1 = arith.constant 0 : i32
    return %c0_i32, %c0_i32_0 : i32, i32
  }
  func.func @transform_14(%arg0: i32) -> (i32, i32) {
    %c0_i32 = arith.constant 0 : i32
    %c0_i32_0 = arith.constant 0 : i32
    %c0_i32_1 = arith.constant 0 : i32
    return %c0_i32, %c0_i32_0 : i32, i32
  }
}

</mosaic_0001>

<llo_original>
// kernel: t5_forward_loss.9
$region0: #{t5_forward_loss.9}
  #allocation0 [shape = 'u32[]', space=smem, size = 0x4, offset = 0x4, fixed_abs, tag = 'smem constant byte address 0x4 - core index']
  #allocation1 [shape = 'u32[72,128]{1,0:T(1,128)}', space=vmem, size = 0x9000, scoped, tag = 'internal scratch']
  #allocation2 [shape = 'f32[16,128]{1,0:T(8,128)}', space=vmem, size = 0x2000, scoped, tag = 'scratch operand']
  %s0 = inlined_call_operand.vmem [shape: s32[16], index: 0, kind: input, shape index: {}]
  %s1 = inlined_call_operand.vmem [shape: f32[16,32], index: 1, kind: input, shape index: {}]
  %s2 = inlined_call_operand.vmem [shape: f32[1,32], index: 2, kind: input, shape index: {}]
  %s3 = inlined_call_operand.vmem [shape: f32[128,32], index: 3, kind: input, shape index: {}]
  %s4 = inlined_call_operand.hbm [shape: f32[1,1], index: 4, kind: output, shape index: {0}]
  %s5 = inlined_call_operand.hbm [shape: f32[1,1], index: 5, kind: output, shape index: {1}]
  %6 = xla_tuple %s4, %s5
  %s7 = sld [smem:[#allocation0]]
  $region45: #{t5_forward_loss.9} parent=0
    _
  %s9 = ssub.s32 1, %s7
  %s10 = scalar_select 0, %s9, %s7
  $region1: #{t5_forward_loss.9} parent=0
    #allocation3 [shape = 'u8[512]{0}', space=smem, size = 0x200, scoped, tag = 'input window, operand 0, single buffered']
    #allocation4 [shape = 's32[1]{0}', space=sflag, size = 0x4, scoped, tag = 'scoped memory for t5_forward_loss.9']
    #allocation5 [shape = 's32[1]{0}', space=sflag, size = 0x4, scoped, tag = 'scoped memory for t5_forward_loss.9']
    #allocation6 [shape = 'u8[512]{0}', space=vmem, size = 0x400, scoped, tag = 'output window, operand 0, single buffered']
    #allocation7 [shape = 'u8[512]{0}', space=vmem, size = 0x400, scoped, tag = 'output window, operand 1, single buffered']
    #allocation8 [shape = 's32[1]{0}', space=sflag, size = 0x4, scoped, tag = 'scoped memory for t5_forward_loss.9']
    %11 = vsyncpa [#allocation5], 0
    %12 = vsyncpa [#allocation4], 0
    %13 = vsyncpa [#allocation8], 0
    // Predicated region
    $region2: #{t5_forward_loss.9} parent=1 // pred_check
      _
    $region3: #{t5_forward_loss.9} parent=1 // pred_check_branch
      %15 = sbr.rel (0) target = $region5
    $region4: #{t5_forward_loss.9} parent=1 // pred_region
      %17 = vsyncadd [#allocation5], 0
      %s19 = sshll.u32 %s0, 4
      %s20 = int_to_ptr.vmem [resolvable:$true] %s19
      %22 = dma.vmem_to_smem %s20, 16, [#allocation3], [#allocation5]
    $region5: #{t5_forward_loss.9} parent=1 // pred_fallthru
      _
    // Predicated region
    $region6: #{t5_forward_loss.9} parent=1 // pred_check
      _
    $region7: #{t5_forward_loss.9} parent=1 // pred_check_branch
      %24 = sbr.rel (0) target = $region9
    $region8: #{t5_forward_loss.9} parent=1 // pred_region
      _
    $region9: #{t5_forward_loss.9} parent=1 // pred_fallthru
      _
    // Predicated region
    $region10: #{t5_forward_loss.9} parent=1 // pred_check
      _
    $region11: #{t5_forward_loss.9} parent=1 // pred_check_branch
      %26 = sbr.rel (0) target = $region13
    $region12: #{t5_forward_loss.9} parent=1 // pred_region
      _
    $region13: #{t5_forward_loss.9} parent=1 // pred_fallthru
      _
    // Predicated region
    $region14: #{t5_forward_loss.9} parent=1 // pred_check
      _
    $region15: #{t5_forward_loss.9} parent=1 // pred_check_branch
      %28 = sbr.rel (0) target = $region17
    $region16: #{t5_forward_loss.9} parent=1 // pred_region
      _
    $region17: #{t5_forward_loss.9} parent=1 // pred_fallthru
      _
    // Predicated region
    $region18: #{t5_forward_loss.9} parent=1 // pred_check
      _
    $region19: #{t5_forward_loss.9} parent=1 // pred_check_branch
      %30 = sbr.rel (0) target = $region21
    $region20: #{t5_forward_loss.9} parent=1 // pred_region
      %32 = dma.done [#allocation5], 16
    $region21: #{t5_forward_loss.9} parent=1 // pred_fallthru
      _
    %33 = sfence
    %v34 = vld [vmem:[%s1] sm:$0xff]
    %v35 = vld [vmem:[%s1 + $0x8] sm:$0xff]
    %v36 = vld [vmem:[%s2] sm:$0x1]
    %v37 = vmul.f32 %v34, %v34
    %v38 = vmul.f32 %v35, %v35
    %vm39 = vcmask 261120
    %v40 = vsel %vm39, %v37, 0.0
    %41 = vadd.xlane.f32.xlu0 %v40
    %v42 = vpop.xlane.xlu0 %41
    %v43 = vsel %vm39, %v38, 0.0
    %44 = vadd.xlane.f32.xlu0 %v43
    %v45 = vpop.xlane.xlu0 %44
    %v46 = vrcp.pop 32.0
    %v47 = vmul.f32 32.0, %v46
    %v48 = vsub.f32 1.0, %v47
    %v49 = vmul.f32 %v46, %v48
    %v50 = vadd.f32 %v46, %v49
    %vm51 = vweird.f32 %v46
    %v52 = vsel %vm51, %v46, %v50
    %v53 = vmul.f32 %v42, %v52
    %v54 = vmul.f32 %v45, %v52
    %v55 = vadd.f32 %v53, 1e-06
    %v56 = vadd.f32 %v54, 1e-06
    %v57 = vrsqrt.pop %v55
    %v58 = vmul.f32 %v57, %v55
    %v59 = vmul.f32 %v58, %v57
    %v60 = vmul.f32 0.5, %v59
    %v61 = vsub.f32 1.5, %v60
    %v62 = vmul.f32 %v57, %v61
    %vm63 = vweird.f32 %v55
    %vm64 = vweird.f32 %v57
    %vm65 = vmor %vm63, %vm64
    %v66 = vsel %vm65, %v57, %v62
    %v67 = vrsqrt.pop %v56
    %v68 = vmul.f32 %v67, %v56
    %v69 = vmul.f32 %v68, %v67
    %v70 = vmul.f32 0.5, %v69
    %v71 = vsub.f32 1.5, %v70
    %v72 = vmul.f32 %v67, %v71
    %vm73 = vweird.f32 %v56
    %vm74 = vweird.f32 %v67
    %vm75 = vmor %vm73, %vm74
    %v76 = vsel %vm75, %v67, %v72
    %v77 = vmul.f32 %v34, %v66
    %v78 = vmul.f32 %v35, %v76
    %v80 = vperm.slane %v36, 0
    %v82 = vmul.f32 %v77, %v80
    %v83 = vmul.f32 %v78, %v80
    %v84 = vmul.f32 %v82, 0.17677669
    %v85 = vmul.f32 %v83, 0.17677669
    %v86 = vld [vmem:[%s3] sm:$0xff]
    %v87 = vld [vmem:[%s3 + $0x8] sm:$0xff]
    %v88 = vld [vmem:[%s3 + $0x10] sm:$0xff]
    %v89 = vld [vmem:[%s3 + $0x18] sm:$0xff]
    %v90 = vld [vmem:[%s3 + $0x20] sm:$0xff]
    %v91 = vld [vmem:[%s3 + $0x28] sm:$0xff]
    %v92 = vld [vmem:[%s3 + $0x30] sm:$0xff]
    %v93 = vld [vmem:[%s3 + $0x38] sm:$0xff]
    %v94 = vld [vmem:[%s3 + $0x40] sm:$0xff]
    %v95 = vld [vmem:[%s3 + $0x48] sm:$0xff]
    %v96 = vld [vmem:[%s3 + $0x50] sm:$0xff]
    %v97 = vld [vmem:[%s3 + $0x58] sm:$0xff]
    %v98 = vld [vmem:[%s3 + $0x60] sm:$0xff]
    %v99 = vld [vmem:[%s3 + $0x68] sm:$0xff]
    %v100 = vld [vmem:[%s3 + $0x70] sm:$0xff]
    %v101 = vld [vmem:[%s3 + $0x78] sm:$0xff]
    %v103 = vsel %vm39, %v84, 0
    %v106 = vsel %vm39, %v85, 0
    %v109 = vsel %vm39, %v86, 0
    %v112 = vsel %vm39, %v87, 0
    %v115 = vsel %vm39, %v88, 0
    %v118 = vsel %vm39, %v89, 0
    %v121 = vsel %vm39, %v90, 0
    %v124 = vsel %vm39, %v91, 0
    %v127 = vsel %vm39, %v92, 0
    %v130 = vsel %vm39, %v93, 0
    %v133 = vsel %vm39, %v94, 0
    %v136 = vsel %vm39, %v95, 0
    %v139 = vsel %vm39, %v96, 0
    %v142 = vsel %vm39, %v97, 0
    %v145 = vsel %vm39, %v98, 0
    %v148 = vsel %vm39, %v99, 0
    %v151 = vsel %vm39, %v100, 0
    %v154 = vsel %vm39, %v101, 0
    %156 = vmatpush.xpose.msra.mxu0 %v154
    %157 = vmatpush.xpose.msra.mxu0 %v151
    %158 = vmatpush.xpose.msra.mxu0 %v148
    %159 = vmatpush.xpose.msra.mxu0 %v145
    %160 = vmatpush.xpose.msra.mxu0 %v142
    %161 = vmatpush.xpose.msra.mxu0 %v139
    %162 = vmatpush.xpose.msra.mxu0 %v136
    %163 = vmatpush.xpose.msra.mxu0 %v133
    %164 = vmatpush.xpose.msra.mxu0 %v130
    %165 = vmatpush.xpose.msra.mxu0 %v127
    %166 = vmatpush.xpose.msra.mxu0 %v124
    %167 = vmatpush.xpose.msra.mxu0 %v121
    %168 = vmatpush.xpose.msra.mxu0 %v118
    %169 = vmatpush.xpose.msra.mxu0 %v115
    %170 = vmatpush.xpose.msra.mxu0 %v112
    %171 = vmatpush.xpose.msra.mxu0 %v109
    %172 = vmatmul.f32.gmra.mxu0 %v103
    %v173 = vpop.f32.mrf.mxu0
    %v174 = vadd.f32 0.0, %v173
    %175 = vmatmul.f32.gmra.mxu0 %v106
    %v176 = vpop.f32.mrf.mxu0
    %v177 = vadd.f32 0.0, %v176
    %178 = vdwg.mxu0
    %179 = vst [vmem:[#allocation2] sm:$0xff] %v174
    %180 = vst [vmem:[#allocation2 + $0x8] sm:$0xff] %v177
    %v181 = vlaneseq
    %v182 = vand.u32 %v181, 127
    loop: start=0, step=1, limit=16
    $region22: #{t5_forward_loss.9} parent=1 // loop_pre_header
      _
    $region23: #{t5_forward_loss.9} parent=1 // loop_header
      %s184 = sphi 0, %s188
      %p185 = scmp.ge.s32.totalorder %s184, 16
      %v189 = vphi 0.0, %v219
      %v190 = vphi 0.0, %v222
    $region24: #{t5_forward_loss.9} parent=1 // loop_header_branch
      %187 = sbr.rel (%p185) target = $region28
    $region25: #{t5_forward_loss.9} parent=1 // loop_body
      %s191 = scalar_lea.vmem [#allocation2], %s184
      %v192 = vld [vmem:[%s191] sm:$0x1]
      %s193 = sld [smem:[#allocation3 + %s184]]
      %vm194 = vcmask 1040384
      %v195 = vsel %vm194, %v192, -inf
      %196 = vmax.xlane.f32.xlu0 %v195
      %v197 = vpop.xlane.xlu0 %196
      %v198 = vsub.f32 %v192, %v197
      %v199 = vmul.f32 %v198, 1.442695
      %v200 = vpow.pop %v199
      %v201 = vsel %vm194, %v200, 0.0
      %202 = vadd.xlane.f32.xlu0 %v201
      %v203 = vpop.xlane.xlu0 %202
      %v204 = vlog2.pop %v203
      %v205 = vmul.f32 %v204, 0.6931472
      %v206 = vadd.f32 %v205, %v197
      %v207 = vstv %s193
      %vm208 = vcmp.eq.s32.totalorder %v182, %v207
      %v209 = vsel %vm208, %v192, 0.0
      %v210 = vsel %vm194, %v209, 0.0
      %211 = vadd.xlane.f32.xlu0 %v210
      %v212 = vpop.xlane.xlu0 %211
      %p213 = scmp.ne.s32.totalorder %s193, 4294967196
      %v214 = vsub.f32 %v206, %v212
      %s215 = scalar_select %p213, 1, 0
      %v216 = vstv %s215
      %vm217 = vcmp.eq.s32.totalorder %v216, 1
      %v218 = vsel %vm217, %v214, 0.0
      %v219 = vadd.f32 %v189, %v218
      %s220 = scalar_select %p213, 1.0, 0.0
      %v221 = vstv %s220
      %v222 = vadd.f32 %v190, %v221
    $region26: #{t5_forward_loss.9} parent=1 // loop_footer
      %s188 = sadd.s32 1, %s184
    $region27: #{t5_forward_loss.9} parent=1 // loop_footer_branch
      %183 = sbr.rel target = $region23
    $region28: #{t5_forward_loss.9} parent=1 // loop_exit
      _
    %vm223 = vcmask 0
    %224 = vst.msk [vmem:[#allocation6] sm:$0x1] %vm223, %v189
    %225 = vst.msk [vmem:[#allocation7] sm:$0x1] %vm223, %v190
    // Predicated region
    $region29: #{t5_forward_loss.9} parent=1 // pred_check
      _
    $region30: #{t5_forward_loss.9} parent=1 // pred_check_branch
      %227 = sbr.rel (0) target = $region32
    $region31: #{t5_forward_loss.9} parent=1 // pred_region
      %229 = vsyncadd [#allocation4], 0
      %s231 = sshll.u32 [#allocation6], 4
      %s232 = int_to_ptr.vmem [resolvable:$true] %s231
      %s233 = sshll.u32 %s4, 4
      %s234 = int_to_ptr.hbm [resolvable:$true] %s233
      %236 = dma.vmem_to_hbm [thread:$0]  %s232, 16, %s234, [#allocation4]
    $region32: #{t5_forward_loss.9} parent=1 // pred_fallthru
      _
    // Predicated region
    $region33: #{t5_forward_loss.9} parent=1 // pred_check
      _
    $region34: #{t5_forward_loss.9} parent=1 // pred_check_branch
      %238 = sbr.rel (0) target = $region36
    $region35: #{t5_forward_loss.9} parent=1 // pred_region
      %240 = vsyncadd [#allocation8], 0
      %s242 = sshll.u32 [#allocation7], 4
      %s243 = int_to_ptr.vmem [resolvable:$true] %s242
      %s244 = sshll.u32 %s5, 4
      %s245 = int_to_ptr.hbm [resolvable:$true] %s244
      %247 = dma.vmem_to_hbm [thread:$0]  %s243, 16, %s245, [#allocation8]
    $region36: #{t5_forward_loss.9} parent=1 // pred_fallthru
      _
    // Predicated region
    $region37: #{t5_forward_loss.9} parent=1 // pred_check
      _
    $region38: #{t5_forward_loss.9} parent=1 // pred_check_branch
      %249 = sbr.rel (0) target = $region40
    $region39: #{t5_forward_loss.9} parent=1 // pred_region
      %251 = dma.done [#allocation4], 16
    $region40: #{t5_forward_loss.9} parent=1 // pred_fallthru
      _
    // Predicated region
    $region41: #{t5_forward_loss.9} parent=1 // pred_check
      _
    $region42: #{t5_forward_loss.9} parent=1 // pred_check_branch
      %253 = sbr.rel (0) target = $region44
    $region43: #{t5_forward_loss.9} parent=1 // pred_region
      %255 = dma.done [#allocation8], 16
    $region44: #{t5_forward_loss.9} parent=1 // pred_fallthru
      _
    %256 = vsyncpa [#allocation4], 1
    %257 = vsyncpa [#allocation8], 1
    %258 = vsyncpa [#allocation5], 1

// kernel: t5_forward_loss.5
$region0: #{t5_forward_loss.5}
  #allocation0 [shape = 'u32[]', space=smem, size = 0x4, offset = 0x4, fixed_abs, tag = 'smem constant byte address 0x4 - core index']
  #allocation1 [shape = 'u32[72,128]{1,0:T(1,128)}', space=vmem, size = 0x9000, scoped, tag = 'internal scratch']
  %s0 = inlined_call_operand.vmem [shape: f32[16,32], index: 0, kind: input, shape index: {}]
  %s1 = inlined_call_operand.vmem [shape: f32[1,32], index: 1, kind: input, shape index: {}]
  %s2 = inlined_call_operand.vmem [shape: f32[32,96], index: 2, kind: input, shape index: {}]
  %s3 = inlined_call_operand.vmem [shape: f32[32,32], index: 3, kind: input, shape index: {}]
  %s4 = inlined_call_operand.vmem [shape: f32[1,32], index: 4, kind: input, shape index: {}]
  %s5 = inlined_call_operand.vmem [shape: f32[32,64], index: 5, kind: input, shape index: {}]
  %s6 = inlined_call_operand.vmem [shape: f32[64,32], index: 6, kind: input, shape index: {}]
  %s7 = inlined_call_operand.vmem [shape: f32[4,8,8], index: 7, kind: input, shape index: {}]
  %s8 = inlined_call_operand.vmem [shape: f32[2,8], index: 8, kind: input, shape index: {}]
  %s9 = inlined_call_operand.vmem [shape: f32[1,32], index: 9, kind: input, shape index: {}]
  %s10 = inlined_call_operand.vmem [shape: f32[16,32], index: 10, kind: output, shape index: {}]
  %s11 = sld [smem:[#allocation0]]
  $region50: #{t5_forward_loss.5} parent=0
    _
  %s13 = ssub.s32 1, %s11
  %s14 = scalar_select 0, %s13, %s11
  // Predicated region
  $region2: #{t5_forward_loss.5} parent=0 // pred_check
    _
  $region3: #{t5_forward_loss.5} parent=0 // pred_check_branch
    %16 = sbr.rel (0) target = $region5
  $region4: #{t5_forward_loss.5} parent=0 // pred_region
    _
  $region5: #{t5_forward_loss.5} parent=0 // pred_fallthru
    _
  // Predicated region
  $region6: #{t5_forward_loss.5} parent=0 // pred_check
    _
  $region7: #{t5_forward_loss.5} parent=0 // pred_check_branch
    %18 = sbr.rel (0) target = $region9
  $region8: #{t5_forward_loss.5} parent=0 // pred_region
    _
  $region9: #{t5_forward_loss.5} parent=0 // pred_fallthru
    _
  // Predicated region
  $region10: #{t5_forward_loss.5} parent=0 // pred_check
    _
  $region11: #{t5_forward_loss.5} parent=0 // pred_check_branch
    %20 = sbr.rel (0) target = $region13
  $region12: #{t5_forward_loss.5} parent=0 // pred_region
    _
  $region13: #{t5_forward_loss.5} parent=0 // pred_fallthru
    _
  // Predicated region
  $region14: #{t5_forward_loss.5} parent=0 // pred_check
    _
  $region15: #{t5_forward_loss.5} parent=0 // pred_check_branch
    %22 = sbr.rel (0) target = $region17
  $region16: #{t5_forward_loss.5} parent=0 // pred_region
    _
  $region17: #{t5_forward_loss.5} parent=0 // pred_fallthru
    _
  // Predicated region
  $region18: #{t5_forward_loss.5} parent=0 // pred_check
    _
  $region19: #{t5_forward_loss.5} parent=0 // pred_check_branch
    %24 = sbr.rel (0) target = $region21
  $region20: #{t5_forward_loss.5} parent=0 // pred_region
    _
  $region21: #{t5_forward_loss.5} parent=0 // pred_fallthru
    _
  // Predicated region
  $region22: #{t5_forward_loss.5} parent=0 // pred_check
    _
  $region23: #{t5_forward_loss.5} parent=0 // pred_check_branch
    %26 = sbr.rel (0) target = $region25
  $region24: #{t5_forward_loss.5} parent=0 // pred_region
    _
  $region25: #{t5_forward_loss.5} parent=0 // pred_fallthru
    _
  // Predicated region
  $region26: #{t5_forward_loss.5} parent=0 // pred_check
    _
  $region27: #{t5_forward_loss.5} parent=0 // pred_check_branch
    %28 = sbr.rel (0) target = $region29
  $region28: #{t5_forward_loss.5} parent=0 // pred_region
    _
  $region29: #{t5_forward_loss.5} parent=0 // pred_fallthru
    _
  // Predicated region
  $region30: #{t5_forward_loss.5} parent=0 // pred_check
    _
  $region31: #{t5_forward_loss.5} parent=0 // pred_check_branch
    %30 = sbr.rel (0) target = $region33
  $region32: #{t5_forward_loss.5} parent=0 // pred_region
    _
  $region33: #{t5_forward_loss.5} parent=0 // pred_fallthru
    _
  // Predicated region
  $region34: #{t5_forward_loss.5} parent=0 // pred_check
    _
  $region35: #{t5_forward_loss.5} parent=0 // pred_check_branch
    %32 = sbr.rel (0) target = $region37
  $region36: #{t5_forward_loss.5} parent=0 // pred_region
    _
  $region37: #{t5_forward_loss.5} parent=0 // pred_fallthru
    _
  // Predicated region
  $region38: #{t5_forward_loss.5} parent=0 // pred_check
    _
  $region39: #{t5_forward_loss.5} parent=0 // pred_check_branch
    %34 = sbr.rel (0) target = $region41
  $region40: #{t5_forward_loss.5} parent=0 // pred_region
    _
  $region41: #{t5_forward_loss.5} parent=0 // pred_fallthru
    _
  %v35 = vld [vmem:[%s0] sm:$0xff]
  %v36 = vld [vmem:[%s0 + $0x8] sm:$0xff]
  %v37 = vld [vmem:[%s7] sm:$0xff]
  %v38 = vld [vmem:[%s7 + $0x8] sm:$0xff]
  %v39 = vld [vmem:[%s7 + $0x10] sm:$0xff]
  %v40 = vld [vmem:[%s7 + $0x18] sm:$0xff]
  %v41 = vld [vmem:[%s8] sm:$0x3]
  %v42 = vld [vmem:[%s1] sm:$0x1]
  %v43 = vmul.f32 %v35, %v35
  %v44 = vmul.f32 %v36, %v36
  %vm45 = vcmask 261120
  %v46 = vsel %vm45, %v43, 0.0
  %47 = vadd.xlane.f32.xlu0 %v46
  %v48 = vpop.xlane.xlu0 %47
  %v49 = vsel %vm45, %v44, 0.0
  %50 = vadd.xlane.f32.xlu0 %v49
  %v51 = vpop.xlane.xlu0 %50
  %v52 = vrcp.pop 32.0
  %v53 = vmul.f32 32.0, %v52
  %v54 = vsub.f32 1.0, %v53
  %v55 = vmul.f32 %v52, %v54
  %v56 = vadd.f32 %v52, %v55
  %vm57 = vweird.f32 %v52
  %v58 = vsel %vm57, %v52, %v56
  %v59 = vmul.f32 %v48, %v58
  %v60 = vmul.f32 %v51, %v58
  %v61 = vadd.f32 %v59, 1e-06
  %v62 = vadd.f32 %v60, 1e-06
  %v63 = vrsqrt.pop %v61
  %v64 = vmul.f32 %v63, %v61
  %v65 = vmul.f32 %v64, %v63
  %v66 = vmul.f32 0.5, %v65
  %v67 = vsub.f32 1.5, %v66
  %v68 = vmul.f32 %v63, %v67
  %vm69 = vweird.f32 %v61
  %vm70 = vweird.f32 %v63
  %vm71 = vmor %vm69, %vm70
  %v72 = vsel %vm71, %v63, %v68
  %v73 = vrsqrt.pop %v62
  %v74 = vmul.f32 %v73, %v62
  %v75 = vmul.f32 %v74, %v73
  %v76 = vmul.f32 0.5, %v75
  %v77 = vsub.f32 1.5, %v76
  %v78 = vmul.f32 %v73, %v77
  %vm79 = vweird.f32 %v62
  %vm80 = vweird.f32 %v73
  %vm81 = vmor %vm79, %vm80
  %v82 = vsel %vm81, %v73, %v78
  %v83 = vmul.f32 %v35, %v72
  %v84 = vmul.f32 %v36, %v82
  %v86 = vperm.slane %v42, 0
  %v88 = vmul.f32 %v83, %v86
  %v89 = vmul.f32 %v84, %v86
  %v90 = vld [vmem:[%s2] sm:$0xff]
  %v91 = vld [vmem:[%s2 + $0x8] sm:$0xff]
  %v92 = vld [vmem:[%s2 + $0x10] sm:$0xff]
  %v93 = vld [vmem:[%s2 + $0x18] sm:$0xff]
  %v95 = vsel %vm45, %v88, 0
  %v98 = vsel %vm45, %v89, 0
  %100 = vmatpush.msra.mxu0 0.0
  %101 = vmatpush.msra.mxu0 0.0
  %102 = vmatpush.msra.mxu0 0.0
  %103 = vmatpush.msra.mxu0 0.0
  %104 = vmatpush.msra.mxu0 0.0
  %105 = vmatpush.msra.mxu0 0.0
  %106 = vmatpush.msra.mxu0 0.0
  %107 = vmatpush.msra.mxu0 0.0
  %108 = vmatpush.msra.mxu0 0.0
  %109 = vmatpush.msra.mxu0 0.0
  %110 = vmatpush.msra.mxu0 0.0
  %111 = vmatpush.msra.mxu0 0.0
  %112 = vmatpush.msra.mxu0 %v93
  %113 = vmatpush.msra.mxu0 %v92
  %114 = vmatpush.msra.mxu0 %v91
  %115 = vmatpush.msra.mxu0 %v90
  %116 = vmatmul.f32.gmra.mxu0 %v95
  %v117 = vpop.f32.mrf.mxu0
  %v118 = vadd.f32 0.0, %v117
  %119 = vmatmul.f32.gmra.mxu0 %v98
  %v120 = vpop.f32.mrf.mxu0
  %v121 = vadd.f32 0.0, %v120
  %122 = vdwg.mxu0
  %124 = vrot.lane.b32.xlu0 %v118, 96
  %v125 = vpop.permute.xlu0 %124
  %vm126 = vcmask 64512
  %v127 = vsel %vm126, %v118, 0
  %v129 = vsel %vm126, %v125, 0
  %131 = vmatpush.xpose.msra.mxu0 0.0
  %132 = vmatpush.xpose.msra.mxu0 0.0
  %133 = vmatpush.xpose.msra.mxu0 0.0
  %134 = vmatpush.xpose.msra.mxu0 0.0
  %135 = vmatpush.xpose.msra.mxu0 0.0
  %136 = vmatpush.xpose.msra.mxu0 0.0
  %137 = vmatpush.xpose.msra.mxu0 0.0
  %138 = vmatpush.xpose.msra.mxu0 0.0
  %139 = vmatpush.xpose.msra.mxu0 0.0
  %140 = vmatpush.xpose.msra.mxu0 0.0
  %141 = vmatpush.xpose.msra.mxu0 0.0
  %142 = vmatpush.xpose.msra.mxu0 0.0
  %143 = vmatpush.xpose.msra.mxu0 0.0
  %144 = vmatpush.xpose.msra.mxu0 0.0
  %145 = vmatpush.xpose.msra.mxu0 0.0
  %146 = vmatpush.xpose.msra.mxu0 %v129
  %147 = vmatmul.f32.gmra.mxu0 %v127
  %v148 = vpop.f32.mrf.mxu0
  %v149 = vadd.f32 %v37, %v148
  %150 = vdwg.mxu0
  %v151 = vperm.slane %v41, 0
  %v152 = vadd.f32 %v149, %v151
  %v153 = vsel %vm126, %v152, -inf
  %154 = vmax.xlane.f32.xlu0 %v153
  %v155 = vpop.xlane.xlu0 %154
  %v156 = vsub.f32 %v152, %v155
  %v157 = vmul.f32 %v156, 1.442695
  %v158 = vpow.pop %v157
  %v159 = vsel %vm126, %v158, 0.0
  %160 = vadd.xlane.f32.xlu0 %v159
  %v161 = vpop.xlane.xlu0 %160
  %v162 = vrcp.pop %v161
  %v163 = vmul.f32 %v158, %v162
  %164 = vrot.lane.b32.xlu0 %v118, 64
  %v165 = vpop.permute.xlu0 %164
  %v168 = vsel %vm126, %v163, 0
  %170 = vmatpush.msra.mxu0 0.0
  %171 = vmatpush.msra.mxu0 0.0
  %172 = vmatpush.msra.mxu0 0.0
  %173 = vmatpush.msra.mxu0 0.0
  %174 = vmatpush.msra.mxu0 0.0
  %175 = vmatpush.msra.mxu0 0.0
  %176 = vmatpush.msra.mxu0 0.0
  %177 = vmatpush.msra.mxu0 0.0
  %178 = vmatpush.msra.mxu0 0.0
  %179 = vmatpush.msra.mxu0 0.0
  %180 = vmatpush.msra.mxu0 0.0
  %181 = vmatpush.msra.mxu0 0.0
  %182 = vmatpush.msra.mxu0 0.0
  %183 = vmatpush.msra.mxu0 0.0
  %184 = vmatpush.msra.mxu0 0.0
  %185 = vmatpush.msra.mxu0 %v165
  %186 = vmatmul.f32.gmra.mxu0 %v168
  %v187 = vpop.f32.mrf.mxu0
  %v188 = vadd.f32 0.0, %v187
  %189 = vdwg.mxu0
  %190 = vrot.lane.b32.xlu0 %v118, 120
  %v191 = vpop.permute.xlu0 %190
  %192 = vrot.lane.b32.xlu0 %v118, 88
  %v193 = vpop.permute.xlu0 %192
  %v194 = vsel %vm126, %v191, 0
  %v196 = vsel %vm126, %v193, 0
  %198 = vmatpush.xpose.msra.mxu0 0.0
  %199 = vmatpush.xpose.msra.mxu0 0.0
  %200 = vmatpush.xpose.msra.mxu0 0.0
  %201 = vmatpush.xpose.msra.mxu0 0.0
  %202 = vmatpush.xpose.msra.mxu0 0.0
  %203 = vmatpush.xpose.msra.mxu0 0.0
  %204 = vmatpush.xpose.msra.mxu0 0.0
  %205 = vmatpush.xpose.msra.mxu0 0.0
  %206 = vmatpush.xpose.msra.mxu0 0.0
  %207 = vmatpush.xpose.msra.mxu0 0.0
  %208 = vmatpush.xpose.msra.mxu0 0.0
  %209 = vmatpush.xpose.msra.mxu0 0.0
  %210 = vmatpush.xpose.msra.mxu0 0.0
  %211 = vmatpush.xpose.msra.mxu0 0.0
  %212 = vmatpush.xpose.msra.mxu0 0.0
  %213 = vmatpush.xpose.msra.mxu0 %v196
  %214 = vmatmul.f32.gmra.mxu0 %v194
  %v215 = vpop.f32.mrf.mxu0
  %v216 = vadd.f32 %v38, %v215
  %217 = vdwg.mxu0
  %v218 = vadd.f32 %v216, %v151
  %v219 = vsel %vm126, %v218, -inf
  %220 = vmax.xlane.f32.xlu0 %v219
  %v221 = vpop.xlane.xlu0 %220
  %v222 = vsub.f32 %v218, %v221
  %v223 = vmul.f32 %v222, 1.442695
  %v224 = vpow.pop %v223
  %v225 = vsel %vm126, %v224, 0.0
  %226 = vadd.xlane.f32.xlu0 %v225
  %v227 = vpop.xlane.xlu0 %226
  %v228 = vrcp.pop %v227
  %v229 = vmul.f32 %v224, %v228
  %230 = vrot.lane.b32.xlu0 %v118, 56
  %v231 = vpop.permute.xlu0 %230
  %v234 = vsel %vm126, %v229, 0
  %236 = vmatpush.msra.mxu0 0.0
  %237 = vmatpush.msra.mxu0 0.0
  %238 = vmatpush.msra.mxu0 0.0
  %239 = vmatpush.msra.mxu0 0.0
  %240 = vmatpush.msra.mxu0 0.0
  %241 = vmatpush.msra.mxu0 0.0
  %242 = vmatpush.msra.mxu0 0.0
  %243 = vmatpush.msra.mxu0 0.0
  %244 = vmatpush.msra.mxu0 0.0
  %245 = vmatpush.msra.mxu0 0.0
  %246 = vmatpush.msra.mxu0 0.0
  %247 = vmatpush.msra.mxu0 0.0
  %248 = vmatpush.msra.mxu0 0.0
  %249 = vmatpush.msra.mxu0 0.0
  %250 = vmatpush.msra.mxu0 0.0
  %251 = vmatpush.msra.mxu0 %v231
  %252 = vmatmul.f32.gmra.mxu0 %v234
  %v253 = vpop.f32.mrf.mxu0
  %v254 = vadd.f32 0.0, %v253
  %255 = vdwg.mxu0
  %256 = vrot.lane.b32.xlu0 %v118, 112
  %v257 = vpop.permute.xlu0 %256
  %258 = vrot.lane.b32.xlu0 %v118, 80
  %v259 = vpop.permute.xlu0 %258
  %v260 = vsel %vm126, %v257, 0
  %v262 = vsel %vm126, %v259, 0
  %264 = vmatpush.xpose.msra.mxu0 0.0
  %265 = vmatpush.xpose.msra.mxu0 0.0
  %266 = vmatpush.xpose.msra.mxu0 0.0
  %267 = vmatpush.xpose.msra.mxu0 0.0
  %268 = vmatpush.xpose.msra.mxu0 0.0
  %269 = vmatpush.xpose.msra.mxu0 0.0
  %270 = vmatpush.xpose.msra.mxu0 0.0
  %271 = vmatpush.xpose.msra.mxu0 0.0
  %272 = vmatpush.xpose.msra.mxu0 0.0
  %273 = vmatpush.xpose.msra.mxu0 0.0
  %274 = vmatpush.xpose.msra.mxu0 0.0
  %275 = vmatpush.xpose.msra.mxu0 0.0
  %276 = vmatpush.xpose.msra.mxu0 0.0
  %277 = vmatpush.xpose.msra.mxu0 0.0
  %278 = vmatpush.xpose.msra.mxu0 0.0
  %279 = vmatpush.xpose.msra.mxu0 %v262
  %280 = vmatmul.f32.gmra.mxu0 %v260
  %v281 = vpop.f32.mrf.mxu0
  %v282 = vadd.f32 %v39, %v281
  %283 = vdwg.mxu0
  %v284 = vadd.f32 %v282, %v151
  %v285 = vsel %vm126, %v284, -inf
  %286 = vmax.xlane.f32.xlu0 %v285
  %v287 = vpop.xlane.xlu0 %286
  %v288 = vsub.f32 %v284, %v287
  %v289 = vmul.f32 %v288, 1.442695
  %v290 = vpow.pop %v289
  %v291 = vsel %vm126, %v290, 0.0
  %292 = vadd.xlane.f32.xlu0 %v291
  %v293 = vpop.xlane.xlu0 %292
  %v294 = vrcp.pop %v293
  %v295 = vmul.f32 %v290, %v294
  %296 = vrot.lane.b32.xlu0 %v118, 48
  %v297 = vpop.permute.xlu0 %296
  %v300 = vsel %vm126, %v295, 0
  %302 = vmatpush.msra.mxu0 0.0
  %303 = vmatpush.msra.mxu0 0.0
  %304 = vmatpush.msra.mxu0 0.0
  %305 = vmatpush.msra.mxu0 0.0
  %306 = vmatpush.msra.mxu0 0.0
  %307 = vmatpush.msra.mxu0 0.0
  %308 = vmatpush.msra.mxu0 0.0
  %309 = vmatpush.msra.mxu0 0.0
  %310 = vmatpush.msra.mxu0 0.0
  %311 = vmatpush.msra.mxu0 0.0
  %312 = vmatpush.msra.mxu0 0.0
  %313 = vmatpush.msra.mxu0 0.0
  %314 = vmatpush.msra.mxu0 0.0
  %315 = vmatpush.msra.mxu0 0.0
  %316 = vmatpush.msra.mxu0 0.0
  %317 = vmatpush.msra.mxu0 %v297
  %318 = vmatmul.f32.gmra.mxu0 %v300
  %v319 = vpop.f32.mrf.mxu0
  %v320 = vadd.f32 0.0, %v319
  %321 = vdwg.mxu0
  %322 = vrot.lane.b32.xlu0 %v118, 104
  %v323 = vpop.permute.xlu0 %322
  %324 = vrot.lane.b32.xlu0 %v118, 72
  %v325 = vpop.permute.xlu0 %324
  %v326 = vsel %vm126, %v323, 0
  %v328 = vsel %vm126, %v325, 0
  %330 = vmatpush.xpose.msra.mxu0 0.0
  %331 = vmatpush.xpose.msra.mxu0 0.0
  %332 = vmatpush.xpose.msra.mxu0 0.0
  %333 = vmatpush.xpose.msra.mxu0 0.0
  %334 = vmatpush.xpose.msra.mxu0 0.0
  %335 = vmatpush.xpose.msra.mxu0 0.0
  %336 = vmatpush.xpose.msra.mxu0 0.0
  %337 = vmatpush.xpose.msra.mxu0 0.0
  %338 = vmatpush.xpose.msra.mxu0 0.0
  %339 = vmatpush.xpose.msra.mxu0 0.0
  %340 = vmatpush.xpose.msra.mxu0 0.0
  %341 = vmatpush.xpose.msra.mxu0 0.0
  %342 = vmatpush.xpose.msra.mxu0 0.0
  %343 = vmatpush.xpose.msra.mxu0 0.0
  %344 = vmatpush.xpose.msra.mxu0 0.0
  %345 = vmatpush.xpose.msra.mxu0 %v328
  %346 = vmatmul.f32.gmra.mxu0 %v326
  %v347 = vpop.f32.mrf.mxu0
  %v348 = vadd.f32 %v40, %v347
  %349 = vdwg.mxu0
  %v350 = vadd.f32 %v348, %v151
  %v351 = vsel %vm126, %v350, -inf
  %352 = vmax.xlane.f32.xlu0 %v351
  %v353 = vpop.xlane.xlu0 %352
  %v354 = vsub.f32 %v350, %v353
  %v355 = vmul.f32 %v354, 1.442695
  %v356 = vpow.pop %v355
  %v357 = vsel %vm126, %v356, 0.0
  %358 = vadd.xlane.f32.xlu0 %v357
  %v359 = vpop.xlane.xlu0 %358
  %v360 = vrcp.pop %v359
  %v361 = vmul.f32 %v356, %v360
  %362 = vrot.lane.b32.xlu0 %v118, 40
  %v363 = vpop.permute.xlu0 %362
  %v366 = vsel %vm126, %v361, 0
  %368 = vmatpush.msra.mxu0 0.0
  %369 = vmatpush.msra.mxu0 0.0
  %370 = vmatpush.msra.mxu0 0.0
  %371 = vmatpush.msra.mxu0 0.0
  %372 = vmatpush.msra.mxu0 0.0
  %373 = vmatpush.msra.mxu0 0.0
  %374 = vmatpush.msra.mxu0 0.0
  %375 = vmatpush.msra.mxu0 0.0
  %376 = vmatpush.msra.mxu0 0.0
  %377 = vmatpush.msra.mxu0 0.0
  %378 = vmatpush.msra.mxu0 0.0
  %379 = vmatpush.msra.mxu0 0.0
  %380 = vmatpush.msra.mxu0 0.0
  %381 = vmatpush.msra.mxu0 0.0
  %382 = vmatpush.msra.mxu0 0.0
  %383 = vmatpush.msra.mxu0 %v363
  %384 = vmatmul.f32.gmra.mxu0 %v366
  %v385 = vpop.f32.mrf.mxu0
  %v386 = vadd.f32 0.0, %v385
  %387 = vdwg.mxu0
  %389 = vrot.lane.b32.xlu0 %v254, 8
  %v390 = vpop.permute.xlu0 %389
  %393 = vrot.lane.b32.xlu0 %v320, 16
  %v394 = vpop.permute.xlu0 %393
  %397 = vrot.lane.b32.xlu0 %v386, 24
  %v398 = vpop.permute.xlu0 %397
  %v400 = vsel %vm126, %v188, %v390
  %vm401 = vcmask 130048
  %v402 = vsel %vm401, %v400, %v394
  %vm403 = vcmask 195584
  %v404 = vsel %vm403, %v402, %v398
  %406 = vrot.lane.b32.xlu0 %v121, 96
  %v407 = vpop.permute.xlu0 %406
  %v408 = vsel %vm126, %v121, 0
  %v410 = vsel %vm126, %v407, 0
  %412 = vmatpush.xpose.msra.mxu0 0.0
  %413 = vmatpush.xpose.msra.mxu0 0.0
  %414 = vmatpush.xpose.msra.mxu0 0.0
  %415 = vmatpush.xpose.msra.mxu0 0.0
  %416 = vmatpush.xpose.msra.mxu0 0.0
  %417 = vmatpush.xpose.msra.mxu0 0.0
  %418 = vmatpush.xpose.msra.mxu0 0.0
  %419 = vmatpush.xpose.msra.mxu0 0.0
  %420 = vmatpush.xpose.msra.mxu0 0.0
  %421 = vmatpush.xpose.msra.mxu0 0.0
  %422 = vmatpush.xpose.msra.mxu0 0.0
  %423 = vmatpush.xpose.msra.mxu0 0.0
  %424 = vmatpush.xpose.msra.mxu0 0.0
  %425 = vmatpush.xpose.msra.mxu0 0.0
  %426 = vmatpush.xpose.msra.mxu0 0.0
  %427 = vmatpush.xpose.msra.mxu0 %v410
  %428 = vmatmul.f32.gmra.mxu0 %v408
  %v429 = vpop.f32.mrf.mxu0
  %v430 = vadd.f32 %v37, %v429
  %431 = vdwg.mxu0
  %v432 = vperm.slane %v41, 1
  %v433 = vadd.f32 %v430, %v432
  %v434 = vsel %vm126, %v433, -inf
  %435 = vmax.xlane.f32.xlu0 %v434
  %v436 = vpop.xlane.xlu0 %435
  %v437 = vsub.f32 %v433, %v436
  %v438 = vmul.f32 %v437, 1.442695
  %v439 = vpow.pop %v438
  %v440 = vsel %vm126, %v439, 0.0
  %441 = vadd.xlane.f32.xlu0 %v440
  %v442 = vpop.xlane.xlu0 %441
  %v443 = vrcp.pop %v442
  %v444 = vmul.f32 %v439, %v443
  %445 = vrot.lane.b32.xlu0 %v121, 64
  %v446 = vpop.permute.xlu0 %445
  %v449 = vsel %vm126, %v444, 0
  %451 = vmatpush.msra.mxu0 0.0
  %452 = vmatpush.msra.mxu0 0.0
  %453 = vmatpush.msra.mxu0 0.0
  %454 = vmatpush.msra.mxu0 0.0
  %455 = vmatpush.msra.mxu0 0.0
  %456 = vmatpush.msra.mxu0 0.0
  %457 = vmatpush.msra.mxu0 0.0
  %458 = vmatpush.msra.mxu0 0.0
  %459 = vmatpush.msra.mxu0 0.0
  %460 = vmatpush.msra.mxu0 0.0
  %461 = vmatpush.msra.mxu0 0.0
  %462 = vmatpush.msra.mxu0 0.0
  %463 = vmatpush.msra.mxu0 0.0
  %464 = vmatpush.msra.mxu0 0.0
  %465 = vmatpush.msra.mxu0 0.0
  %466 = vmatpush.msra.mxu0 %v446
  %467 = vmatmul.f32.gmra.mxu0 %v449
  %v468 = vpop.f32.mrf.mxu0
  %v469 = vadd.f32 0.0, %v468
  %470 = vdwg.mxu0
  %471 = vrot.lane.b32.xlu0 %v121, 120
  %v472 = vpop.permute.xlu0 %471
  %473 = vrot.lane.b32.xlu0 %v121, 88
  %v474 = vpop.permute.xlu0 %473
  %v475 = vsel %vm126, %v472, 0
  %v477 = vsel %vm126, %v474, 0
  %479 = vmatpush.xpose.msra.mxu0 0.0
  %480 = vmatpush.xpose.msra.mxu0 0.0
  %481 = vmatpush.xpose.msra.mxu0 0.0
  %482 = vmatpush.xpose.msra.mxu0 0.0
  %483 = vmatpush.xpose.msra.mxu0 0.0
  %484 = vmatpush.xpose.msra.mxu0 0.0
  %485 = vmatpush.xpose.msra.mxu0 0.0
  %486 = vmatpush.xpose.msra.mxu0 0.0
  %487 = vmatpush.xpose.msra.mxu0 0.0
  %488 = vmatpush.xpose.msra.mxu0 0.0
  %489 = vmatpush.xpose.msra.mxu0 0.0
  %490 = vmatpush.xpose.msra.mxu0 0.0
  %491 = vmatpush.xpose.msra.mxu0 0.0
  %492 = vmatpush.xpose.msra.mxu0 0.0
  %493 = vmatpush.xpose.msra.mxu0 0.0
  %494 = vmatpush.xpose.msra.mxu0 %v477
  %495 = vmatmul.f32.gmra.mxu0 %v475
  %v496 = vpop.f32.mrf.mxu0
  %v497 = vadd.f32 %v38, %v496
  %498 = vdwg.mxu0
  %v499 = vadd.f32 %v497, %v432
  %v500 = vsel %vm126, %v499, -inf
  %501 = vmax.xlane.f32.xlu0 %v500
  %v502 = vpop.xlane.xlu0 %501
  %v503 = vsub.f32 %v499, %v502
  %v504 = vmul.f32 %v503, 1.442695
  %v505 = vpow.pop %v504
  %v506 = vsel %vm126, %v505, 0.0
  %507 = vadd.xlane.f32.xlu0 %v506
  %v508 = vpop.xlane.xlu0 %507
  %v509 = vrcp.pop %v508
  %v510 = vmul.f32 %v505, %v509
  %511 = vrot.lane.b32.xlu0 %v121, 56
  %v512 = vpop.permute.xlu0 %511
  %v515 = vsel %vm126, %v510, 0
  %517 = vmatpush.msra.mxu0 0.0
  %518 = vmatpush.msra.mxu0 0.0
  %519 = vmatpush.msra.mxu0 0.0
  %520 = vmatpush.msra.mxu0 0.0
  %521 = vmatpush.msra.mxu0 0.0
  %522 = vmatpush.msra.mxu0 0.0
  %523 = vmatpush.msra.mxu0 0.0
  %524 = vmatpush.msra.mxu0 0.0
  %525 = vmatpush.msra.mxu0 0.0
  %526 = vmatpush.msra.mxu0 0.0
  %527 = vmatpush.msra.mxu0 0.0
  %528 = vmatpush.msra.mxu0 0.0
  %529 = vmatpush.msra.mxu0 0.0
  %530 = vmatpush.msra.mxu0 0.0
  %531 = vmatpush.msra.mxu0 0.0
  %532 = vmatpush.msra.mxu0 %v512
  %533 = vmatmul.f32.gmra.mxu0 %v515
  %v534 = vpop.f32.mrf.mxu0
  %v535 = vadd.f32 0.0, %v534
  %536 = vdwg.mxu0
  %537 = vrot.lane.b32.xlu0 %v121, 112
  %v538 = vpop.permute.xlu0 %537
  %539 = vrot.lane.b32.xlu0 %v121, 80
  %v540 = vpop.permute.xlu0 %539
  %v541 = vsel %vm126, %v538, 0
  %v543 = vsel %vm126, %v540, 0
  %545 = vmatpush.xpose.msra.mxu0 0.0
  %546 = vmatpush.xpose.msra.mxu0 0.0
  %547 = vmatpush.xpose.msra.mxu0 0.0
  %548 = vmatpush.xpose.msra.mxu0 0.0
  %549 = vmatpush.xpose.msra.mxu0 0.0
  %550 = vmatpush.xpose.msra.mxu0 0.0
  %551 = vmatpush.xpose.msra.mxu0 0.0
  %552 = vmatpush.xpose.msra.mxu0 0.0
  %553 = vmatpush.xpose.msra.mxu0 0.0
  %554 = vmatpush.xpose.msra.mxu0 0.0
  %555 = vmatpush.xpose.msra.mxu0 0.0
  %556 = vmatpush.xpose.msra.mxu0 0.0
  %557 = vmatpush.xpose.msra.mxu0 0.0
  %558 = vmatpush.xpose.msra.mxu0 0.0
  %559 = vmatpush.xpose.msra.mxu0 0.0
  %560 = vmatpush.xpose.msra.mxu0 %v543
  %561 = vmatmul.f32.gmra.mxu0 %v541
  %v562 = vpop.f32.mrf.mxu0
  %v563 = vadd.f32 %v39, %v562
  %564 = vdwg.mxu0
  %v565 = vadd.f32 %v563, %v432
  %v566 = vsel %vm126, %v565, -inf
  %567 = vmax.xlane.f32.xlu0 %v566
  %v568 = vpop.xlane.xlu0 %567
  %v569 = vsub.f32 %v565, %v568
  %v570 = vmul.f32 %v569, 1.442695
  %v571 = vpow.pop %v570
  %v572 = vsel %vm126, %v571, 0.0
  %573 = vadd.xlane.f32.xlu0 %v572
  %v574 = vpop.xlane.xlu0 %573
  %v575 = vrcp.pop %v574
  %v576 = vmul.f32 %v571, %v575
  %577 = vrot.lane.b32.xlu0 %v121, 48
  %v578 = vpop.permute.xlu0 %577
  %v581 = vsel %vm126, %v576, 0
  %583 = vmatpush.msra.mxu0 0.0
  %584 = vmatpush.msra.mxu0 0.0
  %585 = vmatpush.msra.mxu0 0.0
  %586 = vmatpush.msra.mxu0 0.0
  %587 = vmatpush.msra.mxu0 0.0
  %588 = vmatpush.msra.mxu0 0.0
  %589 = vmatpush.msra.mxu0 0.0
  %590 = vmatpush.msra.mxu0 0.0
  %591 = vmatpush.msra.mxu0 0.0
  %592 = vmatpush.msra.mxu0 0.0
  %593 = vmatpush.msra.mxu0 0.0
  %594 = vmatpush.msra.mxu0 0.0
  %595 = vmatpush.msra.mxu0 0.0
  %596 = vmatpush.msra.mxu0 0.0
  %597 = vmatpush.msra.mxu0 0.0
  %598 = vmatpush.msra.mxu0 %v578
  %599 = vmatmul.f32.gmra.mxu0 %v581
  %v600 = vpop.f32.mrf.mxu0
  %v601 = vadd.f32 0.0, %v600
  %602 = vdwg.mxu0
  %603 = vrot.lane.b32.xlu0 %v121, 104
  %v604 = vpop.permute.xlu0 %603
  %605 = vrot.lane.b32.xlu0 %v121, 72
  %v606 = vpop.permute.xlu0 %605
  %v607 = vsel %vm126, %v604, 0
  %v609 = vsel %vm126, %v606, 0
  %611 = vmatpush.xpose.msra.mxu0 0.0
  %612 = vmatpush.xpose.msra.mxu0 0.0
  %613 = vmatpush.xpose.msra.mxu0 0.0
  %614 = vmatpush.xpose.msra.mxu0 0.0
  %615 = vmatpush.xpose.msra.mxu0 0.0
  %616 = vmatpush.xpose.msra.mxu0 0.0
  %617 = vmatpush.xpose.msra.mxu0 0.0
  %618 = vmatpush.xpose.msra.mxu0 0.0
  %619 = vmatpush.xpose.msra.mxu0 0.0
  %620 = vmatpush.xpose.msra.mxu0 0.0
  %621 = vmatpush.xpose.msra.mxu0 0.0
  %622 = vmatpush.xpose.msra.mxu0 0.0
  %623 = vmatpush.xpose.msra.mxu0 0.0
  %624 = vmatpush.xpose.msra.mxu0 0.0
  %625 = vmatpush.xpose.msra.mxu0 0.0
  %626 = vmatpush.xpose.msra.mxu0 %v609
  %627 = vmatmul.f32.gmra.mxu0 %v607
  %v628 = vpop.f32.mrf.mxu0
  %v629 = vadd.f32 %v40, %v628
  %630 = vdwg.mxu0
  %v631 = vadd.f32 %v629, %v432
  %v632 = vsel %vm126, %v631, -inf
  %633 = vmax.xlane.f32.xlu0 %v632
  %v634 = vpop.xlane.xlu0 %633
  %v635 = vsub.f32 %v631, %v634
  %v636 = vmul.f32 %v635, 1.442695
  %v637 = vpow.pop %v636
  %v638 = vsel %vm126, %v637, 0.0
  %639 = vadd.xlane.f32.xlu0 %v638
  %v640 = vpop.xlane.xlu0 %639
  %v641 = vrcp.pop %v640
  %v642 = vmul.f32 %v637, %v641
  %643 = vrot.lane.b32.xlu0 %v121, 40
  %v644 = vpop.permute.xlu0 %643
  %v647 = vsel %vm126, %v642, 0
  %649 = vmatpush.msra.mxu0 0.0
  %650 = vmatpush.msra.mxu0 0.0
  %651 = vmatpush.msra.mxu0 0.0
  %652 = vmatpush.msra.mxu0 0.0
  %653 = vmatpush.msra.mxu0 0.0
  %654 = vmatpush.msra.mxu0 0.0
  %655 = vmatpush.msra.mxu0 0.0
  %656 = vmatpush.msra.mxu0 0.0
  %657 = vmatpush.msra.mxu0 0.0
  %658 = vmatpush.msra.mxu0 0.0
  %659 = vmatpush.msra.mxu0 0.0
  %660 = vmatpush.msra.mxu0 0.0
  %661 = vmatpush.msra.mxu0 0.0
  %662 = vmatpush.msra.mxu0 0.0
  %663 = vmatpush.msra.mxu0 0.0
  %664 = vmatpush.msra.mxu0 %v644
  %665 = vmatmul.f32.gmra.mxu0 %v647
  %v666 = vpop.f32.mrf.mxu0
  %v667 = vadd.f32 0.0, %v666
  %668 = vdwg.mxu0
  %670 = vrot.lane.b32.xlu0 %v535, 8
  %v671 = vpop.permute.xlu0 %670
  %674 = vrot.lane.b32.xlu0 %v601, 16
  %v675 = vpop.permute.xlu0 %674
  %678 = vrot.lane.b32.xlu0 %v667, 24
  %v679 = vpop.permute.xlu0 %678
  %v681 = vsel %vm126, %v469, %v671
  %v682 = vsel %vm401, %v681, %v675
  %v683 = vsel %vm403, %v682, %v679
  %v684 = vld [vmem:[%s3] sm:$0xff]
  %v685 = vld [vmem:[%s3 + $0x8] sm:$0xff]
  %v686 = vld [vmem:[%s3 + $0x10] sm:$0xff]
  %v687 = vld [vmem:[%s3 + $0x18] sm:$0xff]
  %v689 = vsel %vm45, %v404, 0
  %v692 = vsel %vm45, %v683, 0
  %694 = vmatpush.msra.mxu0 0.0
  %695 = vmatpush.msra.mxu0 0.0
  %696 = vmatpush.msra.mxu0 0.0
  %697 = vmatpush.msra.mxu0 0.0
  %698 = vmatpush.msra.mxu0 0.0
  %699 = vmatpush.msra.mxu0 0.0
  %700 = vmatpush.msra.mxu0 0.0
  %701 = vmatpush.msra.mxu0 0.0
  %702 = vmatpush.msra.mxu0 0.0
  %703 = vmatpush.msra.mxu0 0.0
  %704 = vmatpush.msra.mxu0 0.0
  %705 = vmatpush.msra.mxu0 0.0
  %706 = vmatpush.msra.mxu0 %v687
  %707 = vmatpush.msra.mxu0 %v686
  %708 = vmatpush.msra.mxu0 %v685
  %709 = vmatpush.msra.mxu0 %v684
  %710 = vmatmul.f32.gmra.mxu0 %v689
  %v711 = vpop.f32.mrf.mxu0
  %v712 = vadd.f32 0.0, %v711
  %713 = vmatmul.f32.gmra.mxu0 %v692
  %v714 = vpop.f32.mrf.mxu0
  %v715 = vadd.f32 0.0, %v714
  %716 = vdwg.mxu0
  %v717 = vadd.f32 %v35, %v712
  %v718 = vadd.f32 %v36, %v715
  %v719 = vld [vmem:[%s4] sm:$0x1]
  %v720 = vmul.f32 %v717, %v717
  %v721 = vmul.f32 %v718, %v718
  %v722 = vsel %vm45, %v720, 0.0
  %723 = vadd.xlane.f32.xlu0 %v722
  %v724 = vpop.xlane.xlu0 %723
  %v725 = vsel %vm45, %v721, 0.0
  %726 = vadd.xlane.f32.xlu0 %v725
  %v727 = vpop.xlane.xlu0 %726
  %v728 = vmul.f32 %v724, %v58
  %v729 = vmul.f32 %v727, %v58
  %v730 = vadd.f32 %v728, 1e-06
  %v731 = vadd.f32 %v729, 1e-06
  %v732 = vrsqrt.pop %v730
  %v733 = vmul.f32 %v732, %v730
  %v734 = vmul.f32 %v733, %v732
  %v735 = vmul.f32 0.5, %v734
  %v736 = vsub.f32 1.5, %v735
  %v737 = vmul.f32 %v732, %v736
  %vm738 = vweird.f32 %v730
  %vm739 = vweird.f32 %v732
  %vm740 = vmor %vm738, %vm739
  %v741 = vsel %vm740, %v732, %v737
  %v742 = vrsqrt.pop %v731
  %v743 = vmul.f32 %v742, %v731
  %v744 = vmul.f32 %v743, %v742
  %v745 = vmul.f32 0.5, %v744
  %v746 = vsub.f32 1.5, %v745
  %v747 = vmul.f32 %v742, %v746
  %vm748 = vweird.f32 %v731
  %vm749 = vweird.f32 %v742
  %vm750 = vmor %vm748, %vm749
  %v751 = vsel %vm750, %v742, %v747
  %v752 = vmul.f32 %v717, %v741
  %v753 = vmul.f32 %v718, %v751
  %v755 = vperm.slane %v719, 0
  %v757 = vmul.f32 %v752, %v755
  %v758 = vmul.f32 %v753, %v755
  %v759 = vld [vmem:[%s5] sm:$0xff]
  %v760 = vld [vmem:[%s5 + $0x8] sm:$0xff]
  %v761 = vld [vmem:[%s5 + $0x10] sm:$0xff]
  %v762 = vld [vmem:[%s5 + $0x18] sm:$0xff]
  %v764 = vsel %vm45, %v757, 0
  %v767 = vsel %vm45, %v758, 0
  %769 = vmatpush.msra.mxu0 0.0
  %770 = vmatpush.msra.mxu0 0.0
  %771 = vmatpush.msra.mxu0 0.0
  %772 = vmatpush.msra.mxu0 0.0
  %773 = vmatpush.msra.mxu0 0.0
  %774 = vmatpush.msra.mxu0 0.0
  %775 = vmatpush.msra.mxu0 0.0
  %776 = vmatpush.msra.mxu0 0.0
  %777 = vmatpush.msra.mxu0 0.0
  %778 = vmatpush.msra.mxu0 0.0
  %779 = vmatpush.msra.mxu0 0.0
  %780 = vmatpush.msra.mxu0 0.0
  %781 = vmatpush.msra.mxu0 %v762
  %782 = vmatpush.msra.mxu0 %v761
  %783 = vmatpush.msra.mxu0 %v760
  %784 = vmatpush.msra.mxu0 %v759
  %785 = vmatmul.f32.gmra.mxu0 %v764
  %v786 = vpop.f32.mrf.mxu0
  %v787 = vadd.f32 0.0, %v786
  %788 = vmatmul.f32.gmra.mxu0 %v767
  %v789 = vpop.f32.mrf.mxu0
  %v790 = vadd.f32 0.0, %v789
  %791 = vdwg.mxu0
  %v792 = vmax.f32 %v787, 0.0
  %v793 = vmax.f32 %v790, 0.0
  %v794 = vld [vmem:[%s6] sm:$0xff]
  %v795 = vld [vmem:[%s6 + $0x8] sm:$0xff]
  %v796 = vld [vmem:[%s6 + $0x10] sm:$0xff]
  %v797 = vld [vmem:[%s6 + $0x18] sm:$0xff]
  %v798 = vld [vmem:[%s6 + $0x20] sm:$0xff]
  %v799 = vld [vmem:[%s6 + $0x28] sm:$0xff]
  %v800 = vld [vmem:[%s6 + $0x30] sm:$0xff]
  %v801 = vld [vmem:[%s6 + $0x38] sm:$0xff]
  %vm802 = vcmask 523264
  %v804 = vsel %vm802, %v792, 0
  %v807 = vsel %vm802, %v793, 0
  %809 = vmatpush.msra.mxu0 0.0
  %810 = vmatpush.msra.mxu0 0.0
  %811 = vmatpush.msra.mxu0 0.0
  %812 = vmatpush.msra.mxu0 0.0
  %813 = vmatpush.msra.mxu0 0.0
  %814 = vmatpush.msra.mxu0 0.0
  %815 = vmatpush.msra.mxu0 0.0
  %816 = vmatpush.msra.mxu0 0.0
  %817 = vmatpush.msra.mxu0 %v801
  %818 = vmatpush.msra.mxu0 %v800
  %819 = vmatpush.msra.mxu0 %v799
  %820 = vmatpush.msra.mxu0 %v798
  %821 = vmatpush.msra.mxu0 %v797
  %822 = vmatpush.msra.mxu0 %v796
  %823 = vmatpush.msra.mxu0 %v795
  %824 = vmatpush.msra.mxu0 %v794
  %825 = vmatmul.f32.gmra.mxu0 %v804
  %v826 = vpop.f32.mrf.mxu0
  %v827 = vadd.f32 0.0, %v826
  %828 = vmatmul.f32.gmra.mxu0 %v807
  %v829 = vpop.f32.mrf.mxu0
  %v830 = vadd.f32 0.0, %v829
  %831 = vdwg.mxu0
  %v832 = vadd.f32 %v717, %v827
  %v833 = vadd.f32 %v718, %v830
  %834 = vst.msk [vmem:[%s10] sm:$0xff] %vm45, %v832
  %835 = vst.msk [vmem:[%s10 + $0x8] sm:$0xff] %vm45, %v833
  // Predicated region
  $region42: #{t5_forward_loss.5} parent=0 // pred_check
    _
  $region43: #{t5_forward_loss.5} parent=0 // pred_check_branch
    %837 = sbr.rel (0) target = $region45
  $region44: #{t5_forward_loss.5} parent=0 // pred_region
    _
  $region45: #{t5_forward_loss.5} parent=0 // pred_fallthru
    _
  // Predicated region
  $region46: #{t5_forward_loss.5} parent=0 // pred_check
    _
  $region47: #{t5_forward_loss.5} parent=0 // pred_check_branch
    %839 = sbr.rel (0) target = $region49
  $region48: #{t5_forward_loss.5} parent=0 // pred_region
    _
  $region49: #{t5_forward_loss.5} parent=0 // pred_fallthru
    _

// kernel: t5_forward_loss.6
$region0: #{t5_forward_loss.6}
  #allocation0 [shape = 'u32[]', space=smem, size = 0x4, offset = 0x4, fixed_abs, tag = 'smem constant byte address 0x4 - core index']
  #allocation1 [shape = 'u32[72,128]{1,0:T(1,128)}', space=vmem, size = 0x9000, scoped, tag = 'internal scratch']
  %s0 = inlined_call_operand.vmem [shape: f32[16,32], index: 0, kind: input, shape index: {}]
  %s1 = inlined_call_operand.vmem [shape: f32[1,32], index: 1, kind: input, shape index: {}]
  %s2 = inlined_call_operand.vmem [shape: f32[32,96], index: 2, kind: input, shape index: {}]
  %s3 = inlined_call_operand.vmem [shape: f32[32,32], index: 3, kind: input, shape index: {}]
  %s4 = inlined_call_operand.vmem [shape: f32[1,32], index: 4, kind: input, shape index: {}]
  %s5 = inlined_call_operand.vmem [shape: f32[32,64], index: 5, kind: input, shape index: {}]
  %s6 = inlined_call_operand.vmem [shape: f32[64,32], index: 6, kind: input, shape index: {}]
  %s7 = inlined_call_operand.vmem [shape: f32[4,8,8], index: 7, kind: input, shape index: {}]
  %s8 = inlined_call_operand.vmem [shape: f32[2,8], index: 8, kind: input, shape index: {}]
  %s9 = inlined_call_operand.vmem [shape: f32[1,32], index: 9, kind: input, shape index: {}]
  %s10 = inlined_call_operand.vmem [shape: f32[16,32], index: 10, kind: output, shape index: {}]
  %s11 = sld [smem:[#allocation0]]
  $region50: #{t5_forward_loss.6} parent=0
    _
  %s13 = ssub.s32 1, %s11
  %s14 = scalar_select 0, %s13, %s11
  // Predicated region
  $region2: #{t5_forward_loss.6} parent=0 // pred_check
    _
  $region3: #{t5_forward_loss.6} parent=0 // pred_check_branch
    %16 = sbr.rel (0) target = $region5
  $region4: #{t5_forward_loss.6} parent=0 // pred_region
    _
  $region5: #{t5_forward_loss.6} parent=0 // pred_fallthru
    _
  // Predicated region
  $region6: #{t5_forward_loss.6} parent=0 // pred_check
    _
  $region7: #{t5_forward_loss.6} parent=0 // pred_check_branch
    %18 = sbr.rel (0) target = $region9
  $region8: #{t5_forward_loss.6} parent=0 // pred_region
    _
  $region9: #{t5_forward_loss.6} parent=0 // pred_fallthru
    _
  // Predicated region
  $region10: #{t5_forward_loss.6} parent=0 // pred_check
    _
  $region11: #{t5_forward_loss.6} parent=0 // pred_check_branch
    %20 = sbr.rel (0) target = $region13
  $region12: #{t5_forward_loss.6} parent=0 // pred_region
    _
  $region13: #{t5_forward_loss.6} parent=0 // pred_fallthru
    _
  // Predicated region
  $region14: #{t5_forward_loss.6} parent=0 // pred_check
    _
  $region15: #{t5_forward_loss.6} parent=0 // pred_check_branch
    %22 = sbr.rel (0) target = $region17
  $region16: #{t5_forward_loss.6} parent=0 // pred_region
    _
  $region17: #{t5_forward_loss.6} parent=0 // pred_fallthru
    _
  // Predicated region
  $region18: #{t5_forward_loss.6} parent=0 // pred_check
    _
  $region19: #{t5_forward_loss.6} parent=0 // pred_check_branch
    %24 = sbr.rel (0) target = $region21
  $region20: #{t5_forward_loss.6} parent=0 // pred_region
    _
  $region21: #{t5_forward_loss.6} parent=0 // pred_fallthru
    _
  // Predicated region
  $region22: #{t5_forward_loss.6} parent=0 // pred_check
    _
  $region23: #{t5_forward_loss.6} parent=0 // pred_check_branch
    %26 = sbr.rel (0) target = $region25
  $region24: #{t5_forward_loss.6} parent=0 // pred_region
    _
  $region25: #{t5_forward_loss.6} parent=0 // pred_fallthru
    _
  // Predicated region
  $region26: #{t5_forward_loss.6} parent=0 // pred_check
    _
  $region27: #{t5_forward_loss.6} parent=0 // pred_check_branch
    %28 = sbr.rel (0) target = $region29
  $region28: #{t5_forward_loss.6} parent=0 // pred_region
    _
  $region29: #{t5_forward_loss.6} parent=0 // pred_fallthru
    _
  // Predicated region
  $region30: #{t5_forward_loss.6} parent=0 // pred_check
    _
  $region31: #{t5_forward_loss.6} parent=0 // pred_check_branch
    %30 = sbr.rel (0) target = $region33
  $region32: #{t5_forward_loss.6} parent=0 // pred_region
    _
  $region33: #{t5_forward_loss.6} parent=0 // pred_fallthru
    _
  // Predicated region
  $region34: #{t5_forward_loss.6} parent=0 // pred_check
    _
  $region35: #{t5_forward_loss.6} parent=0 // pred_check_branch
    %32 = sbr.rel (0) target = $region37
  $region36: #{t5_forward_loss.6} parent=0 // pred_region
    _
  $region37: #{t5_forward_loss.6} parent=0 // pred_fallthru
    _
  // Predicated region
  $region38: #{t5_forward_loss.6} parent=0 // pred_check
    _
  $region39: #{t5_forward_loss.6} parent=0 // pred_check_branch
    %34 = sbr.rel (0) target = $region41
  $region40: #{t5_forward_loss.6} parent=0 // pred_region
    _
  $region41: #{t5_forward_loss.6} parent=0 // pred_fallthru
    _
  %v35 = vld [vmem:[%s0] sm:$0xff]
  %v36 = vld [vmem:[%s0 + $0x8] sm:$0xff]
  %v37 = vld [vmem:[%s7] sm:$0xff]
  %v38 = vld [vmem:[%s7 + $0x8] sm:$0xff]
  %v39 = vld [vmem:[%s7 + $0x10] sm:$0xff]
  %v40 = vld [vmem:[%s7 + $0x18] sm:$0xff]
  %v41 = vld [vmem:[%s8] sm:$0x3]
  %v42 = vld [vmem:[%s1] sm:$0x1]
  %v43 = vmul.f32 %v35, %v35
  %v44 = vmul.f32 %v36, %v36
  %vm45 = vcmask 261120
  %v46 = vsel %vm45, %v43, 0.0
  %47 = vadd.xlane.f32.xlu0 %v46
  %v48 = vpop.xlane.xlu0 %47
  %v49 = vsel %vm45, %v44, 0.0
  %50 = vadd.xlane.f32.xlu0 %v49
  %v51 = vpop.xlane.xlu0 %50
  %v52 = vrcp.pop 32.0
  %v53 = vmul.f32 32.0, %v52
  %v54 = vsub.f32 1.0, %v53
  %v55 = vmul.f32 %v52, %v54
  %v56 = vadd.f32 %v52, %v55
  %vm57 = vweird.f32 %v52
  %v58 = vsel %vm57, %v52, %v56
  %v59 = vmul.f32 %v48, %v58
  %v60 = vmul.f32 %v51, %v58
  %v61 = vadd.f32 %v59, 1e-06
  %v62 = vadd.f32 %v60, 1e-06
  %v63 = vrsqrt.pop %v61
  %v64 = vmul.f32 %v63, %v61
  %v65 = vmul.f32 %v64, %v63
  %v66 = vmul.f32 0.5, %v65
  %v67 = vsub.f32 1.5, %v66
  %v68 = vmul.f32 %v63, %v67
  %vm69 = vweird.f32 %v61
  %vm70 = vweird.f32 %v63
  %vm71 = vmor %vm69, %vm70
  %v72 = vsel %vm71, %v63, %v68
  %v73 = vrsqrt.pop %v62
  %v74 = vmul.f32 %v73, %v62
  %v75 = vmul.f32 %v74, %v73
  %v76 = vmul.f32 0.5, %v75
  %v77 = vsub.f32 1.5, %v76
  %v78 = vmul.f32 %v73, %v77
  %vm79 = vweird.f32 %v62
  %vm80 = vweird.f32 %v73
  %vm81 = vmor %vm79, %vm80
  %v82 = vsel %vm81, %v73, %v78
  %v83 = vmul.f32 %v35, %v72
  %v84 = vmul.f32 %v36, %v82
  %v86 = vperm.slane %v42, 0
  %v88 = vmul.f32 %v83, %v86
  %v89 = vmul.f32 %v84, %v86
  %v90 = vld [vmem:[%s2] sm:$0xff]
  %v91 = vld [vmem:[%s2 + $0x8] sm:$0xff]
  %v92 = vld [vmem:[%s2 + $0x10] sm:$0xff]
  %v93 = vld [vmem:[%s2 + $0x18] sm:$0xff]
  %v95 = vsel %vm45, %v88, 0
  %v98 = vsel %vm45, %v89, 0
  %100 = vmatpush.msra.mxu0 0.0
  %101 = vmatpush.msra.mxu0 0.0
  %102 = vmatpush.msra.mxu0 0.0
  %103 = vmatpush.msra.mxu0 0.0
  %104 = vmatpush.msra.mxu0 0.0
  %105 = vmatpush.msra.mxu0 0.0
  %106 = vmatpush.msra.mxu0 0.0
  %107 = vmatpush.msra.mxu0 0.0
  %108 = vmatpush.msra.mxu0 0.0
  %109 = vmatpush.msra.mxu0 0.0
  %110 = vmatpush.msra.mxu0 0.0
  %111 = vmatpush.msra.mxu0 0.0
  %112 = vmatpush.msra.mxu0 %v93
  %113 = vmatpush.msra.mxu0 %v92
  %114 = vmatpush.msra.mxu0 %v91
  %115 = vmatpush.msra.mxu0 %v90
  %116 = vmatmul.f32.gmra.mxu0 %v95
  %v117 = vpop.f32.mrf.mxu0
  %v118 = vadd.f32 0.0, %v117
  %119 = vmatmul.f32.gmra.mxu0 %v98
  %v120 = vpop.f32.mrf.mxu0
  %v121 = vadd.f32 0.0, %v120
  %122 = vdwg.mxu0
  %124 = vrot.lane.b32.xlu0 %v118, 96
  %v125 = vpop.permute.xlu0 %124
  %vm126 = vcmask 64512
  %v127 = vsel %vm126, %v118, 0
  %v129 = vsel %vm126, %v125, 0
  %131 = vmatpush.xpose.msra.mxu0 0.0
  %132 = vmatpush.xpose.msra.mxu0 0.0
  %133 = vmatpush.xpose.msra.mxu0 0.0
  %134 = vmatpush.xpose.msra.mxu0 0.0
  %135 = vmatpush.xpose.msra.mxu0 0.0
  %136 = vmatpush.xpose.msra.mxu0 0.0
  %137 = vmatpush.xpose.msra.mxu0 0.0
  %138 = vmatpush.xpose.msra.mxu0 0.0
  %139 = vmatpush.xpose.msra.mxu0 0.0
  %140 = vmatpush.xpose.msra.mxu0 0.0
  %141 = vmatpush.xpose.msra.mxu0 0.0
  %142 = vmatpush.xpose.msra.mxu0 0.0
  %143 = vmatpush.xpose.msra.mxu0 0.0
  %144 = vmatpush.xpose.msra.mxu0 0.0
  %145 = vmatpush.xpose.msra.mxu0 0.0
  %146 = vmatpush.xpose.msra.mxu0 %v129
  %147 = vmatmul.f32.gmra.mxu0 %v127
  %v148 = vpop.f32.mrf.mxu0
  %v149 = vadd.f32 %v37, %v148
  %150 = vdwg.mxu0
  %v151 = vperm.slane %v41, 0
  %v152 = vadd.f32 %v149, %v151
  %v153 = vsel %vm126, %v152, -inf
  %154 = vmax.xlane.f32.xlu0 %v153
  %v155 = vpop.xlane.xlu0 %154
  %v156 = vsub.f32 %v152, %v155
  %v157 = vmul.f32 %v156, 1.442695
  %v158 = vpow.pop %v157
  %v159 = vsel %vm126, %v158, 0.0
  %160 = vadd.xlane.f32.xlu0 %v159
  %v161 = vpop.xlane.xlu0 %160
  %v162 = vrcp.pop %v161
  %v163 = vmul.f32 %v158, %v162
  %164 = vrot.lane.b32.xlu0 %v118, 64
  %v165 = vpop.permute.xlu0 %164
  %v168 = vsel %vm126, %v163, 0
  %170 = vmatpush.msra.mxu0 0.0
  %171 = vmatpush.msra.mxu0 0.0
  %172 = vmatpush.msra.mxu0 0.0
  %173 = vmatpush.msra.mxu0 0.0
  %174 = vmatpush.msra.mxu0 0.0
  %175 = vmatpush.msra.mxu0 0.0
  %176 = vmatpush.msra.mxu0 0.0
  %177 = vmatpush.msra.mxu0 0.0
  %178 = vmatpush.msra.mxu0 0.0
  %179 = vmatpush.msra.mxu0 0.0
  %180 = vmatpush.msra.mxu0 0.0
  %181 = vmatpush.msra.mxu0 0.0
  %182 = vmatpush.msra.mxu0 0.0
  %183 = vmatpush.msra.mxu0 0.0
  %184 = vmatpush.msra.mxu0 0.0
  %185 = vmatpush.msra.mxu0 %v165
  %186 = vmatmul.f32.gmra.mxu0 %v168
  %v187 = vpop.f32.mrf.mxu0
  %v188 = vadd.f32 0.0, %v187
  %189 = vdwg.mxu0
  %190 = vrot.lane.b32.xlu0 %v118, 120
  %v191 = vpop.permute.xlu0 %190
  %192 = vrot.lane.b32.xlu0 %v118, 88
  %v193 = vpop.permute.xlu0 %192
  %v194 = vsel %vm126, %v191, 0
  %v196 = vsel %vm126, %v193, 0
  %198 = vmatpush.xpose.msra.mxu0 0.0
  %199 = vmatpush.xpose.msra.mxu0 0.0
  %200 = vmatpush.xpose.msra.mxu0 0.0
  %201 = vmatpush.xpose.msra.mxu0 0.0
  %202 = vmatpush.xpose.msra.mxu0 0.0
  %203 = vmatpush.xpose.msra.mxu0 0.0
  %204 = vmatpush.xpose.msra.mxu0 0.0
  %205 = vmatpush.xpose.msra.mxu0 0.0
  %206 = vmatpush.xpose.msra.mxu0 0.0
  %207 = vmatpush.xpose.msra.mxu0 0.0
  %208 = vmatpush.xpose.msra.mxu0 0.0
  %209 = vmatpush.xpose.msra.mxu0 0.0
  %210 = vmatpush.xpose.msra.mxu0 0.0
  %211 = vmatpush.xpose.msra.mxu0 0.0
  %212 = vmatpush.xpose.msra.mxu0 0.0
  %213 = vmatpush.xpose.msra.mxu0 %v196
  %214 = vmatmul.f32.gmra.mxu0 %v194
  %v215 = vpop.f32.mrf.mxu0
  %v216 = vadd.f32 %v38, %v215
  %217 = vdwg.mxu0
  %v218 = vadd.f32 %v216, %v151
  %v219 = vsel %vm126, %v218, -inf
  %220 = vmax.xlane.f32.xlu0 %v219
  %v221 = vpop.xlane.xlu0 %220
  %v222 = vsub.f32 %v218, %v221
  %v223 = vmul.f32 %v222, 1.442695
  %v224 = vpow.pop %v223
  %v225 = vsel %vm126, %v224, 0.0
  %226 = vadd.xlane.f32.xlu0 %v225
  %v227 = vpop.xlane.xlu0 %226
  %v228 = vrcp.pop %v227
  %v229 = vmul.f32 %v224, %v228
  %230 = vrot.lane.b32.xlu0 %v118, 56
  %v231 = vpop.permute.xlu0 %230
  %v234 = vsel %vm126, %v229, 0
  %236 = vmatpush.msra.mxu0 0.0
  %237 = vmatpush.msra.mxu0 0.0
  %238 = vmatpush.msra.mxu0 0.0
  %239 = vmatpush.msra.mxu0 0.0
  %240 = vmatpush.msra.mxu0 0.0
  %241 = vmatpush.msra.mxu0 0.0
  %242 = vmatpush.msra.mxu0 0.0
  %243 = vmatpush.msra.mxu0 0.0
  %244 = vmatpush.msra.mxu0 0.0
  %245 = vmatpush.msra.mxu0 0.0
  %246 = vmatpush.msra.mxu0 0.0
  %247 = vmatpush.msra.mxu0 0.0
  %248 = vmatpush.msra.mxu0 0.0
  %249 = vmatpush.msra.mxu0 0.0
  %250 = vmatpush.msra.mxu0 0.0
  %251 = vmatpush.msra.mxu0 %v231
  %252 = vmatmul.f32.gmra.mxu0 %v234
  %v253 = vpop.f32.mrf.mxu0
  %v254 = vadd.f32 0.0, %v253
  %255 = vdwg.mxu0
  %256 = vrot.lane.b32.xlu0 %v118, 112
  %v257 = vpop.permute.xlu0 %256
  %258 = vrot.lane.b32.xlu0 %v118, 80
  %v259 = vpop.permute.xlu0 %258
  %v260 = vsel %vm126, %v257, 0
  %v262 = vsel %vm126, %v259, 0
  %264 = vmatpush.xpose.msra.mxu0 0.0
  %265 = vmatpush.xpose.msra.mxu0 0.0
  %266 = vmatpush.xpose.msra.mxu0 0.0
  %267 = vmatpush.xpose.msra.mxu0 0.0
  %268 = vmatpush.xpose.msra.mxu0 0.0
  %269 = vmatpush.xpose.msra.mxu0 0.0
  %270 = vmatpush.xpose.msra.mxu0 0.0
  %271 = vmatpush.xpose.msra.mxu0 0.0
  %272 = vmatpush.xpose.msra.mxu0 0.0
  %273 = vmatpush.xpose.msra.mxu0 0.0
  %274 = vmatpush.xpose.msra.mxu0 0.0
  %275 = vmatpush.xpose.msra.mxu0 0.0
  %276 = vmatpush.xpose.msra.mxu0 0.0
  %277 = vmatpush.xpose.msra.mxu0 0.0
  %278 = vmatpush.xpose.msra.mxu0 0.0
  %279 = vmatpush.xpose.msra.mxu0 %v262
  %280 = vmatmul.f32.gmra.mxu0 %v260
  %v281 = vpop.f32.mrf.mxu0
  %v282 = vadd.f32 %v39, %v281
  %283 = vdwg.mxu0
  %v284 = vadd.f32 %v282, %v151
  %v285 = vsel %vm126, %v284, -inf
  %286 = vmax.xlane.f32.xlu0 %v285
  %v287 = vpop.xlane.xlu0 %286
  %v288 = vsub.f32 %v284, %v287
  %v289 = vmul.f32 %v288, 1.442695
  %v290 = vpow.pop %v289
  %v291 = vsel %vm126, %v290, 0.0
  %292 = vadd.xlane.f32.xlu0 %v291
  %v293 = vpop.xlane.xlu0 %292
  %v294 = vrcp.pop %v293
  %v295 = vmul.f32 %v290, %v294
  %296 = vrot.lane.b32.xlu0 %v118, 48
  %v297 = vpop.permute.xlu0 %296
  %v300 = vsel %vm126, %v295, 0
  %302 = vmatpush.msra.mxu0 0.0
  %303 = vmatpush.msra.mxu0 0.0
  %304 = vmatpush.msra.mxu0 0.0
  %305 = vmatpush.msra.mxu0 0.0
  %306 = vmatpush.msra.mxu0 0.0
  %307 = vmatpush.msra.mxu0 0.0
  %308 = vmatpush.msra.mxu0 0.0
  %309 = vmatpush.msra.mxu0 0.0
  %310 = vmatpush.msra.mxu0 0.0
  %311 = vmatpush.msra.mxu0 0.0
  %312 = vmatpush.msra.mxu0 0.0
  %313 = vmatpush.msra.mxu0 0.0
  %314 = vmatpush.msra.mxu0 0.0
  %315 = vmatpush.msra.mxu0 0.0
  %316 = vmatpush.msra.mxu0 0.0
  %317 = vmatpush.msra.mxu0 %v297
  %318 = vmatmul.f32.gmra.mxu0 %v300
  %v319 = vpop.f32.mrf.mxu0
  %v320 = vadd.f32 0.0, %v319
  %321 = vdwg.mxu0
  %322 = vrot.lane.b32.xlu0 %v118, 104
  %v323 = vpop.permute.xlu0 %322
  %324 = vrot.lane.b32.xlu0 %v118, 72
  %v325 = vpop.permute.xlu0 %324
  %v326 = vsel %vm126, %v323, 0
  %v328 = vsel %vm126, %v325, 0
  %330 = vmatpush.xpose.msra.mxu0 0.0
  %331 = vmatpush.xpose.msra.mxu0 0.0
  %332 = vmatpush.xpose.msra.mxu0 0.0
  %333 = vmatpush.xpose.msra.mxu0 0.0
  %334 = vmatpush.xpose.msra.mxu0 0.0
  %335 = vmatpush.xpose.msra.mxu0 0.0
  %336 = vmatpush.xpose.msra.mxu0 0.0
  %337 = vmatpush.xpose.msra.mxu0 0.0
  %338 = vmatpush.xpose.msra.mxu0 0.0
  %339 = vmatpush.xpose.msra.mxu0 0.0
  %340 = vmatpush.xpose.msra.mxu0 0.0
  %341 = vmatpush.xpose.msra.mxu0 0.0
  %342 = vmatpush.xpose.msra.mxu0 0.0
  %343 = vmatpush.xpose.msra.mxu0 0.0
  %344 = vmatpush.xpose.msra.mxu0 0.0
  %345 = vmatpush.xpose.msra.mxu0 %v328
  %346 = vmatmul.f32.gmra.mxu0 %v326
  %v347 = vpop.f32.mrf.mxu0
  %v348 = vadd.f32 %v40, %v347
  %349 = vdwg.mxu0
  %v350 = vadd.f32 %v348, %v151
  %v351 = vsel %vm126, %v350, -inf
  %352 = vmax.xlane.f32.xlu0 %v351
  %v353 = vpop.xlane.xlu0 %352
  %v354 = vsub.f32 %v350, %v353
  %v355 = vmul.f32 %v354, 1.442695
  %v356 = vpow.pop %v355
  %v357 = vsel %vm126, %v356, 0.0
  %358 = vadd.xlane.f32.xlu0 %v357
  %v359 = vpop.xlane.xlu0 %358
  %v360 = vrcp.pop %v359
  %v361 = vmul.f32 %v356, %v360
  %362 = vrot.lane.b32.xlu0 %v118, 40
  %v363 = vpop.permute.xlu0 %362
  %v366 = vsel %vm126, %v361, 0
  %368 = vmatpush.msra.mxu0 0.0
  %369 = vmatpush.msra.mxu0 0.0
  %370 = vmatpush.msra.mxu0 0.0
  %371 = vmatpush.msra.mxu0 0.0
  %372 = vmatpush.msra.mxu0 0.0
  %373 = vmatpush.msra.mxu0 0.0
  %374 = vmatpush.msra.mxu0 0.0
  %375 = vmatpush.msra.mxu0 0.0
  %376 = vmatpush.msra.mxu0 0.0
  %377 = vmatpush.msra.mxu0 0.0
  %378 = vmatpush.msra.mxu0 0.0
  %379 = vmatpush.msra.mxu0 0.0
  %380 = vmatpush.msra.mxu0 0.0
  %381 = vmatpush.msra.mxu0 0.0
  %382 = vmatpush.msra.mxu0 0.0
  %383 = vmatpush.msra.mxu0 %v363
  %384 = vmatmul.f32.gmra.mxu0 %v366
  %v385 = vpop.f32.mrf.mxu0
  %v386 = vadd.f32 0.0, %v385
  %387 = vdwg.mxu0
  %389 = vrot.lane.b32.xlu0 %v254, 8
  %v390 = vpop.permute.xlu0 %389
  %393 = vrot.lane.b32.xlu0 %v320, 16
  %v394 = vpop.permute.xlu0 %393
  %397 = vrot.lane.b32.xlu0 %v386, 24
  %v398 = vpop.permute.xlu0 %397
  %v400 = vsel %vm126, %v188, %v390
  %vm401 = vcmask 130048
  %v402 = vsel %vm401, %v400, %v394
  %vm403 = vcmask 195584
  %v404 = vsel %vm403, %v402, %v398
  %406 = vrot.lane.b32.xlu0 %v121, 96
  %v407 = vpop.permute.xlu0 %406
  %v408 = vsel %vm126, %v121, 0
  %v410 = vsel %vm126, %v407, 0
  %412 = vmatpush.xpose.msra.mxu0 0.0
  %413 = vmatpush.xpose.msra.mxu0 0.0
  %414 = vmatpush.xpose.msra.mxu0 0.0
  %415 = vmatpush.xpose.msra.mxu0 0.0
  %416 = vmatpush.xpose.msra.mxu0 0.0
  %417 = vmatpush.xpose.msra.mxu0 0.0
  %418 = vmatpush.xpose.msra.mxu0 0.0
  %419 = vmatpush.xpose.msra.mxu0 0.0
  %420 = vmatpush.xpose.msra.mxu0 0.0
  %421 = vmatpush.xpose.msra.mxu0 0.0
  %422 = vmatpush.xpose.msra.mxu0 0.0
  %423 = vmatpush.xpose.msra.mxu0 0.0
  %424 = vmatpush.xpose.msra.mxu0 0.0
  %425 = vmatpush.xpose.msra.mxu0 0.0
  %426 = vmatpush.xpose.msra.mxu0 0.0
  %427 = vmatpush.xpose.msra.mxu0 %v410
  %428 = vmatmul.f32.gmra.mxu0 %v408
  %v429 = vpop.f32.mrf.mxu0
  %v430 = vadd.f32 %v37, %v429
  %431 = vdwg.mxu0
  %v432 = vperm.slane %v41, 1
  %v433 = vadd.f32 %v430, %v432
  %v434 = vsel %vm126, %v433, -inf
  %435 = vmax.xlane.f32.xlu0 %v434
  %v436 = vpop.xlane.xlu0 %435
  %v437 = vsub.f32 %v433, %v436
  %v438 = vmul.f32 %v437, 1.442695
  %v439 = vpow.pop %v438
  %v440 = vsel %vm126, %v439, 0.0
  %441 = vadd.xlane.f32.xlu0 %v440
  %v442 = vpop.xlane.xlu0 %441
  %v443 = vrcp.pop %v442
  %v444 = vmul.f32 %v439, %v443
  %445 = vrot.lane.b32.xlu0 %v121, 64
  %v446 = vpop.permute.xlu0 %445
  %v449 = vsel %vm126, %v444, 0
  %451 = vmatpush.msra.mxu0 0.0
  %452 = vmatpush.msra.mxu0 0.0
  %453 = vmatpush.msra.mxu0 0.0
  %454 = vmatpush.msra.mxu0 0.0
  %455 = vmatpush.msra.mxu0 0.0
  %456 = vmatpush.msra.mxu0 0.0
  %457 = vmatpush.msra.mxu0 0.0
  %458 = vmatpush.msra.mxu0 0.0
  %459 = vmatpush.msra.mxu0 0.0
  %460 = vmatpush.msra.mxu0 0.0
  %461 = vmatpush.msra.mxu0 0.0
  %462 = vmatpush.msra.mxu0 0.0
  %463 = vmatpush.msra.mxu0 0.0
  %464 = vmatpush.msra.mxu0 0.0
  %465 = vmatpush.msra.mxu0 0.0
  %466 = vmatpush.msra.mxu0 %v446
  %467 = vmatmul.f32.gmra.mxu0 %v449
  %v468 = vpop.f32.mrf.mxu0
  %v469 = vadd.f32 0.0, %v468
  %470 = vdwg.mxu0
  %471 = vrot.lane.b32.xlu0 %v121, 120
  %v472 = vpop.permute.xlu0 %471
  %473 = vrot.lane.b32.xlu0 %v121, 88
  %v474 = vpop.permute.xlu0 %473
  %v475 = vsel %vm126, %v472, 0
  %v477 = vsel %vm126, %v474, 0
  %479 = vmatpush.xpose.msra.mxu0 0.0
  %480 = vmatpush.xpose.msra.mxu0 0.0
  %481 = vmatpush.xpose.msra.mxu0 0.0
  %482 = vmatpush.xpose.msra.mxu0 0.0
  %483 = vmatpush.xpose.msra.mxu0 0.0
  %484 = vmatpush.xpose.msra.mxu0 0.0
  %485 = vmatpush.xpose.msra.mxu0 0.0
  %486 = vmatpush.xpose.msra.mxu0 0.0
  %487 = vmatpush.xpose.msra.mxu0 0.0
  %488 = vmatpush.xpose.msra.mxu0 0.0
  %489 = vmatpush.xpose.msra.mxu0 0.0
  %490 = vmatpush.xpose.msra.mxu0 0.0
  %491 = vmatpush.xpose.msra.mxu0 0.0
  %492 = vmatpush.xpose.msra.mxu0 0.0
  %493 = vmatpush.xpose.msra.mxu0 0.0
  %494 = vmatpush.xpose.msra.mxu0 %v477
  %495 = vmatmul.f32.gmra.mxu0 %v475
  %v496 = vpop.f32.mrf.mxu0
  %v497 = vadd.f32 %v38, %v496
  %498 = vdwg.mxu0
  %v499 = vadd.f32 %v497, %v432
  %v500 = vsel %vm126, %v499, -inf
  %501 = vmax.xlane.f32.xlu0 %v500
  %v502 = vpop.xlane.xlu0 %501
  %v503 = vsub.f32 %v499, %v502
  %v504 = vmul.f32 %v503, 1.442695
  %v505 = vpow.pop %v504
  %v506 = vsel %vm126, %v505, 0.0
  %507 = vadd.xlane.f32.xlu0 %v506
  %v508 = vpop.xlane.xlu0 %507
  %v509 = vrcp.pop %v508
  %v510 = vmul.f32 %v505, %v509
  %511 = vrot.lane.b32.xlu0 %v121, 56
  %v512 = vpop.permute.xlu0 %511
  %v515 = vsel %vm126, %v510, 0
  %517 = vmatpush.msra.mxu0 0.0
  %518 = vmatpush.msra.mxu0 0.0
  %519 = vmatpush.msra.mxu0 0.0
  %520 = vmatpush.msra.mxu0 0.0
  %521 = vmatpush.msra.mxu0 0.0
  %522 = vmatpush.msra.mxu0 0.0
  %523 = vmatpush.msra.mxu0 0.0
  %524 = vmatpush.msra.mxu0 0.0
  %525 = vmatpush.msra.mxu0 0.0
  %526 = vmatpush.msra.mxu0 0.0
  %527 = vmatpush.msra.mxu0 0.0
  %528 = vmatpush.msra.mxu0 0.0
  %529 = vmatpush.msra.mxu0 0.0
  %530 = vmatpush.msra.mxu0 0.0
  %531 = vmatpush.msra.mxu0 0.0
  %532 = vmatpush.msra.mxu0 %v512
  %533 = vmatmul.f32.gmra.mxu0 %v515
  %v534 = vpop.f32.mrf.mxu0
  %v535 = vadd.f32 0.0, %v534
  %536 = vdwg.mxu0
  %537 = vrot.lane.b32.xlu0 %v121, 112
  %v538 = vpop.permute.xlu0 %537
  %539 = vrot.lane.b32.xlu0 %v121, 80
  %v540 = vpop.permute.xlu0 %539
  %v541 = vsel %vm126, %v538, 0
  %v543 = vsel %vm126, %v540, 0
  %545 = vmatpush.xpose.msra.mxu0 0.0
  %546 = vmatpush.xpose.msra.mxu0 0.0
  %547 = vmatpush.xpose.msra.mxu0 0.0
  %548 = vmatpush.xpose.msra.mxu0 0.0
  %549 = vmatpush.xpose.msra.mxu0 0.0
  %550 = vmatpush.xpose.msra.mxu0 0.0
  %551 = vmatpush.xpose.msra.mxu0 0.0
  %552 = vmatpush.xpose.msra.mxu0 0.0
  %553 = vmatpush.xpose.msra.mxu0 0.0
  %554 = vmatpush.xpose.msra.mxu0 0.0
  %555 = vmatpush.xpose.msra.mxu0 0.0
  %556 = vmatpush.xpose.msra.mxu0 0.0
  %557 = vmatpush.xpose.msra.mxu0 0.0
  %558 = vmatpush.xpose.msra.mxu0 0.0
  %559 = vmatpush.xpose.msra.mxu0 0.0
  %560 = vmatpush.xpose.msra.mxu0 %v543
  %561 = vmatmul.f32.gmra.mxu0 %v541
  %v562 = vpop.f32.mrf.mxu0
  %v563 = vadd.f32 %v39, %v562
  %564 = vdwg.mxu0
  %v565 = vadd.f32 %v563, %v432
  %v566 = vsel %vm126, %v565, -inf
  %567 = vmax.xlane.f32.xlu0 %v566
  %v568 = vpop.xlane.xlu0 %567
  %v569 = vsub.f32 %v565, %v568
  %v570 = vmul.f32 %v569, 1.442695
  %v571 = vpow.pop %v570
  %v572 = vsel %vm126, %v571, 0.0
  %573 = vadd.xlane.f32.xlu0 %v572
  %v574 = vpop.xlane.xlu0 %573
  %v575 = vrcp.pop %v574
  %v576 = vmul.f32 %v571, %v575
  %577 = vrot.lane.b32.xlu0 %v121, 48
  %v578 = vpop.permute.xlu0 %577
  %v581 = vsel %vm126, %v576, 0
  %583 = vmatpush.msra.mxu0 0.0
  %584 = vmatpush.msra.mxu0 0.0
  %585 = vmatpush.msra.mxu0 0.0
  %586 = vmatpush.msra.mxu0 0.0
  %587 = vmatpush.msra.mxu0 0.0
  %588 = vmatpush.msra.mxu0 0.0
  %589 = vmatpush.msra.mxu0 0.0
  %590 = vmatpush.msra.mxu0 0.0
  %591 = vmatpush.msra.mxu0 0.0
  %592 = vmatpush.msra.mxu0 0.0
  %593 = vmatpush.msra.mxu0 0.0
  %594 = vmatpush.msra.mxu0 0.0
  %595 = vmatpush.msra.mxu0 0.0
  %596 = vmatpush.msra.mxu0 0.0
  %597 = vmatpush.msra.mxu0 0.0
  %598 = vmatpush.msra.mxu0 %v578
  %599 = vmatmul.f32.gmra.mxu0 %v581
  %v600 = vpop.f32.mrf.mxu0
  %v601 = vadd.f32 0.0, %v600
  %602 = vdwg.mxu0
  %603 = vrot.lane.b32.xlu0 %v121, 104
  %v604 = vpop.permute.xlu0 %603
  %605 = vrot.lane.b32.xlu0 %v121, 72
  %v606 = vpop.permute.xlu0 %605
  %v607 = vsel %vm126, %v604, 0
  %v609 = vsel %vm126, %v606, 0
  %611 = vmatpush.xpose.msra.mxu0 0.0
  %612 = vmatpush.xpose.msra.mxu0 0.0
  %613 = vmatpush.xpose.msra.mxu0 0.0
  %614 = vmatpush.xpose.msra.mxu0 0.0
  %615 = vmatpush.xpose.msra.mxu0 0.0
  %616 = vmatpush.xpose.msra.mxu0 0.0
  %617 = vmatpush.xpose.msra.mxu0 0.0
  %618 = vmatpush.xpose.msra.mxu0 0.0
  %619 = vmatpush.xpose.msra.mxu0 0.0
  %620 = vmatpush.xpose.msra.mxu0 0.0
  %621 = vmatpush.xpose.msra.mxu0 0.0
  %622 = vmatpush.xpose.msra.mxu0 0.0
  %623 = vmatpush.xpose.msra.mxu0 0.0
  %624 = vmatpush.xpose.msra.mxu0 0.0
  %625 = vmatpush.xpose.msra.mxu0 0.0
  %626 = vmatpush.xpose.msra.mxu0 %v609
  %627 = vmatmul.f32.gmra.mxu0 %v607
  %v628 = vpop.f32.mrf.mxu0
  %v629 = vadd.f32 %v40, %v628
  %630 = vdwg.mxu0
  %v631 = vadd.f32 %v629, %v432
  %v632 = vsel %vm126, %v631, -inf
  %633 = vmax.xlane.f32.xlu0 %v632
  %v634 = vpop.xlane.xlu0 %633
  %v635 = vsub.f32 %v631, %v634
  %v636 = vmul.f32 %v635, 1.442695
  %v637 = vpow.pop %v636
  %v638 = vsel %vm126, %v637, 0.0
  %639 = vadd.xlane.f32.xlu0 %v638
  %v640 = vpop.xlane.xlu0 %639
  %v641 = vrcp.pop %v640
  %v642 = vmul.f32 %v637, %v641
  %643 = vrot.lane.b32.xlu0 %v121, 40
  %v644 = vpop.permute.xlu0 %643
  %v647 = vsel %vm126, %v642, 0
  %649 = vmatpush.msra.mxu0 0.0
  %650 = vmatpush.msra.mxu0 0.0
  %651 = vmatpush.msra.mxu0 0.0
  %652 = vmatpush.msra.mxu0 0.0
  %653 = vmatpush.msra.mxu0 0.0
  %654 = vmatpush.msra.mxu0 0.0
  %655 = vmatpush.msra.mxu0 0.0
  %656 = vmatpush.msra.mxu0 0.0
  %657 = vmatpush.msra.mxu0 0.0
  %658 = vmatpush.msra.mxu0 0.0
  %659 = vmatpush.msra.mxu0 0.0
  %660 = vmatpush.msra.mxu0 0.0
  %661 = vmatpush.msra.mxu0 0.0
  %662 = vmatpush.msra.mxu0 0.0
  %663 = vmatpush.msra.mxu0 0.0
  %664 = vmatpush.msra.mxu0 %v644
  %665 = vmatmul.f32.gmra.mxu0 %v647
  %v666 = vpop.f32.mrf.mxu0
  %v667 = vadd.f32 0.0, %v666
  %668 = vdwg.mxu0
  %670 = vrot.lane.b32.xlu0 %v535, 8
  %v671 = vpop.permute.xlu0 %670
  %674 = vrot.lane.b32.xlu0 %v601, 16
  %v675 = vpop.permute.xlu0 %674
  %678 = vrot.lane.b32.xlu0 %v667, 24
  %v679 = vpop.permute.xlu0 %678
  %v681 = vsel %vm126, %v469, %v671
  %v682 = vsel %vm401, %v681, %v675
  %v683 = vsel %vm403, %v682, %v679
  %v684 = vld [vmem:[%s3] sm:$0xff]
  %v685 = vld [vmem:[%s3 + $0x8] sm:$0xff]
  %v686 = vld [vmem:[%s3 + $0x10] sm:$0xff]
  %v687 = vld [vmem:[%s3 + $0x18] sm:$0xff]
  %v689 = vsel %vm45, %v404, 0
  %v692 = vsel %vm45, %v683, 0
  %694 = vmatpush.msra.mxu0 0.0
  %695 = vmatpush.msra.mxu0 0.0
  %696 = vmatpush.msra.mxu0 0.0
  %697 = vmatpush.msra.mxu0 0.0
  %698 = vmatpush.msra.mxu0 0.0
  %699 = vmatpush.msra.mxu0 0.0
  %700 = vmatpush.msra.mxu0 0.0
  %701 = vmatpush.msra.mxu0 0.0
  %702 = vmatpush.msra.mxu0 0.0
  %703 = vmatpush.msra.mxu0 0.0
  %704 = vmatpush.msra.mxu0 0.0
  %705 = vmatpush.msra.mxu0 0.0
  %706 = vmatpush.msra.mxu0 %v687
  %707 = vmatpush.msra.mxu0 %v686
  %708 = vmatpush.msra.mxu0 %v685
  %709 = vmatpush.msra.mxu0 %v684
  %710 = vmatmul.f32.gmra.mxu0 %v689
  %v711 = vpop.f32.mrf.mxu0
  %v712 = vadd.f32 0.0, %v711
  %713 = vmatmul.f32.gmra.mxu0 %v692
  %v714 = vpop.f32.mrf.mxu0
  %v715 = vadd.f32 0.0, %v714
  %716 = vdwg.mxu0
  %v717 = vadd.f32 %v35, %v712
  %v718 = vadd.f32 %v36, %v715
  %v719 = vld [vmem:[%s4] sm:$0x1]
  %v720 = vmul.f32 %v717, %v717
  %v721 = vmul.f32 %v718, %v718
  %v722 = vsel %vm45, %v720, 0.0
  %723 = vadd.xlane.f32.xlu0 %v722
  %v724 = vpop.xlane.xlu0 %723
  %v725 = vsel %vm45, %v721, 0.0
  %726 = vadd.xlane.f32.xlu0 %v725
  %v727 = vpop.xlane.xlu0 %726
  %v728 = vmul.f32 %v724, %v58
  %v729 = vmul.f32 %v727, %v58
  %v730 = vadd.f32 %v728, 1e-06
  %v731 = vadd.f32 %v729, 1e-06
  %v732 = vrsqrt.pop %v730
  %v733 = vmul.f32 %v732, %v730
  %v734 = vmul.f32 %v733, %v732
  %v735 = vmul.f32 0.5, %v734
  %v736 = vsub.f32 1.5, %v735
  %v737 = vmul.f32 %v732, %v736
  %vm738 = vweird.f32 %v730
  %vm739 = vweird.f32 %v732
  %vm740 = vmor %vm738, %vm739
  %v741 = vsel %vm740, %v732, %v737
  %v742 = vrsqrt.pop %v731
  %v743 = vmul.f32 %v742, %v731
  %v744 = vmul.f32 %v743, %v742
  %v745 = vmul.f32 0.5, %v744
  %v746 = vsub.f32 1.5, %v745
  %v747 = vmul.f32 %v742, %v746
  %vm748 = vweird.f32 %v731
  %vm749 = vweird.f32 %v742
  %vm750 = vmor %vm748, %vm749
  %v751 = vsel %vm750, %v742, %v747
  %v752 = vmul.f32 %v717, %v741
  %v753 = vmul.f32 %v718, %v751
  %v755 = vperm.slane %v719, 0
  %v757 = vmul.f32 %v752, %v755
  %v758 = vmul.f32 %v753, %v755
  %v759 = vld [vmem:[%s5] sm:$0xff]
  %v760 = vld [vmem:[%s5 + $0x8] sm:$0xff]
  %v761 = vld [vmem:[%s5 + $0x10] sm:$0xff]
  %v762 = vld [vmem:[%s5 + $0x18] sm:$0xff]
  %v764 = vsel %vm45, %v757, 0
  %v767 = vsel %vm45, %v758, 0
  %769 = vmatpush.msra.mxu0 0.0
  %770 = vmatpush.msra.mxu0 0.0
  %771 = vmatpush.msra.mxu0 0.0
  %772 = vmatpush.msra.mxu0 0.0
  %773 = vmatpush.msra.mxu0 0.0
  %774 = vmatpush.msra.mxu0 0.0
  %775 = vmatpush.msra.mxu0 0.0
  %776 = vmatpush.msra.mxu0 0.0
  %777 = vmatpush.msra.mxu0 0.0
  %778 = vmatpush.msra.mxu0 0.0
  %779 = vmatpush.msra.mxu0 0.0
  %780 = vmatpush.msra.mxu0 0.0
  %781 = vmatpush.msra.mxu0 %v762
  %782 = vmatpush.msra.mxu0 %v761
  %783 = vmatpush.msra.mxu0 %v760
  %784 = vmatpush.msra.mxu0 %v759
  %785 = vmatmul.f32.gmra.mxu0 %v764
  %v786 = vpop.f32.mrf.mxu0
  %v787 = vadd.f32 0.0, %v786
  %788 = vmatmul.f32.gmra.mxu0 %v767
  %v789 = vpop.f32.mrf.mxu0
  %v790 = vadd.f32 0.0, %v789
  %791 = vdwg.mxu0
  %v792 = vmax.f32 %v787, 0.0
  %v793 = vmax.f32 %v790, 0.0
  %v794 = vld [vmem:[%s6] sm:$0xff]
  %v795 = vld [vmem:[%s6 + $0x8] sm:$0xff]
  %v796 = vld [vmem:[%s6 + $0x10] sm:$0xff]
  %v797 = vld [vmem:[%s6 + $0x18] sm:$0xff]
  %v798 = vld [vmem:[%s6 + $0x20] sm:$0xff]
  %v799 = vld [vmem:[%s6 + $0x28] sm:$0xff]
  %v800 = vld [vmem:[%s6 + $0x30] sm:$0xff]
  %v801 = vld [vmem:[%s6 + $0x38] sm:$0xff]
  %vm802 = vcmask 523264
  %v804 = vsel %vm802, %v792, 0
  %v807 = vsel %vm802, %v793, 0
  %809 = vmatpush.msra.mxu0 0.0
  %810 = vmatpush.msra.mxu0 0.0
  %811 = vmatpush.msra.mxu0 0.0
  %812 = vmatpush.msra.mxu0 0.0
  %813 = vmatpush.msra.mxu0 0.0
  %814 = vmatpush.msra.mxu0 0.0
  %815 = vmatpush.msra.mxu0 0.0
  %816 = vmatpush.msra.mxu0 0.0
  %817 = vmatpush.msra.mxu0 %v801
  %818 = vmatpush.msra.mxu0 %v800
  %819 = vmatpush.msra.mxu0 %v799
  %820 = vmatpush.msra.mxu0 %v798
  %821 = vmatpush.msra.mxu0 %v797
  %822 = vmatpush.msra.mxu0 %v796
  %823 = vmatpush.msra.mxu0 %v795
  %824 = vmatpush.msra.mxu0 %v794
  %825 = vmatmul.f32.gmra.mxu0 %v804
  %v826 = vpop.f32.mrf.mxu0
  %v827 = vadd.f32 0.0, %v826
  %828 = vmatmul.f32.gmra.mxu0 %v807
  %v829 = vpop.f32.mrf.mxu0
  %v830 = vadd.f32 0.0, %v829
  %831 = vdwg.mxu0
  %v832 = vadd.f32 %v717, %v827
  %v833 = vadd.f32 %v718, %v830
  %v834 = vld [vmem:[%s9] sm:$0x1]
  %v835 = vmul.f32 %v832, %v832
  %v836 = vmul.f32 %v833, %v833
  %v837 = vsel %vm45, %v835, 0.0
  %838 = vadd.xlane.f32.xlu0 %v837
  %v839 = vpop.xlane.xlu0 %838
  %v840 = vsel %vm45, %v836, 0.0
  %841 = vadd.xlane.f32.xlu0 %v840
  %v842 = vpop.xlane.xlu0 %841
  %v843 = vmul.f32 %v839, %v58
  %v844 = vmul.f32 %v842, %v58
  %v845 = vadd.f32 %v843, 1e-06
  %v846 = vadd.f32 %v844, 1e-06
  %v847 = vrsqrt.pop %v845
  %v848 = vmul.f32 %v847, %v845
  %v849 = vmul.f32 %v848, %v847
  %v850 = vmul.f32 0.5, %v849
  %v851 = vsub.f32 1.5, %v850
  %v852 = vmul.f32 %v847, %v851
  %vm853 = vweird.f32 %v845
  %vm854 = vweird.f32 %v847
  %vm855 = vmor %vm853, %vm854
  %v856 = vsel %vm855, %v847, %v852
  %v857 = vrsqrt.pop %v846
  %v858 = vmul.f32 %v857, %v846
  %v859 = vmul.f32 %v858, %v857
  %v860 = vmul.f32 0.5, %v859
  %v861 = vsub.f32 1.5, %v860
  %v862 = vmul.f32 %v857, %v861
  %vm863 = vweird.f32 %v846
  %vm864 = vweird.f32 %v857
  %vm865 = vmor %vm863, %vm864
  %v866 = vsel %vm865, %v857, %v862
  %v867 = vmul.f32 %v832, %v856
  %v868 = vmul.f32 %v833, %v866
  %v870 = vperm.slane %v834, 0
  %v872 = vmul.f32 %v867, %v870
  %v873 = vmul.f32 %v868, %v870
  %874 = vst.msk [vmem:[%s10] sm:$0xff] %vm45, %v872
  %875 = vst.msk [vmem:[%s10 + $0x8] sm:$0xff] %vm45, %v873
  // Predicated region
  $region42: #{t5_forward_loss.6} parent=0 // pred_check
    _
  $region43: #{t5_forward_loss.6} parent=0 // pred_check_branch
    %877 = sbr.rel (0) target = $region45
  $region44: #{t5_forward_loss.6} parent=0 // pred_region
    _
  $region45: #{t5_forward_loss.6} parent=0 // pred_fallthru
    _
  // Predicated region
  $region46: #{t5_forward_loss.6} parent=0 // pred_check
    _
  $region47: #{t5_forward_loss.6} parent=0 // pred_check_branch
    %879 = sbr.rel (0) target = $region49
  $region48: #{t5_forward_loss.6} parent=0 // pred_region
    _
  $region49: #{t5_forward_loss.6} parent=0 // pred_fallthru
    _

// kernel: t5_forward_loss.7
$region0: #{t5_forward_loss.7}
  #allocation0 [shape = 'u32[]', space=smem, size = 0x4, offset = 0x4, fixed_abs, tag = 'smem constant byte address 0x4 - core index']
  #allocation1 [shape = 'u32[72,128]{1,0:T(1,128)}', space=vmem, size = 0x9000, scoped, tag = 'internal scratch']
  %s0 = inlined_call_operand.vmem [shape: f32[16,32], index: 0, kind: input, shape index: {}]
  %s1 = inlined_call_operand.vmem [shape: f32[16,32], index: 1, kind: input, shape index: {}]
  %s2 = inlined_call_operand.vmem [shape: f32[1,32], index: 2, kind: input, shape index: {}]
  %s3 = inlined_call_operand.vmem [shape: f32[32,96], index: 3, kind: input, shape index: {}]
  %s4 = inlined_call_operand.vmem [shape: f32[32,32], index: 4, kind: input, shape index: {}]
  %s5 = inlined_call_operand.vmem [shape: f32[1,32], index: 5, kind: input, shape index: {}]
  %s6 = inlined_call_operand.vmem [shape: f32[32,32], index: 6, kind: input, shape index: {}]
  %s7 = inlined_call_operand.vmem [shape: f32[32,64], index: 7, kind: input, shape index: {}]
  %s8 = inlined_call_operand.vmem [shape: f32[32,32], index: 8, kind: input, shape index: {}]
  %s9 = inlined_call_operand.vmem [shape: f32[1,32], index: 9, kind: input, shape index: {}]
  %s10 = inlined_call_operand.vmem [shape: f32[32,64], index: 10, kind: input, shape index: {}]
  %s11 = inlined_call_operand.vmem [shape: f32[64,32], index: 11, kind: input, shape index: {}]
  %s12 = inlined_call_operand.vmem [shape: f32[4,8,8], index: 12, kind: input, shape index: {}]
  %s13 = inlined_call_operand.vmem [shape: f32[2,8], index: 13, kind: input, shape index: {}]
  %s14 = inlined_call_operand.vmem [shape: f32[16,32], index: 14, kind: output, shape index: {}]
  %s15 = sld [smem:[#allocation0]]
  $region66: #{t5_forward_loss.7} parent=0
    _
  %s17 = ssub.s32 1, %s15
  %s18 = scalar_select 0, %s17, %s15
  // Predicated region
  $region2: #{t5_forward_loss.7} parent=0 // pred_check
    _
  $region3: #{t5_forward_loss.7} parent=0 // pred_check_branch
    %20 = sbr.rel (0) target = $region5
  $region4: #{t5_forward_loss.7} parent=0 // pred_region
    _
  $region5: #{t5_forward_loss.7} parent=0 // pred_fallthru
    _
  // Predicated region
  $region6: #{t5_forward_loss.7} parent=0 // pred_check
    _
  $region7: #{t5_forward_loss.7} parent=0 // pred_check_branch
    %22 = sbr.rel (0) target = $region9
  $region8: #{t5_forward_loss.7} parent=0 // pred_region
    _
  $region9: #{t5_forward_loss.7} parent=0 // pred_fallthru
    _
  // Predicated region
  $region10: #{t5_forward_loss.7} parent=0 // pred_check
    _
  $region11: #{t5_forward_loss.7} parent=0 // pred_check_branch
    %24 = sbr.rel (0) target = $region13
  $region12: #{t5_forward_loss.7} parent=0 // pred_region
    _
  $region13: #{t5_forward_loss.7} parent=0 // pred_fallthru
    _
  // Predicated region
  $region14: #{t5_forward_loss.7} parent=0 // pred_check
    _
  $region15: #{t5_forward_loss.7} parent=0 // pred_check_branch
    %26 = sbr.rel (0) target = $region17
  $region16: #{t5_forward_loss.7} parent=0 // pred_region
    _
  $region17: #{t5_forward_loss.7} parent=0 // pred_fallthru
    _
  // Predicated region
  $region18: #{t5_forward_loss.7} parent=0 // pred_check
    _
  $region19: #{t5_forward_loss.7} parent=0 // pred_check_branch
    %28 = sbr.rel (0) target = $region21
  $region20: #{t5_forward_loss.7} parent=0 // pred_region
    _
  $region21: #{t5_forward_loss.7} parent=0 // pred_fallthru
    _
  // Predicated region
  $region22: #{t5_forward_loss.7} parent=0 // pred_check
    _
  $region23: #{t5_forward_loss.7} parent=0 // pred_check_branch
    %30 = sbr.rel (0) target = $region25
  $region24: #{t5_forward_loss.7} parent=0 // pred_region
    _
  $region25: #{t5_forward_loss.7} parent=0 // pred_fallthru
    _
  // Predicated region
  $region26: #{t5_forward_loss.7} parent=0 // pred_check
    _
  $region27: #{t5_forward_loss.7} parent=0 // pred_check_branch
    %32 = sbr.rel (0) target = $region29
  $region28: #{t5_forward_loss.7} parent=0 // pred_region
    _
  $region29: #{t5_forward_loss.7} parent=0 // pred_fallthru
    _
  // Predicated region
  $region30: #{t5_forward_loss.7} parent=0 // pred_check
    _
  $region31: #{t5_forward_loss.7} parent=0 // pred_check_branch
    %34 = sbr.rel (0) target = $region33
  $region32: #{t5_forward_loss.7} parent=0 // pred_region
    _
  $region33: #{t5_forward_loss.7} parent=0 // pred_fallthru
    _
  // Predicated region
  $region34: #{t5_forward_loss.7} parent=0 // pred_check
    _
  $region35: #{t5_forward_loss.7} parent=0 // pred_check_branch
    %36 = sbr.rel (0) target = $region37
  $region36: #{t5_forward_loss.7} parent=0 // pred_region
    _
  $region37: #{t5_forward_loss.7} parent=0 // pred_fallthru
    _
  // Predicated region
  $region38: #{t5_forward_loss.7} parent=0 // pred_check
    _
  $region39: #{t5_forward_loss.7} parent=0 // pred_check_branch
    %38 = sbr.rel (0) target = $region41
  $region40: #{t5_forward_loss.7} parent=0 // pred_region
    _
  $region41: #{t5_forward_loss.7} parent=0 // pred_fallthru
    _
  // Predicated region
  $region42: #{t5_forward_loss.7} parent=0 // pred_check
    _
  $region43: #{t5_forward_loss.7} parent=0 // pred_check_branch
    %40 = sbr.rel (0) target = $region45
  $region44: #{t5_forward_loss.7} parent=0 // pred_region
    _
  $region45: #{t5_forward_loss.7} parent=0 // pred_fallthru
    _
  // Predicated region
  $region46: #{t5_forward_loss.7} parent=0 // pred_check
    _
  $region47: #{t5_forward_loss.7} parent=0 // pred_check_branch
    %42 = sbr.rel (0) target = $region49
  $region48: #{t5_forward_loss.7} parent=0 // pred_region
    _
  $region49: #{t5_forward_loss.7} parent=0 // pred_fallthru
    _
  // Predicated region
  $region50: #{t5_forward_loss.7} parent=0 // pred_check
    _
  $region51: #{t5_forward_loss.7} parent=0 // pred_check_branch
    %44 = sbr.rel (0) target = $region53
  $region52: #{t5_forward_loss.7} parent=0 // pred_region
    _
  $region53: #{t5_forward_loss.7} parent=0 // pred_fallthru
    _
  // Predicated region
  $region54: #{t5_forward_loss.7} parent=0 // pred_check
    _
  $region55: #{t5_forward_loss.7} parent=0 // pred_check_branch
    %46 = sbr.rel (0) target = $region57
  $region56: #{t5_forward_loss.7} parent=0 // pred_region
    _
  $region57: #{t5_forward_loss.7} parent=0 // pred_fallthru
    _
  %v47 = vld [vmem:[%s0] sm:$0xff]
  %v48 = vld [vmem:[%s0 + $0x8] sm:$0xff]
  %v49 = vld [vmem:[%s1] sm:$0xff]
  %v50 = vld [vmem:[%s1 + $0x8] sm:$0xff]
  %v51 = vld [vmem:[%s12] sm:$0xff]
  %v52 = vld [vmem:[%s12 + $0x8] sm:$0xff]
  %v53 = vld [vmem:[%s12 + $0x10] sm:$0xff]
  %v54 = vld [vmem:[%s12 + $0x18] sm:$0xff]
  %v55 = vld [vmem:[%s13] sm:$0x3]
  %v56 = vld [vmem:[%s2] sm:$0x1]
  %v57 = vmul.f32 %v47, %v47
  %v58 = vmul.f32 %v48, %v48
  %vm59 = vcmask 261120
  %v60 = vsel %vm59, %v57, 0.0
  %61 = vadd.xlane.f32.xlu0 %v60
  %v62 = vpop.xlane.xlu0 %61
  %v63 = vsel %vm59, %v58, 0.0
  %64 = vadd.xlane.f32.xlu0 %v63
  %v65 = vpop.xlane.xlu0 %64
  %v66 = vrcp.pop 32.0
  %v67 = vmul.f32 32.0, %v66
  %v68 = vsub.f32 1.0, %v67
  %v69 = vmul.f32 %v66, %v68
  %v70 = vadd.f32 %v66, %v69
  %vm71 = vweird.f32 %v66
  %v72 = vsel %vm71, %v66, %v70
  %v73 = vmul.f32 %v62, %v72
  %v74 = vmul.f32 %v65, %v72
  %v75 = vadd.f32 %v73, 1e-06
  %v76 = vadd.f32 %v74, 1e-06
  %v77 = vrsqrt.pop %v75
  %v78 = vmul.f32 %v77, %v75
  %v79 = vmul.f32 %v78, %v77
  %v80 = vmul.f32 0.5, %v79
  %v81 = vsub.f32 1.5, %v80
  %v82 = vmul.f32 %v77, %v81
  %vm83 = vweird.f32 %v75
  %vm84 = vweird.f32 %v77
  %vm85 = vmor %vm83, %vm84
  %v86 = vsel %vm85, %v77, %v82
  %v87 = vrsqrt.pop %v76
  %v88 = vmul.f32 %v87, %v76
  %v89 = vmul.f32 %v88, %v87
  %v90 = vmul.f32 0.5, %v89
  %v91 = vsub.f32 1.5, %v90
  %v92 = vmul.f32 %v87, %v91
  %vm93 = vweird.f32 %v76
  %vm94 = vweird.f32 %v87
  %vm95 = vmor %vm93, %vm94
  %v96 = vsel %vm95, %v87, %v92
  %v97 = vmul.f32 %v47, %v86
  %v98 = vmul.f32 %v48, %v96
  %v100 = vperm.slane %v56, 0
  %v102 = vmul.f32 %v97, %v100
  %v103 = vmul.f32 %v98, %v100
  %v104 = vld [vmem:[%s3] sm:$0xff]
  %v105 = vld [vmem:[%s3 + $0x8] sm:$0xff]
  %v106 = vld [vmem:[%s3 + $0x10] sm:$0xff]
  %v107 = vld [vmem:[%s3 + $0x18] sm:$0xff]
  %v109 = vsel %vm59, %v102, 0
  %v112 = vsel %vm59, %v103, 0
  %114 = vmatpush.msra.mxu0 0.0
  %115 = vmatpush.msra.mxu0 0.0
  %116 = vmatpush.msra.mxu0 0.0
  %117 = vmatpush.msra.mxu0 0.0
  %118 = vmatpush.msra.mxu0 0.0
  %119 = vmatpush.msra.mxu0 0.0
  %120 = vmatpush.msra.mxu0 0.0
  %121 = vmatpush.msra.mxu0 0.0
  %122 = vmatpush.msra.mxu0 0.0
  %123 = vmatpush.msra.mxu0 0.0
  %124 = vmatpush.msra.mxu0 0.0
  %125 = vmatpush.msra.mxu0 0.0
  %126 = vmatpush.msra.mxu0 %v107
  %127 = vmatpush.msra.mxu0 %v106
  %128 = vmatpush.msra.mxu0 %v105
  %129 = vmatpush.msra.mxu0 %v104
  %130 = vmatmul.f32.gmra.mxu0 %v109
  %v131 = vpop.f32.mrf.mxu0
  %v132 = vadd.f32 0.0, %v131
  %133 = vmatmul.f32.gmra.mxu0 %v112
  %v134 = vpop.f32.mrf.mxu0
  %v135 = vadd.f32 0.0, %v134
  %136 = vdwg.mxu0
  %138 = vrot.lane.b32.xlu0 %v132, 96
  %v139 = vpop.permute.xlu0 %138
  %vm140 = vcmask 64512
  %v141 = vsel %vm140, %v132, 0
  %v143 = vsel %vm140, %v139, 0
  %145 = vmatpush.xpose.msra.mxu0 0.0
  %146 = vmatpush.xpose.msra.mxu0 0.0
  %147 = vmatpush.xpose.msra.mxu0 0.0
  %148 = vmatpush.xpose.msra.mxu0 0.0
  %149 = vmatpush.xpose.msra.mxu0 0.0
  %150 = vmatpush.xpose.msra.mxu0 0.0
  %151 = vmatpush.xpose.msra.mxu0 0.0
  %152 = vmatpush.xpose.msra.mxu0 0.0
  %153 = vmatpush.xpose.msra.mxu0 0.0
  %154 = vmatpush.xpose.msra.mxu0 0.0
  %155 = vmatpush.xpose.msra.mxu0 0.0
  %156 = vmatpush.xpose.msra.mxu0 0.0
  %157 = vmatpush.xpose.msra.mxu0 0.0
  %158 = vmatpush.xpose.msra.mxu0 0.0
  %159 = vmatpush.xpose.msra.mxu0 0.0
  %160 = vmatpush.xpose.msra.mxu0 %v143
  %161 = vmatmul.f32.gmra.mxu0 %v141
  %v162 = vpop.f32.mrf.mxu0
  %v163 = vadd.f32 %v51, %v162
  %164 = vdwg.mxu0
  %v165 = vsel %vm140, %v163, -inf
  %166 = vmax.xlane.f32.xlu0 %v165
  %v167 = vpop.xlane.xlu0 %166
  %v168 = vsub.f32 %v163, %v167
  %v169 = vmul.f32 %v168, 1.442695
  %v170 = vpow.pop %v169
  %v171 = vsel %vm140, %v170, 0.0
  %172 = vadd.xlane.f32.xlu0 %v171
  %v173 = vpop.xlane.xlu0 %172
  %v174 = vrcp.pop %v173
  %v175 = vmul.f32 %v170, %v174
  %176 = vrot.lane.b32.xlu0 %v132, 64
  %v177 = vpop.permute.xlu0 %176
  %v180 = vsel %vm140, %v175, 0
  %182 = vmatpush.msra.mxu0 0.0
  %183 = vmatpush.msra.mxu0 0.0
  %184 = vmatpush.msra.mxu0 0.0
  %185 = vmatpush.msra.mxu0 0.0
  %186 = vmatpush.msra.mxu0 0.0
  %187 = vmatpush.msra.mxu0 0.0
  %188 = vmatpush.msra.mxu0 0.0
  %189 = vmatpush.msra.mxu0 0.0
  %190 = vmatpush.msra.mxu0 0.0
  %191 = vmatpush.msra.mxu0 0.0
  %192 = vmatpush.msra.mxu0 0.0
  %193 = vmatpush.msra.mxu0 0.0
  %194 = vmatpush.msra.mxu0 0.0
  %195 = vmatpush.msra.mxu0 0.0
  %196 = vmatpush.msra.mxu0 0.0
  %197 = vmatpush.msra.mxu0 %v177
  %198 = vmatmul.f32.gmra.mxu0 %v180
  %v199 = vpop.f32.mrf.mxu0
  %v200 = vadd.f32 0.0, %v199
  %201 = vdwg.mxu0
  %202 = vrot.lane.b32.xlu0 %v132, 120
  %v203 = vpop.permute.xlu0 %202
  %204 = vrot.lane.b32.xlu0 %v132, 88
  %v205 = vpop.permute.xlu0 %204
  %v206 = vsel %vm140, %v203, 0
  %v208 = vsel %vm140, %v205, 0
  %210 = vmatpush.xpose.msra.mxu0 0.0
  %211 = vmatpush.xpose.msra.mxu0 0.0
  %212 = vmatpush.xpose.msra.mxu0 0.0
  %213 = vmatpush.xpose.msra.mxu0 0.0
  %214 = vmatpush.xpose.msra.mxu0 0.0
  %215 = vmatpush.xpose.msra.mxu0 0.0
  %216 = vmatpush.xpose.msra.mxu0 0.0
  %217 = vmatpush.xpose.msra.mxu0 0.0
  %218 = vmatpush.xpose.msra.mxu0 0.0
  %219 = vmatpush.xpose.msra.mxu0 0.0
  %220 = vmatpush.xpose.msra.mxu0 0.0
  %221 = vmatpush.xpose.msra.mxu0 0.0
  %222 = vmatpush.xpose.msra.mxu0 0.0
  %223 = vmatpush.xpose.msra.mxu0 0.0
  %224 = vmatpush.xpose.msra.mxu0 0.0
  %225 = vmatpush.xpose.msra.mxu0 %v208
  %226 = vmatmul.f32.gmra.mxu0 %v206
  %v227 = vpop.f32.mrf.mxu0
  %v228 = vadd.f32 %v52, %v227
  %229 = vdwg.mxu0
  %v230 = vsel %vm140, %v228, -inf
  %231 = vmax.xlane.f32.xlu0 %v230
  %v232 = vpop.xlane.xlu0 %231
  %v233 = vsub.f32 %v228, %v232
  %v234 = vmul.f32 %v233, 1.442695
  %v235 = vpow.pop %v234
  %v236 = vsel %vm140, %v235, 0.0
  %237 = vadd.xlane.f32.xlu0 %v236
  %v238 = vpop.xlane.xlu0 %237
  %v239 = vrcp.pop %v238
  %v240 = vmul.f32 %v235, %v239
  %241 = vrot.lane.b32.xlu0 %v132, 56
  %v242 = vpop.permute.xlu0 %241
  %v245 = vsel %vm140, %v240, 0
  %247 = vmatpush.msra.mxu0 0.0
  %248 = vmatpush.msra.mxu0 0.0
  %249 = vmatpush.msra.mxu0 0.0
  %250 = vmatpush.msra.mxu0 0.0
  %251 = vmatpush.msra.mxu0 0.0
  %252 = vmatpush.msra.mxu0 0.0
  %253 = vmatpush.msra.mxu0 0.0
  %254 = vmatpush.msra.mxu0 0.0
  %255 = vmatpush.msra.mxu0 0.0
  %256 = vmatpush.msra.mxu0 0.0
  %257 = vmatpush.msra.mxu0 0.0
  %258 = vmatpush.msra.mxu0 0.0
  %259 = vmatpush.msra.mxu0 0.0
  %260 = vmatpush.msra.mxu0 0.0
  %261 = vmatpush.msra.mxu0 0.0
  %262 = vmatpush.msra.mxu0 %v242
  %263 = vmatmul.f32.gmra.mxu0 %v245
  %v264 = vpop.f32.mrf.mxu0
  %v265 = vadd.f32 0.0, %v264
  %266 = vdwg.mxu0
  %267 = vrot.lane.b32.xlu0 %v132, 112
  %v268 = vpop.permute.xlu0 %267
  %269 = vrot.lane.b32.xlu0 %v132, 80
  %v270 = vpop.permute.xlu0 %269
  %v271 = vsel %vm140, %v268, 0
  %v273 = vsel %vm140, %v270, 0
  %275 = vmatpush.xpose.msra.mxu0 0.0
  %276 = vmatpush.xpose.msra.mxu0 0.0
  %277 = vmatpush.xpose.msra.mxu0 0.0
  %278 = vmatpush.xpose.msra.mxu0 0.0
  %279 = vmatpush.xpose.msra.mxu0 0.0
  %280 = vmatpush.xpose.msra.mxu0 0.0
  %281 = vmatpush.xpose.msra.mxu0 0.0
  %282 = vmatpush.xpose.msra.mxu0 0.0
  %283 = vmatpush.xpose.msra.mxu0 0.0
  %284 = vmatpush.xpose.msra.mxu0 0.0
  %285 = vmatpush.xpose.msra.mxu0 0.0
  %286 = vmatpush.xpose.msra.mxu0 0.0
  %287 = vmatpush.xpose.msra.mxu0 0.0
  %288 = vmatpush.xpose.msra.mxu0 0.0
  %289 = vmatpush.xpose.msra.mxu0 0.0
  %290 = vmatpush.xpose.msra.mxu0 %v273
  %291 = vmatmul.f32.gmra.mxu0 %v271
  %v292 = vpop.f32.mrf.mxu0
  %v293 = vadd.f32 %v53, %v292
  %294 = vdwg.mxu0
  %v295 = vsel %vm140, %v293, -inf
  %296 = vmax.xlane.f32.xlu0 %v295
  %v297 = vpop.xlane.xlu0 %296
  %v298 = vsub.f32 %v293, %v297
  %v299 = vmul.f32 %v298, 1.442695
  %v300 = vpow.pop %v299
  %v301 = vsel %vm140, %v300, 0.0
  %302 = vadd.xlane.f32.xlu0 %v301
  %v303 = vpop.xlane.xlu0 %302
  %v304 = vrcp.pop %v303
  %v305 = vmul.f32 %v300, %v304
  %306 = vrot.lane.b32.xlu0 %v132, 48
  %v307 = vpop.permute.xlu0 %306
  %v310 = vsel %vm140, %v305, 0
  %312 = vmatpush.msra.mxu0 0.0
  %313 = vmatpush.msra.mxu0 0.0
  %314 = vmatpush.msra.mxu0 0.0
  %315 = vmatpush.msra.mxu0 0.0
  %316 = vmatpush.msra.mxu0 0.0
  %317 = vmatpush.msra.mxu0 0.0
  %318 = vmatpush.msra.mxu0 0.0
  %319 = vmatpush.msra.mxu0 0.0
  %320 = vmatpush.msra.mxu0 0.0
  %321 = vmatpush.msra.mxu0 0.0
  %322 = vmatpush.msra.mxu0 0.0
  %323 = vmatpush.msra.mxu0 0.0
  %324 = vmatpush.msra.mxu0 0.0
  %325 = vmatpush.msra.mxu0 0.0
  %326 = vmatpush.msra.mxu0 0.0
  %327 = vmatpush.msra.mxu0 %v307
  %328 = vmatmul.f32.gmra.mxu0 %v310
  %v329 = vpop.f32.mrf.mxu0
  %v330 = vadd.f32 0.0, %v329
  %331 = vdwg.mxu0
  %332 = vrot.lane.b32.xlu0 %v132, 104
  %v333 = vpop.permute.xlu0 %332
  %334 = vrot.lane.b32.xlu0 %v132, 72
  %v335 = vpop.permute.xlu0 %334
  %v336 = vsel %vm140, %v333, 0
  %v338 = vsel %vm140, %v335, 0
  %340 = vmatpush.xpose.msra.mxu0 0.0
  %341 = vmatpush.xpose.msra.mxu0 0.0
  %342 = vmatpush.xpose.msra.mxu0 0.0
  %343 = vmatpush.xpose.msra.mxu0 0.0
  %344 = vmatpush.xpose.msra.mxu0 0.0
  %345 = vmatpush.xpose.msra.mxu0 0.0
  %346 = vmatpush.xpose.msra.mxu0 0.0
  %347 = vmatpush.xpose.msra.mxu0 0.0
  %348 = vmatpush.xpose.msra.mxu0 0.0
  %349 = vmatpush.xpose.msra.mxu0 0.0
  %350 = vmatpush.xpose.msra.mxu0 0.0
  %351 = vmatpush.xpose.msra.mxu0 0.0
  %352 = vmatpush.xpose.msra.mxu0 0.0
  %353 = vmatpush.xpose.msra.mxu0 0.0
  %354 = vmatpush.xpose.msra.mxu0 0.0
  %355 = vmatpush.xpose.msra.mxu0 %v338
  %356 = vmatmul.f32.gmra.mxu0 %v336
  %v357 = vpop.f32.mrf.mxu0
  %v358 = vadd.f32 %v54, %v357
  %359 = vdwg.mxu0
  %v360 = vsel %vm140, %v358, -inf
  %361 = vmax.xlane.f32.xlu0 %v360
  %v362 = vpop.xlane.xlu0 %361
  %v363 = vsub.f32 %v358, %v362
  %v364 = vmul.f32 %v363, 1.442695
  %v365 = vpow.pop %v364
  %v366 = vsel %vm140, %v365, 0.0
  %367 = vadd.xlane.f32.xlu0 %v366
  %v368 = vpop.xlane.xlu0 %367
  %v369 = vrcp.pop %v368
  %v370 = vmul.f32 %v365, %v369
  %371 = vrot.lane.b32.xlu0 %v132, 40
  %v372 = vpop.permute.xlu0 %371
  %v375 = vsel %vm140, %v370, 0
  %377 = vmatpush.msra.mxu0 0.0
  %378 = vmatpush.msra.mxu0 0.0
  %379 = vmatpush.msra.mxu0 0.0
  %380 = vmatpush.msra.mxu0 0.0
  %381 = vmatpush.msra.mxu0 0.0
  %382 = vmatpush.msra.mxu0 0.0
  %383 = vmatpush.msra.mxu0 0.0
  %384 = vmatpush.msra.mxu0 0.0
  %385 = vmatpush.msra.mxu0 0.0
  %386 = vmatpush.msra.mxu0 0.0
  %387 = vmatpush.msra.mxu0 0.0
  %388 = vmatpush.msra.mxu0 0.0
  %389 = vmatpush.msra.mxu0 0.0
  %390 = vmatpush.msra.mxu0 0.0
  %391 = vmatpush.msra.mxu0 0.0
  %392 = vmatpush.msra.mxu0 %v372
  %393 = vmatmul.f32.gmra.mxu0 %v375
  %v394 = vpop.f32.mrf.mxu0
  %v395 = vadd.f32 0.0, %v394
  %396 = vdwg.mxu0
  %398 = vrot.lane.b32.xlu0 %v265, 8
  %v399 = vpop.permute.xlu0 %398
  %402 = vrot.lane.b32.xlu0 %v330, 16
  %v403 = vpop.permute.xlu0 %402
  %406 = vrot.lane.b32.xlu0 %v395, 24
  %v407 = vpop.permute.xlu0 %406
  %v409 = vsel %vm140, %v200, %v399
  %vm410 = vcmask 130048
  %v411 = vsel %vm410, %v409, %v403
  %vm412 = vcmask 195584
  %v413 = vsel %vm412, %v411, %v407
  %415 = vrot.lane.b32.xlu0 %v135, 96
  %v416 = vpop.permute.xlu0 %415
  %v417 = vsel %vm140, %v135, 0
  %v419 = vsel %vm140, %v416, 0
  %421 = vmatpush.xpose.msra.mxu0 0.0
  %422 = vmatpush.xpose.msra.mxu0 0.0
  %423 = vmatpush.xpose.msra.mxu0 0.0
  %424 = vmatpush.xpose.msra.mxu0 0.0
  %425 = vmatpush.xpose.msra.mxu0 0.0
  %426 = vmatpush.xpose.msra.mxu0 0.0
  %427 = vmatpush.xpose.msra.mxu0 0.0
  %428 = vmatpush.xpose.msra.mxu0 0.0
  %429 = vmatpush.xpose.msra.mxu0 0.0
  %430 = vmatpush.xpose.msra.mxu0 0.0
  %431 = vmatpush.xpose.msra.mxu0 0.0
  %432 = vmatpush.xpose.msra.mxu0 0.0
  %433 = vmatpush.xpose.msra.mxu0 0.0
  %434 = vmatpush.xpose.msra.mxu0 0.0
  %435 = vmatpush.xpose.msra.mxu0 0.0
  %436 = vmatpush.xpose.msra.mxu0 %v419
  %437 = vmatmul.f32.gmra.mxu0 %v417
  %v438 = vpop.f32.mrf.mxu0
  %v439 = vadd.f32 %v51, %v438
  %440 = vdwg.mxu0
  %v441 = vsel %vm140, %v439, -inf
  %442 = vmax.xlane.f32.xlu0 %v441
  %v443 = vpop.xlane.xlu0 %442
  %v444 = vsub.f32 %v439, %v443
  %v445 = vmul.f32 %v444, 1.442695
  %v446 = vpow.pop %v445
  %v447 = vsel %vm140, %v446, 0.0
  %448 = vadd.xlane.f32.xlu0 %v447
  %v449 = vpop.xlane.xlu0 %448
  %v450 = vrcp.pop %v449
  %v451 = vmul.f32 %v446, %v450
  %452 = vrot.lane.b32.xlu0 %v135, 64
  %v453 = vpop.permute.xlu0 %452
  %v456 = vsel %vm140, %v451, 0
  %458 = vmatpush.msra.mxu0 0.0
  %459 = vmatpush.msra.mxu0 0.0
  %460 = vmatpush.msra.mxu0 0.0
  %461 = vmatpush.msra.mxu0 0.0
  %462 = vmatpush.msra.mxu0 0.0
  %463 = vmatpush.msra.mxu0 0.0
  %464 = vmatpush.msra.mxu0 0.0
  %465 = vmatpush.msra.mxu0 0.0
  %466 = vmatpush.msra.mxu0 0.0
  %467 = vmatpush.msra.mxu0 0.0
  %468 = vmatpush.msra.mxu0 0.0
  %469 = vmatpush.msra.mxu0 0.0
  %470 = vmatpush.msra.mxu0 0.0
  %471 = vmatpush.msra.mxu0 0.0
  %472 = vmatpush.msra.mxu0 0.0
  %473 = vmatpush.msra.mxu0 %v453
  %474 = vmatmul.f32.gmra.mxu0 %v456
  %v475 = vpop.f32.mrf.mxu0
  %v476 = vadd.f32 0.0, %v475
  %477 = vdwg.mxu0
  %478 = vrot.lane.b32.xlu0 %v135, 120
  %v479 = vpop.permute.xlu0 %478
  %480 = vrot.lane.b32.xlu0 %v135, 88
  %v481 = vpop.permute.xlu0 %480
  %v482 = vsel %vm140, %v479, 0
  %v484 = vsel %vm140, %v481, 0
  %486 = vmatpush.xpose.msra.mxu0 0.0
  %487 = vmatpush.xpose.msra.mxu0 0.0
  %488 = vmatpush.xpose.msra.mxu0 0.0
  %489 = vmatpush.xpose.msra.mxu0 0.0
  %490 = vmatpush.xpose.msra.mxu0 0.0
  %491 = vmatpush.xpose.msra.mxu0 0.0
  %492 = vmatpush.xpose.msra.mxu0 0.0
  %493 = vmatpush.xpose.msra.mxu0 0.0
  %494 = vmatpush.xpose.msra.mxu0 0.0
  %495 = vmatpush.xpose.msra.mxu0 0.0
  %496 = vmatpush.xpose.msra.mxu0 0.0
  %497 = vmatpush.xpose.msra.mxu0 0.0
  %498 = vmatpush.xpose.msra.mxu0 0.0
  %499 = vmatpush.xpose.msra.mxu0 0.0
  %500 = vmatpush.xpose.msra.mxu0 0.0
  %501 = vmatpush.xpose.msra.mxu0 %v484
  %502 = vmatmul.f32.gmra.mxu0 %v482
  %v503 = vpop.f32.mrf.mxu0
  %v504 = vadd.f32 %v52, %v503
  %505 = vdwg.mxu0
  %v506 = vsel %vm140, %v504, -inf
  %507 = vmax.xlane.f32.xlu0 %v506
  %v508 = vpop.xlane.xlu0 %507
  %v509 = vsub.f32 %v504, %v508
  %v510 = vmul.f32 %v509, 1.442695
  %v511 = vpow.pop %v510
  %v512 = vsel %vm140, %v511, 0.0
  %513 = vadd.xlane.f32.xlu0 %v512
  %v514 = vpop.xlane.xlu0 %513
  %v515 = vrcp.pop %v514
  %v516 = vmul.f32 %v511, %v515
  %517 = vrot.lane.b32.xlu0 %v135, 56
  %v518 = vpop.permute.xlu0 %517
  %v521 = vsel %vm140, %v516, 0
  %523 = vmatpush.msra.mxu0 0.0
  %524 = vmatpush.msra.mxu0 0.0
  %525 = vmatpush.msra.mxu0 0.0
  %526 = vmatpush.msra.mxu0 0.0
  %527 = vmatpush.msra.mxu0 0.0
  %528 = vmatpush.msra.mxu0 0.0
  %529 = vmatpush.msra.mxu0 0.0
  %530 = vmatpush.msra.mxu0 0.0
  %531 = vmatpush.msra.mxu0 0.0
  %532 = vmatpush.msra.mxu0 0.0
  %533 = vmatpush.msra.mxu0 0.0
  %534 = vmatpush.msra.mxu0 0.0
  %535 = vmatpush.msra.mxu0 0.0
  %536 = vmatpush.msra.mxu0 0.0
  %537 = vmatpush.msra.mxu0 0.0
  %538 = vmatpush.msra.mxu0 %v518
  %539 = vmatmul.f32.gmra.mxu0 %v521
  %v540 = vpop.f32.mrf.mxu0
  %v541 = vadd.f32 0.0, %v540
  %542 = vdwg.mxu0
  %543 = vrot.lane.b32.xlu0 %v135, 112
  %v544 = vpop.permute.xlu0 %543
  %545 = vrot.lane.b32.xlu0 %v135, 80
  %v546 = vpop.permute.xlu0 %545
  %v547 = vsel %vm140, %v544, 0
  %v549 = vsel %vm140, %v546, 0
  %551 = vmatpush.xpose.msra.mxu0 0.0
  %552 = vmatpush.xpose.msra.mxu0 0.0
  %553 = vmatpush.xpose.msra.mxu0 0.0
  %554 = vmatpush.xpose.msra.mxu0 0.0
  %555 = vmatpush.xpose.msra.mxu0 0.0
  %556 = vmatpush.xpose.msra.mxu0 0.0
  %557 = vmatpush.xpose.msra.mxu0 0.0
  %558 = vmatpush.xpose.msra.mxu0 0.0
  %559 = vmatpush.xpose.msra.mxu0 0.0
  %560 = vmatpush.xpose.msra.mxu0 0.0
  %561 = vmatpush.xpose.msra.mxu0 0.0
  %562 = vmatpush.xpose.msra.mxu0 0.0
  %563 = vmatpush.xpose.msra.mxu0 0.0
  %564 = vmatpush.xpose.msra.mxu0 0.0
  %565 = vmatpush.xpose.msra.mxu0 0.0
  %566 = vmatpush.xpose.msra.mxu0 %v549
  %567 = vmatmul.f32.gmra.mxu0 %v547
  %v568 = vpop.f32.mrf.mxu0
  %v569 = vadd.f32 %v53, %v568
  %570 = vdwg.mxu0
  %v571 = vsel %vm140, %v569, -inf
  %572 = vmax.xlane.f32.xlu0 %v571
  %v573 = vpop.xlane.xlu0 %572
  %v574 = vsub.f32 %v569, %v573
  %v575 = vmul.f32 %v574, 1.442695
  %v576 = vpow.pop %v575
  %v577 = vsel %vm140, %v576, 0.0
  %578 = vadd.xlane.f32.xlu0 %v577
  %v579 = vpop.xlane.xlu0 %578
  %v580 = vrcp.pop %v579
  %v581 = vmul.f32 %v576, %v580
  %582 = vrot.lane.b32.xlu0 %v135, 48
  %v583 = vpop.permute.xlu0 %582
  %v586 = vsel %vm140, %v581, 0
  %588 = vmatpush.msra.mxu0 0.0
  %589 = vmatpush.msra.mxu0 0.0
  %590 = vmatpush.msra.mxu0 0.0
  %591 = vmatpush.msra.mxu0 0.0
  %592 = vmatpush.msra.mxu0 0.0
  %593 = vmatpush.msra.mxu0 0.0
  %594 = vmatpush.msra.mxu0 0.0
  %595 = vmatpush.msra.mxu0 0.0
  %596 = vmatpush.msra.mxu0 0.0
  %597 = vmatpush.msra.mxu0 0.0
  %598 = vmatpush.msra.mxu0 0.0
  %599 = vmatpush.msra.mxu0 0.0
  %600 = vmatpush.msra.mxu0 0.0
  %601 = vmatpush.msra.mxu0 0.0
  %602 = vmatpush.msra.mxu0 0.0
  %603 = vmatpush.msra.mxu0 %v583
  %604 = vmatmul.f32.gmra.mxu0 %v586
  %v605 = vpop.f32.mrf.mxu0
  %v606 = vadd.f32 0.0, %v605
  %607 = vdwg.mxu0
  %608 = vrot.lane.b32.xlu0 %v135, 104
  %v609 = vpop.permute.xlu0 %608
  %610 = vrot.lane.b32.xlu0 %v135, 72
  %v611 = vpop.permute.xlu0 %610
  %v612 = vsel %vm140, %v609, 0
  %v614 = vsel %vm140, %v611, 0
  %616 = vmatpush.xpose.msra.mxu0 0.0
  %617 = vmatpush.xpose.msra.mxu0 0.0
  %618 = vmatpush.xpose.msra.mxu0 0.0
  %619 = vmatpush.xpose.msra.mxu0 0.0
  %620 = vmatpush.xpose.msra.mxu0 0.0
  %621 = vmatpush.xpose.msra.mxu0 0.0
  %622 = vmatpush.xpose.msra.mxu0 0.0
  %623 = vmatpush.xpose.msra.mxu0 0.0
  %624 = vmatpush.xpose.msra.mxu0 0.0
  %625 = vmatpush.xpose.msra.mxu0 0.0
  %626 = vmatpush.xpose.msra.mxu0 0.0
  %627 = vmatpush.xpose.msra.mxu0 0.0
  %628 = vmatpush.xpose.msra.mxu0 0.0
  %629 = vmatpush.xpose.msra.mxu0 0.0
  %630 = vmatpush.xpose.msra.mxu0 0.0
  %631 = vmatpush.xpose.msra.mxu0 %v614
  %632 = vmatmul.f32.gmra.mxu0 %v612
  %v633 = vpop.f32.mrf.mxu0
  %v634 = vadd.f32 %v54, %v633
  %635 = vdwg.mxu0
  %v636 = vsel %vm140, %v634, -inf
  %637 = vmax.xlane.f32.xlu0 %v636
  %v638 = vpop.xlane.xlu0 %637
  %v639 = vsub.f32 %v634, %v638
  %v640 = vmul.f32 %v639, 1.442695
  %v641 = vpow.pop %v640
  %v642 = vsel %vm140, %v641, 0.0
  %643 = vadd.xlane.f32.xlu0 %v642
  %v644 = vpop.xlane.xlu0 %643
  %v645 = vrcp.pop %v644
  %v646 = vmul.f32 %v641, %v645
  %647 = vrot.lane.b32.xlu0 %v135, 40
  %v648 = vpop.permute.xlu0 %647
  %v651 = vsel %vm140, %v646, 0
  %653 = vmatpush.msra.mxu0 0.0
  %654 = vmatpush.msra.mxu0 0.0
  %655 = vmatpush.msra.mxu0 0.0
  %656 = vmatpush.msra.mxu0 0.0
  %657 = vmatpush.msra.mxu0 0.0
  %658 = vmatpush.msra.mxu0 0.0
  %659 = vmatpush.msra.mxu0 0.0
  %660 = vmatpush.msra.mxu0 0.0
  %661 = vmatpush.msra.mxu0 0.0
  %662 = vmatpush.msra.mxu0 0.0
  %663 = vmatpush.msra.mxu0 0.0
  %664 = vmatpush.msra.mxu0 0.0
  %665 = vmatpush.msra.mxu0 0.0
  %666 = vmatpush.msra.mxu0 0.0
  %667 = vmatpush.msra.mxu0 0.0
  %668 = vmatpush.msra.mxu0 %v648
  %669 = vmatmul.f32.gmra.mxu0 %v651
  %v670 = vpop.f32.mrf.mxu0
  %v671 = vadd.f32 0.0, %v670
  %672 = vdwg.mxu0
  %674 = vrot.lane.b32.xlu0 %v541, 8
  %v675 = vpop.permute.xlu0 %674
  %678 = vrot.lane.b32.xlu0 %v606, 16
  %v679 = vpop.permute.xlu0 %678
  %682 = vrot.lane.b32.xlu0 %v671, 24
  %v683 = vpop.permute.xlu0 %682
  %v685 = vsel %vm140, %v476, %v675
  %v686 = vsel %vm410, %v685, %v679
  %v687 = vsel %vm412, %v686, %v683
  %v688 = vld [vmem:[%s4] sm:$0xff]
  %v689 = vld [vmem:[%s4 + $0x8] sm:$0xff]
  %v690 = vld [vmem:[%s4 + $0x10] sm:$0xff]
  %v691 = vld [vmem:[%s4 + $0x18] sm:$0xff]
  %v693 = vsel %vm59, %v413, 0
  %v696 = vsel %vm59, %v687, 0
  %698 = vmatpush.msra.mxu0 0.0
  %699 = vmatpush.msra.mxu0 0.0
  %700 = vmatpush.msra.mxu0 0.0
  %701 = vmatpush.msra.mxu0 0.0
  %702 = vmatpush.msra.mxu0 0.0
  %703 = vmatpush.msra.mxu0 0.0
  %704 = vmatpush.msra.mxu0 0.0
  %705 = vmatpush.msra.mxu0 0.0
  %706 = vmatpush.msra.mxu0 0.0
  %707 = vmatpush.msra.mxu0 0.0
  %708 = vmatpush.msra.mxu0 0.0
  %709 = vmatpush.msra.mxu0 0.0
  %710 = vmatpush.msra.mxu0 %v691
  %711 = vmatpush.msra.mxu0 %v690
  %712 = vmatpush.msra.mxu0 %v689
  %713 = vmatpush.msra.mxu0 %v688
  %714 = vmatmul.f32.gmra.mxu0 %v693
  %v715 = vpop.f32.mrf.mxu0
  %v716 = vadd.f32 0.0, %v715
  %717 = vmatmul.f32.gmra.mxu0 %v696
  %v718 = vpop.f32.mrf.mxu0
  %v719 = vadd.f32 0.0, %v718
  %720 = vdwg.mxu0
  %v721 = vadd.f32 %v47, %v716
  %v722 = vadd.f32 %v48, %v719
  %v723 = vld [vmem:[%s5] sm:$0x1]
  %v724 = vmul.f32 %v721, %v721
  %v725 = vmul.f32 %v722, %v722
  %v726 = vsel %vm59, %v724, 0.0
  %727 = vadd.xlane.f32.xlu0 %v726
  %v728 = vpop.xlane.xlu0 %727
  %v729 = vsel %vm59, %v725, 0.0
  %730 = vadd.xlane.f32.xlu0 %v729
  %v731 = vpop.xlane.xlu0 %730
  %v732 = vmul.f32 %v728, %v72
  %v733 = vmul.f32 %v731, %v72
  %v734 = vadd.f32 %v732, 1e-06
  %v735 = vadd.f32 %v733, 1e-06
  %v736 = vrsqrt.pop %v734
  %v737 = vmul.f32 %v736, %v734
  %v738 = vmul.f32 %v737, %v736
  %v739 = vmul.f32 0.5, %v738
  %v740 = vsub.f32 1.5, %v739
  %v741 = vmul.f32 %v736, %v740
  %vm742 = vweird.f32 %v734
  %vm743 = vweird.f32 %v736
  %vm744 = vmor %vm742, %vm743
  %v745 = vsel %vm744, %v736, %v741
  %v746 = vrsqrt.pop %v735
  %v747 = vmul.f32 %v746, %v735
  %v748 = vmul.f32 %v747, %v746
  %v749 = vmul.f32 0.5, %v748
  %v750 = vsub.f32 1.5, %v749
  %v751 = vmul.f32 %v746, %v750
  %vm752 = vweird.f32 %v735
  %vm753 = vweird.f32 %v746
  %vm754 = vmor %vm752, %vm753
  %v755 = vsel %vm754, %v746, %v751
  %v756 = vmul.f32 %v721, %v745
  %v757 = vmul.f32 %v722, %v755
  %v759 = vperm.slane %v723, 0
  %v761 = vmul.f32 %v756, %v759
  %v762 = vmul.f32 %v757, %v759
  %v763 = vld [vmem:[%s6] sm:$0xff]
  %v764 = vld [vmem:[%s6 + $0x8] sm:$0xff]
  %v765 = vld [vmem:[%s6 + $0x10] sm:$0xff]
  %v766 = vld [vmem:[%s6 + $0x18] sm:$0xff]
  %v768 = vsel %vm59, %v761, 0
  %v771 = vsel %vm59, %v762, 0
  %773 = vmatpush.msra.mxu0 0.0
  %774 = vmatpush.msra.mxu0 0.0
  %775 = vmatpush.msra.mxu0 0.0
  %776 = vmatpush.msra.mxu0 0.0
  %777 = vmatpush.msra.mxu0 0.0
  %778 = vmatpush.msra.mxu0 0.0
  %779 = vmatpush.msra.mxu0 0.0
  %780 = vmatpush.msra.mxu0 0.0
  %781 = vmatpush.msra.mxu0 0.0
  %782 = vmatpush.msra.mxu0 0.0
  %783 = vmatpush.msra.mxu0 0.0
  %784 = vmatpush.msra.mxu0 0.0
  %785 = vmatpush.msra.mxu0 %v766
  %786 = vmatpush.msra.mxu0 %v765
  %787 = vmatpush.msra.mxu0 %v764
  %788 = vmatpush.msra.mxu0 %v763
  %789 = vmatmul.f32.gmra.mxu0 %v768
  %v790 = vpop.f32.mrf.mxu0
  %v791 = vadd.f32 0.0, %v790
  %792 = vmatmul.f32.gmra.mxu0 %v771
  %v793 = vpop.f32.mrf.mxu0
  %v794 = vadd.f32 0.0, %v793
  %795 = vdwg.mxu0
  %v796 = vld [vmem:[%s7] sm:$0xff]
  %v797 = vld [vmem:[%s7 + $0x8] sm:$0xff]
  %v798 = vld [vmem:[%s7 + $0x10] sm:$0xff]
  %v799 = vld [vmem:[%s7 + $0x18] sm:$0xff]
  %v801 = vsel %vm59, %v49, 0
  %v804 = vsel %vm59, %v50, 0
  %806 = vmatpush.msra.mxu0 0.0
  %807 = vmatpush.msra.mxu0 0.0
  %808 = vmatpush.msra.mxu0 0.0
  %809 = vmatpush.msra.mxu0 0.0
  %810 = vmatpush.msra.mxu0 0.0
  %811 = vmatpush.msra.mxu0 0.0
  %812 = vmatpush.msra.mxu0 0.0
  %813 = vmatpush.msra.mxu0 0.0
  %814 = vmatpush.msra.mxu0 0.0
  %815 = vmatpush.msra.mxu0 0.0
  %816 = vmatpush.msra.mxu0 0.0
  %817 = vmatpush.msra.mxu0 0.0
  %818 = vmatpush.msra.mxu0 %v799
  %819 = vmatpush.msra.mxu0 %v798
  %820 = vmatpush.msra.mxu0 %v797
  %821 = vmatpush.msra.mxu0 %v796
  %822 = vmatmul.f32.gmra.mxu0 %v801
  %v823 = vpop.f32.mrf.mxu0
  %v824 = vadd.f32 0.0, %v823
  %825 = vmatmul.f32.gmra.mxu0 %v804
  %v826 = vpop.f32.mrf.mxu0
  %v827 = vadd.f32 0.0, %v826
  %828 = vdwg.mxu0
  %v829 = vperm.slane %v55, 0
  %v831 = vsel %vm140, %v791, 0
  %v834 = vsel %vm140, %v824, 0
  %836 = vmatpush.xpose.msra.mxu0 0.0
  %837 = vmatpush.xpose.msra.mxu0 0.0
  %838 = vmatpush.xpose.msra.mxu0 0.0
  %839 = vmatpush.xpose.msra.mxu0 0.0
  %840 = vmatpush.xpose.msra.mxu0 0.0
  %841 = vmatpush.xpose.msra.mxu0 0.0
  %842 = vmatpush.xpose.msra.mxu0 0.0
  %843 = vmatpush.xpose.msra.mxu0 0.0
  %844 = vmatpush.xpose.msra.mxu0 0.0
  %845 = vmatpush.xpose.msra.mxu0 0.0
  %846 = vmatpush.xpose.msra.mxu0 0.0
  %847 = vmatpush.xpose.msra.mxu0 0.0
  %848 = vmatpush.xpose.msra.mxu0 0.0
  %849 = vmatpush.xpose.msra.mxu0 0.0
  %850 = vmatpush.xpose.msra.mxu0 0.0
  %851 = vmatpush.xpose.msra.mxu0 %v834
  %852 = vmatmul.f32.gmra.mxu0 %v831
  %v853 = vpop.f32.mrf.mxu0
  %v854 = vadd.f32 %v829, %v853
  %855 = vdwg.mxu0
  %v856 = vsel %vm140, %v854, -inf
  %857 = vmax.xlane.f32.xlu0 %v856
  %v858 = vpop.xlane.xlu0 %857
  %v859 = vsub.f32 %v854, %v858
  %v860 = vmul.f32 %v859, 1.442695
  %v861 = vpow.pop %v860
  %v862 = vsel %vm140, %v861, 0.0
  %863 = vadd.xlane.f32.xlu0 %v862
  %v864 = vpop.xlane.xlu0 %863
  %v865 = vrcp.pop %v864
  %v866 = vmul.f32 %v861, %v865
  %867 = vrot.lane.b32.xlu0 %v824, 96
  %v868 = vpop.permute.xlu0 %867
  %v871 = vsel %vm140, %v866, 0
  %873 = vmatpush.msra.mxu0 0.0
  %874 = vmatpush.msra.mxu0 0.0
  %875 = vmatpush.msra.mxu0 0.0
  %876 = vmatpush.msra.mxu0 0.0
  %877 = vmatpush.msra.mxu0 0.0
  %878 = vmatpush.msra.mxu0 0.0
  %879 = vmatpush.msra.mxu0 0.0
  %880 = vmatpush.msra.mxu0 0.0
  %881 = vmatpush.msra.mxu0 0.0
  %882 = vmatpush.msra.mxu0 0.0
  %883 = vmatpush.msra.mxu0 0.0
  %884 = vmatpush.msra.mxu0 0.0
  %885 = vmatpush.msra.mxu0 0.0
  %886 = vmatpush.msra.mxu0 0.0
  %887 = vmatpush.msra.mxu0 0.0
  %888 = vmatpush.msra.mxu0 %v868
  %889 = vmatmul.f32.gmra.mxu0 %v871
  %v890 = vpop.f32.mrf.mxu0
  %v891 = vadd.f32 0.0, %v890
  %892 = vdwg.mxu0
  %893 = vrot.lane.b32.xlu0 %v791, 120
  %v894 = vpop.permute.xlu0 %893
  %895 = vrot.lane.b32.xlu0 %v824, 120
  %v896 = vpop.permute.xlu0 %895
  %v897 = vsel %vm140, %v894, 0
  %v899 = vsel %vm140, %v896, 0
  %901 = vmatpush.xpose.msra.mxu0 0.0
  %902 = vmatpush.xpose.msra.mxu0 0.0
  %903 = vmatpush.xpose.msra.mxu0 0.0
  %904 = vmatpush.xpose.msra.mxu0 0.0
  %905 = vmatpush.xpose.msra.mxu0 0.0
  %906 = vmatpush.xpose.msra.mxu0 0.0
  %907 = vmatpush.xpose.msra.mxu0 0.0
  %908 = vmatpush.xpose.msra.mxu0 0.0
  %909 = vmatpush.xpose.msra.mxu0 0.0
  %910 = vmatpush.xpose.msra.mxu0 0.0
  %911 = vmatpush.xpose.msra.mxu0 0.0
  %912 = vmatpush.xpose.msra.mxu0 0.0
  %913 = vmatpush.xpose.msra.mxu0 0.0
  %914 = vmatpush.xpose.msra.mxu0 0.0
  %915 = vmatpush.xpose.msra.mxu0 0.0
  %916 = vmatpush.xpose.msra.mxu0 %v899
  %917 = vmatmul.f32.gmra.mxu0 %v897
  %v918 = vpop.f32.mrf.mxu0
  %v919 = vadd.f32 %v829, %v918
  %920 = vdwg.mxu0
  %v921 = vsel %vm140, %v919, -inf
  %922 = vmax.xlane.f32.xlu0 %v921
  %v923 = vpop.xlane.xlu0 %922
  %v924 = vsub.f32 %v919, %v923
  %v925 = vmul.f32 %v924, 1.442695
  %v926 = vpow.pop %v925
  %v927 = vsel %vm140, %v926, 0.0
  %928 = vadd.xlane.f32.xlu0 %v927
  %v929 = vpop.xlane.xlu0 %928
  %v930 = vrcp.pop %v929
  %v931 = vmul.f32 %v926, %v930
  %932 = vrot.lane.b32.xlu0 %v824, 88
  %v933 = vpop.permute.xlu0 %932
  %v936 = vsel %vm140, %v931, 0
  %938 = vmatpush.msra.mxu0 0.0
  %939 = vmatpush.msra.mxu0 0.0
  %940 = vmatpush.msra.mxu0 0.0
  %941 = vmatpush.msra.mxu0 0.0
  %942 = vmatpush.msra.mxu0 0.0
  %943 = vmatpush.msra.mxu0 0.0
  %944 = vmatpush.msra.mxu0 0.0
  %945 = vmatpush.msra.mxu0 0.0
  %946 = vmatpush.msra.mxu0 0.0
  %947 = vmatpush.msra.mxu0 0.0
  %948 = vmatpush.msra.mxu0 0.0
  %949 = vmatpush.msra.mxu0 0.0
  %950 = vmatpush.msra.mxu0 0.0
  %951 = vmatpush.msra.mxu0 0.0
  %952 = vmatpush.msra.mxu0 0.0
  %953 = vmatpush.msra.mxu0 %v933
  %954 = vmatmul.f32.gmra.mxu0 %v936
  %v955 = vpop.f32.mrf.mxu0
  %v956 = vadd.f32 0.0, %v955
  %957 = vdwg.mxu0
  %958 = vrot.lane.b32.xlu0 %v791, 112
  %v959 = vpop.permute.xlu0 %958
  %960 = vrot.lane.b32.xlu0 %v824, 112
  %v961 = vpop.permute.xlu0 %960
  %v962 = vsel %vm140, %v959, 0
  %v964 = vsel %vm140, %v961, 0
  %966 = vmatpush.xpose.msra.mxu0 0.0
  %967 = vmatpush.xpose.msra.mxu0 0.0
  %968 = vmatpush.xpose.msra.mxu0 0.0
  %969 = vmatpush.xpose.msra.mxu0 0.0
  %970 = vmatpush.xpose.msra.mxu0 0.0
  %971 = vmatpush.xpose.msra.mxu0 0.0
  %972 = vmatpush.xpose.msra.mxu0 0.0
  %973 = vmatpush.xpose.msra.mxu0 0.0
  %974 = vmatpush.xpose.msra.mxu0 0.0
  %975 = vmatpush.xpose.msra.mxu0 0.0
  %976 = vmatpush.xpose.msra.mxu0 0.0
  %977 = vmatpush.xpose.msra.mxu0 0.0
  %978 = vmatpush.xpose.msra.mxu0 0.0
  %979 = vmatpush.xpose.msra.mxu0 0.0
  %980 = vmatpush.xpose.msra.mxu0 0.0
  %981 = vmatpush.xpose.msra.mxu0 %v964
  %982 = vmatmul.f32.gmra.mxu0 %v962
  %v983 = vpop.f32.mrf.mxu0
  %v984 = vadd.f32 %v829, %v983
  %985 = vdwg.mxu0
  %v986 = vsel %vm140, %v984, -inf
  %987 = vmax.xlane.f32.xlu0 %v986
  %v988 = vpop.xlane.xlu0 %987
  %v989 = vsub.f32 %v984, %v988
  %v990 = vmul.f32 %v989, 1.442695
  %v991 = vpow.pop %v990
  %v992 = vsel %vm140, %v991, 0.0
  %993 = vadd.xlane.f32.xlu0 %v992
  %v994 = vpop.xlane.xlu0 %993
  %v995 = vrcp.pop %v994
  %v996 = vmul.f32 %v991, %v995
  %997 = vrot.lane.b32.xlu0 %v824, 80
  %v998 = vpop.permute.xlu0 %997
  %v1001 = vsel %vm140, %v996, 0
  %1003 = vmatpush.msra.mxu0 0.0
  %1004 = vmatpush.msra.mxu0 0.0
  %1005 = vmatpush.msra.mxu0 0.0
  %1006 = vmatpush.msra.mxu0 0.0
  %1007 = vmatpush.msra.mxu0 0.0
  %1008 = vmatpush.msra.mxu0 0.0
  %1009 = vmatpush.msra.mxu0 0.0
  %1010 = vmatpush.msra.mxu0 0.0
  %1011 = vmatpush.msra.mxu0 0.0
  %1012 = vmatpush.msra.mxu0 0.0
  %1013 = vmatpush.msra.mxu0 0.0
  %1014 = vmatpush.msra.mxu0 0.0
  %1015 = vmatpush.msra.mxu0 0.0
  %1016 = vmatpush.msra.mxu0 0.0
  %1017 = vmatpush.msra.mxu0 0.0
  %1018 = vmatpush.msra.mxu0 %v998
  %1019 = vmatmul.f32.gmra.mxu0 %v1001
  %v1020 = vpop.f32.mrf.mxu0
  %v1021 = vadd.f32 0.0, %v1020
  %1022 = vdwg.mxu0
  %1023 = vrot.lane.b32.xlu0 %v791, 104
  %v1024 = vpop.permute.xlu0 %1023
  %1025 = vrot.lane.b32.xlu0 %v824, 104
  %v1026 = vpop.permute.xlu0 %1025
  %v1027 = vsel %vm140, %v1024, 0
  %v1029 = vsel %vm140, %v1026, 0
  %1031 = vmatpush.xpose.msra.mxu0 0.0
  %1032 = vmatpush.xpose.msra.mxu0 0.0
  %1033 = vmatpush.xpose.msra.mxu0 0.0
  %1034 = vmatpush.xpose.msra.mxu0 0.0
  %1035 = vmatpush.xpose.msra.mxu0 0.0
  %1036 = vmatpush.xpose.msra.mxu0 0.0
  %1037 = vmatpush.xpose.msra.mxu0 0.0
  %1038 = vmatpush.xpose.msra.mxu0 0.0
  %1039 = vmatpush.xpose.msra.mxu0 0.0
  %1040 = vmatpush.xpose.msra.mxu0 0.0
  %1041 = vmatpush.xpose.msra.mxu0 0.0
  %1042 = vmatpush.xpose.msra.mxu0 0.0
  %1043 = vmatpush.xpose.msra.mxu0 0.0
  %1044 = vmatpush.xpose.msra.mxu0 0.0
  %1045 = vmatpush.xpose.msra.mxu0 0.0
  %1046 = vmatpush.xpose.msra.mxu0 %v1029
  %1047 = vmatmul.f32.gmra.mxu0 %v1027
  %v1048 = vpop.f32.mrf.mxu0
  %v1049 = vadd.f32 %v829, %v1048
  %1050 = vdwg.mxu0
  %v1051 = vsel %vm140, %v1049, -inf
  %1052 = vmax.xlane.f32.xlu0 %v1051
  %v1053 = vpop.xlane.xlu0 %1052
  %v1054 = vsub.f32 %v1049, %v1053
  %v1055 = vmul.f32 %v1054, 1.442695
  %v1056 = vpow.pop %v1055
  %v1057 = vsel %vm140, %v1056, 0.0
  %1058 = vadd.xlane.f32.xlu0 %v1057
  %v1059 = vpop.xlane.xlu0 %1058
  %v1060 = vrcp.pop %v1059
  %v1061 = vmul.f32 %v1056, %v1060
  %1062 = vrot.lane.b32.xlu0 %v824, 72
  %v1063 = vpop.permute.xlu0 %1062
  %v1066 = vsel %vm140, %v1061, 0
  %1068 = vmatpush.msra.mxu0 0.0
  %1069 = vmatpush.msra.mxu0 0.0
  %1070 = vmatpush.msra.mxu0 0.0
  %1071 = vmatpush.msra.mxu0 0.0
  %1072 = vmatpush.msra.mxu0 0.0
  %1073 = vmatpush.msra.mxu0 0.0
  %1074 = vmatpush.msra.mxu0 0.0
  %1075 = vmatpush.msra.mxu0 0.0
  %1076 = vmatpush.msra.mxu0 0.0
  %1077 = vmatpush.msra.mxu0 0.0
  %1078 = vmatpush.msra.mxu0 0.0
  %1079 = vmatpush.msra.mxu0 0.0
  %1080 = vmatpush.msra.mxu0 0.0
  %1081 = vmatpush.msra.mxu0 0.0
  %1082 = vmatpush.msra.mxu0 0.0
  %1083 = vmatpush.msra.mxu0 %v1063
  %1084 = vmatmul.f32.gmra.mxu0 %v1066
  %v1085 = vpop.f32.mrf.mxu0
  %v1086 = vadd.f32 0.0, %v1085
  %1087 = vdwg.mxu0
  %1089 = vrot.lane.b32.xlu0 %v956, 8
  %v1090 = vpop.permute.xlu0 %1089
  %1093 = vrot.lane.b32.xlu0 %v1021, 16
  %v1094 = vpop.permute.xlu0 %1093
  %1097 = vrot.lane.b32.xlu0 %v1086, 24
  %v1098 = vpop.permute.xlu0 %1097
  %v1100 = vsel %vm140, %v891, %v1090
  %v1101 = vsel %vm410, %v1100, %v1094
  %v1102 = vsel %vm412, %v1101, %v1098
  %v1103 = vperm.slane %v55, 1
  %v1105 = vsel %vm140, %v794, 0
  %v1108 = vsel %vm140, %v827, 0
  %1110 = vmatpush.xpose.msra.mxu0 0.0
  %1111 = vmatpush.xpose.msra.mxu0 0.0
  %1112 = vmatpush.xpose.msra.mxu0 0.0
  %1113 = vmatpush.xpose.msra.mxu0 0.0
  %1114 = vmatpush.xpose.msra.mxu0 0.0
  %1115 = vmatpush.xpose.msra.mxu0 0.0
  %1116 = vmatpush.xpose.msra.mxu0 0.0
  %1117 = vmatpush.xpose.msra.mxu0 0.0
  %1118 = vmatpush.xpose.msra.mxu0 0.0
  %1119 = vmatpush.xpose.msra.mxu0 0.0
  %1120 = vmatpush.xpose.msra.mxu0 0.0
  %1121 = vmatpush.xpose.msra.mxu0 0.0
  %1122 = vmatpush.xpose.msra.mxu0 0.0
  %1123 = vmatpush.xpose.msra.mxu0 0.0
  %1124 = vmatpush.xpose.msra.mxu0 0.0
  %1125 = vmatpush.xpose.msra.mxu0 %v1108
  %1126 = vmatmul.f32.gmra.mxu0 %v1105
  %v1127 = vpop.f32.mrf.mxu0
  %v1128 = vadd.f32 %v1103, %v1127
  %1129 = vdwg.mxu0
  %v1130 = vsel %vm140, %v1128, -inf
  %1131 = vmax.xlane.f32.xlu0 %v1130
  %v1132 = vpop.xlane.xlu0 %1131
  %v1133 = vsub.f32 %v1128, %v1132
  %v1134 = vmul.f32 %v1133, 1.442695
  %v1135 = vpow.pop %v1134
  %v1136 = vsel %vm140, %v1135, 0.0
  %1137 = vadd.xlane.f32.xlu0 %v1136
  %v1138 = vpop.xlane.xlu0 %1137
  %v1139 = vrcp.pop %v1138
  %v1140 = vmul.f32 %v1135, %v1139
  %1141 = vrot.lane.b32.xlu0 %v827, 96
  %v1142 = vpop.permute.xlu0 %1141
  %v1145 = vsel %vm140, %v1140, 0
  %1147 = vmatpush.msra.mxu0 0.0
  %1148 = vmatpush.msra.mxu0 0.0
  %1149 = vmatpush.msra.mxu0 0.0
  %1150 = vmatpush.msra.mxu0 0.0
  %1151 = vmatpush.msra.mxu0 0.0
  %1152 = vmatpush.msra.mxu0 0.0
  %1153 = vmatpush.msra.mxu0 0.0
  %1154 = vmatpush.msra.mxu0 0.0
  %1155 = vmatpush.msra.mxu0 0.0
  %1156 = vmatpush.msra.mxu0 0.0
  %1157 = vmatpush.msra.mxu0 0.0
  %1158 = vmatpush.msra.mxu0 0.0
  %1159 = vmatpush.msra.mxu0 0.0
  %1160 = vmatpush.msra.mxu0 0.0
  %1161 = vmatpush.msra.mxu0 0.0
  %1162 = vmatpush.msra.mxu0 %v1142
  %1163 = vmatmul.f32.gmra.mxu0 %v1145
  %v1164 = vpop.f32.mrf.mxu0
  %v1165 = vadd.f32 0.0, %v1164
  %1166 = vdwg.mxu0
  %1167 = vrot.lane.b32.xlu0 %v794, 120
  %v1168 = vpop.permute.xlu0 %1167
  %1169 = vrot.lane.b32.xlu0 %v827, 120
  %v1170 = vpop.permute.xlu0 %1169
  %v1171 = vsel %vm140, %v1168, 0
  %v1173 = vsel %vm140, %v1170, 0
  %1175 = vmatpush.xpose.msra.mxu0 0.0
  %1176 = vmatpush.xpose.msra.mxu0 0.0
  %1177 = vmatpush.xpose.msra.mxu0 0.0
  %1178 = vmatpush.xpose.msra.mxu0 0.0
  %1179 = vmatpush.xpose.msra.mxu0 0.0
  %1180 = vmatpush.xpose.msra.mxu0 0.0
  %1181 = vmatpush.xpose.msra.mxu0 0.0
  %1182 = vmatpush.xpose.msra.mxu0 0.0
  %1183 = vmatpush.xpose.msra.mxu0 0.0
  %1184 = vmatpush.xpose.msra.mxu0 0.0
  %1185 = vmatpush.xpose.msra.mxu0 0.0
  %1186 = vmatpush.xpose.msra.mxu0 0.0
  %1187 = vmatpush.xpose.msra.mxu0 0.0
  %1188 = vmatpush.xpose.msra.mxu0 0.0
  %1189 = vmatpush.xpose.msra.mxu0 0.0
  %1190 = vmatpush.xpose.msra.mxu0 %v1173
  %1191 = vmatmul.f32.gmra.mxu0 %v1171
  %v1192 = vpop.f32.mrf.mxu0
  %v1193 = vadd.f32 %v1103, %v1192
  %1194 = vdwg.mxu0
  %v1195 = vsel %vm140, %v1193, -inf
  %1196 = vmax.xlane.f32.xlu0 %v1195
  %v1197 = vpop.xlane.xlu0 %1196
  %v1198 = vsub.f32 %v1193, %v1197
  %v1199 = vmul.f32 %v1198, 1.442695
  %v1200 = vpow.pop %v1199
  %v1201 = vsel %vm140, %v1200, 0.0
  %1202 = vadd.xlane.f32.xlu0 %v1201
  %v1203 = vpop.xlane.xlu0 %1202
  %v1204 = vrcp.pop %v1203
  %v1205 = vmul.f32 %v1200, %v1204
  %1206 = vrot.lane.b32.xlu0 %v827, 88
  %v1207 = vpop.permute.xlu0 %1206
  %v1210 = vsel %vm140, %v1205, 0
  %1212 = vmatpush.msra.mxu0 0.0
  %1213 = vmatpush.msra.mxu0 0.0
  %1214 = vmatpush.msra.mxu0 0.0
  %1215 = vmatpush.msra.mxu0 0.0
  %1216 = vmatpush.msra.mxu0 0.0
  %1217 = vmatpush.msra.mxu0 0.0
  %1218 = vmatpush.msra.mxu0 0.0
  %1219 = vmatpush.msra.mxu0 0.0
  %1220 = vmatpush.msra.mxu0 0.0
  %1221 = vmatpush.msra.mxu0 0.0
  %1222 = vmatpush.msra.mxu0 0.0
  %1223 = vmatpush.msra.mxu0 0.0
  %1224 = vmatpush.msra.mxu0 0.0
  %1225 = vmatpush.msra.mxu0 0.0
  %1226 = vmatpush.msra.mxu0 0.0
  %1227 = vmatpush.msra.mxu0 %v1207
  %1228 = vmatmul.f32.gmra.mxu0 %v1210
  %v1229 = vpop.f32.mrf.mxu0
  %v1230 = vadd.f32 0.0, %v1229
  %1231 = vdwg.mxu0
  %1232 = vrot.lane.b32.xlu0 %v794, 112
  %v1233 = vpop.permute.xlu0 %1232
  %1234 = vrot.lane.b32.xlu0 %v827, 112
  %v1235 = vpop.permute.xlu0 %1234
  %v1236 = vsel %vm140, %v1233, 0
  %v1238 = vsel %vm140, %v1235, 0
  %1240 = vmatpush.xpose.msra.mxu0 0.0
  %1241 = vmatpush.xpose.msra.mxu0 0.0
  %1242 = vmatpush.xpose.msra.mxu0 0.0
  %1243 = vmatpush.xpose.msra.mxu0 0.0
  %1244 = vmatpush.xpose.msra.mxu0 0.0
  %1245 = vmatpush.xpose.msra.mxu0 0.0
  %1246 = vmatpush.xpose.msra.mxu0 0.0
  %1247 = vmatpush.xpose.msra.mxu0 0.0
  %1248 = vmatpush.xpose.msra.mxu0 0.0
  %1249 = vmatpush.xpose.msra.mxu0 0.0
  %1250 = vmatpush.xpose.msra.mxu0 0.0
  %1251 = vmatpush.xpose.msra.mxu0 0.0
  %1252 = vmatpush.xpose.msra.mxu0 0.0
  %1253 = vmatpush.xpose.msra.mxu0 0.0
  %1254 = vmatpush.xpose.msra.mxu0 0.0
  %1255 = vmatpush.xpose.msra.mxu0 %v1238
  %1256 = vmatmul.f32.gmra.mxu0 %v1236
  %v1257 = vpop.f32.mrf.mxu0
  %v1258 = vadd.f32 %v1103, %v1257
  %1259 = vdwg.mxu0
  %v1260 = vsel %vm140, %v1258, -inf
  %1261 = vmax.xlane.f32.xlu0 %v1260
  %v1262 = vpop.xlane.xlu0 %1261
  %v1263 = vsub.f32 %v1258, %v1262
  %v1264 = vmul.f32 %v1263, 1.442695
  %v1265 = vpow.pop %v1264
  %v1266 = vsel %vm140, %v1265, 0.0
  %1267 = vadd.xlane.f32.xlu0 %v1266
  %v1268 = vpop.xlane.xlu0 %1267
  %v1269 = vrcp.pop %v1268
  %v1270 = vmul.f32 %v1265, %v1269
  %1271 = vrot.lane.b32.xlu0 %v827, 80
  %v1272 = vpop.permute.xlu0 %1271
  %v1275 = vsel %vm140, %v1270, 0
  %1277 = vmatpush.msra.mxu0 0.0
  %1278 = vmatpush.msra.mxu0 0.0
  %1279 = vmatpush.msra.mxu0 0.0
  %1280 = vmatpush.msra.mxu0 0.0
  %1281 = vmatpush.msra.mxu0 0.0
  %1282 = vmatpush.msra.mxu0 0.0
  %1283 = vmatpush.msra.mxu0 0.0
  %1284 = vmatpush.msra.mxu0 0.0
  %1285 = vmatpush.msra.mxu0 0.0
  %1286 = vmatpush.msra.mxu0 0.0
  %1287 = vmatpush.msra.mxu0 0.0
  %1288 = vmatpush.msra.mxu0 0.0
  %1289 = vmatpush.msra.mxu0 0.0
  %1290 = vmatpush.msra.mxu0 0.0
  %1291 = vmatpush.msra.mxu0 0.0
  %1292 = vmatpush.msra.mxu0 %v1272
  %1293 = vmatmul.f32.gmra.mxu0 %v1275
  %v1294 = vpop.f32.mrf.mxu0
  %v1295 = vadd.f32 0.0, %v1294
  %1296 = vdwg.mxu0
  %1297 = vrot.lane.b32.xlu0 %v794, 104
  %v1298 = vpop.permute.xlu0 %1297
  %1299 = vrot.lane.b32.xlu0 %v827, 104
  %v1300 = vpop.permute.xlu0 %1299
  %v1301 = vsel %vm140, %v1298, 0
  %v1303 = vsel %vm140, %v1300, 0
  %1305 = vmatpush.xpose.msra.mxu0 0.0
  %1306 = vmatpush.xpose.msra.mxu0 0.0
  %1307 = vmatpush.xpose.msra.mxu0 0.0
  %1308 = vmatpush.xpose.msra.mxu0 0.0
  %1309 = vmatpush.xpose.msra.mxu0 0.0
  %1310 = vmatpush.xpose.msra.mxu0 0.0
  %1311 = vmatpush.xpose.msra.mxu0 0.0
  %1312 = vmatpush.xpose.msra.mxu0 0.0
  %1313 = vmatpush.xpose.msra.mxu0 0.0
  %1314 = vmatpush.xpose.msra.mxu0 0.0
  %1315 = vmatpush.xpose.msra.mxu0 0.0
  %1316 = vmatpush.xpose.msra.mxu0 0.0
  %1317 = vmatpush.xpose.msra.mxu0 0.0
  %1318 = vmatpush.xpose.msra.mxu0 0.0
  %1319 = vmatpush.xpose.msra.mxu0 0.0
  %1320 = vmatpush.xpose.msra.mxu0 %v1303
  %1321 = vmatmul.f32.gmra.mxu0 %v1301
  %v1322 = vpop.f32.mrf.mxu0
  %v1323 = vadd.f32 %v1103, %v1322
  %1324 = vdwg.mxu0
  %v1325 = vsel %vm140, %v1323, -inf
  %1326 = vmax.xlane.f32.xlu0 %v1325
  %v1327 = vpop.xlane.xlu0 %1326
  %v1328 = vsub.f32 %v1323, %v1327
  %v1329 = vmul.f32 %v1328, 1.442695
  %v1330 = vpow.pop %v1329
  %v1331 = vsel %vm140, %v1330, 0.0
  %1332 = vadd.xlane.f32.xlu0 %v1331
  %v1333 = vpop.xlane.xlu0 %1332
  %v1334 = vrcp.pop %v1333
  %v1335 = vmul.f32 %v1330, %v1334
  %1336 = vrot.lane.b32.xlu0 %v827, 72
  %v1337 = vpop.permute.xlu0 %1336
  %v1340 = vsel %vm140, %v1335, 0
  %1342 = vmatpush.msra.mxu0 0.0
  %1343 = vmatpush.msra.mxu0 0.0
  %1344 = vmatpush.msra.mxu0 0.0
  %1345 = vmatpush.msra.mxu0 0.0
  %1346 = vmatpush.msra.mxu0 0.0
  %1347 = vmatpush.msra.mxu0 0.0
  %1348 = vmatpush.msra.mxu0 0.0
  %1349 = vmatpush.msra.mxu0 0.0
  %1350 = vmatpush.msra.mxu0 0.0
  %1351 = vmatpush.msra.mxu0 0.0
  %1352 = vmatpush.msra.mxu0 0.0
  %1353 = vmatpush.msra.mxu0 0.0
  %1354 = vmatpush.msra.mxu0 0.0
  %1355 = vmatpush.msra.mxu0 0.0
  %1356 = vmatpush.msra.mxu0 0.0
  %1357 = vmatpush.msra.mxu0 %v1337
  %1358 = vmatmul.f32.gmra.mxu0 %v1340
  %v1359 = vpop.f32.mrf.mxu0
  %v1360 = vadd.f32 0.0, %v1359
  %1361 = vdwg.mxu0
  %1363 = vrot.lane.b32.xlu0 %v1230, 8
  %v1364 = vpop.permute.xlu0 %1363
  %1367 = vrot.lane.b32.xlu0 %v1295, 16
  %v1368 = vpop.permute.xlu0 %1367
  %1371 = vrot.lane.b32.xlu0 %v1360, 24
  %v1372 = vpop.permute.xlu0 %1371
  %v1374 = vsel %vm140, %v1165, %v1364
  %v1375 = vsel %vm410, %v1374, %v1368
  %v1376 = vsel %vm412, %v1375, %v1372
  %v1377 = vld [vmem:[%s8] sm:$0xff]
  %v1378 = vld [vmem:[%s8 + $0x8] sm:$0xff]
  %v1379 = vld [vmem:[%s8 + $0x10] sm:$0xff]
  %v1380 = vld [vmem:[%s8 + $0x18] sm:$0xff]
  %v1382 = vsel %vm59, %v1102, 0
  %v1385 = vsel %vm59, %v1376, 0
  %1387 = vmatpush.msra.mxu0 0.0
  %1388 = vmatpush.msra.mxu0 0.0
  %1389 = vmatpush.msra.mxu0 0.0
  %1390 = vmatpush.msra.mxu0 0.0
  %1391 = vmatpush.msra.mxu0 0.0
  %1392 = vmatpush.msra.mxu0 0.0
  %1393 = vmatpush.msra.mxu0 0.0
  %1394 = vmatpush.msra.mxu0 0.0
  %1395 = vmatpush.msra.mxu0 0.0
  %1396 = vmatpush.msra.mxu0 0.0
  %1397 = vmatpush.msra.mxu0 0.0
  %1398 = vmatpush.msra.mxu0 0.0
  %1399 = vmatpush.msra.mxu0 %v1380
  %1400 = vmatpush.msra.mxu0 %v1379
  %1401 = vmatpush.msra.mxu0 %v1378
  %1402 = vmatpush.msra.mxu0 %v1377
  %1403 = vmatmul.f32.gmra.mxu0 %v1382
  %v1404 = vpop.f32.mrf.mxu0
  %v1405 = vadd.f32 0.0, %v1404
  %1406 = vmatmul.f32.gmra.mxu0 %v1385
  %v1407 = vpop.f32.mrf.mxu0
  %v1408 = vadd.f32 0.0, %v1407
  %1409 = vdwg.mxu0
  %v1410 = vadd.f32 %v721, %v1405
  %v1411 = vadd.f32 %v722, %v1408
  %v1412 = vld [vmem:[%s9] sm:$0x1]
  %v1413 = vmul.f32 %v1410, %v1410
  %v1414 = vmul.f32 %v1411, %v1411
  %v1415 = vsel %vm59, %v1413, 0.0
  %1416 = vadd.xlane.f32.xlu0 %v1415
  %v1417 = vpop.xlane.xlu0 %1416
  %v1418 = vsel %vm59, %v1414, 0.0
  %1419 = vadd.xlane.f32.xlu0 %v1418
  %v1420 = vpop.xlane.xlu0 %1419
  %v1421 = vmul.f32 %v1417, %v72
  %v1422 = vmul.f32 %v1420, %v72
  %v1423 = vadd.f32 %v1421, 1e-06
  %v1424 = vadd.f32 %v1422, 1e-06
  %v1425 = vrsqrt.pop %v1423
  %v1426 = vmul.f32 %v1425, %v1423
  %v1427 = vmul.f32 %v1426, %v1425
  %v1428 = vmul.f32 0.5, %v1427
  %v1429 = vsub.f32 1.5, %v1428
  %v1430 = vmul.f32 %v1425, %v1429
  %vm1431 = vweird.f32 %v1423
  %vm1432 = vweird.f32 %v1425
  %vm1433 = vmor %vm1431, %vm1432
  %v1434 = vsel %vm1433, %v1425, %v1430
  %v1435 = vrsqrt.pop %v1424
  %v1436 = vmul.f32 %v1435, %v1424
  %v1437 = vmul.f32 %v1436, %v1435
  %v1438 = vmul.f32 0.5, %v1437
  %v1439 = vsub.f32 1.5, %v1438
  %v1440 = vmul.f32 %v1435, %v1439
  %vm1441 = vweird.f32 %v1424
  %vm1442 = vweird.f32 %v1435
  %vm1443 = vmor %vm1441, %vm1442
  %v1444 = vsel %vm1443, %v1435, %v1440
  %v1445 = vmul.f32 %v1410, %v1434
  %v1446 = vmul.f32 %v1411, %v1444
  %v1448 = vperm.slane %v1412, 0
  %v1450 = vmul.f32 %v1445, %v1448
  %v1451 = vmul.f32 %v1446, %v1448
  %v1452 = vld [vmem:[%s10] sm:$0xff]
  %v1453 = vld [vmem:[%s10 + $0x8] sm:$0xff]
  %v1454 = vld [vmem:[%s10 + $0x10] sm:$0xff]
  %v1455 = vld [vmem:[%s10 + $0x18] sm:$0xff]
  %v1457 = vsel %vm59, %v1450, 0
  %v1460 = vsel %vm59, %v1451, 0
  %1462 = vmatpush.msra.mxu0 0.0
  %1463 = vmatpush.msra.mxu0 0.0
  %1464 = vmatpush.msra.mxu0 0.0
  %1465 = vmatpush.msra.mxu0 0.0
  %1466 = vmatpush.msra.mxu0 0.0
  %1467 = vmatpush.msra.mxu0 0.0
  %1468 = vmatpush.msra.mxu0 0.0
  %1469 = vmatpush.msra.mxu0 0.0
  %1470 = vmatpush.msra.mxu0 0.0
  %1471 = vmatpush.msra.mxu0 0.0
  %1472 = vmatpush.msra.mxu0 0.0
  %1473 = vmatpush.msra.mxu0 0.0
  %1474 = vmatpush.msra.mxu0 %v1455
  %1475 = vmatpush.msra.mxu0 %v1454
  %1476 = vmatpush.msra.mxu0 %v1453
  %1477 = vmatpush.msra.mxu0 %v1452
  %1478 = vmatmul.f32.gmra.mxu0 %v1457
  %v1479 = vpop.f32.mrf.mxu0
  %v1480 = vadd.f32 0.0, %v1479
  %1481 = vmatmul.f32.gmra.mxu0 %v1460
  %v1482 = vpop.f32.mrf.mxu0
  %v1483 = vadd.f32 0.0, %v1482
  %1484 = vdwg.mxu0
  %v1485 = vmax.f32 %v1480, 0.0
  %v1486 = vmax.f32 %v1483, 0.0
  %v1487 = vld [vmem:[%s11] sm:$0xff]
  %v1488 = vld [vmem:[%s11 + $0x8] sm:$0xff]
  %v1489 = vld [vmem:[%s11 + $0x10] sm:$0xff]
  %v1490 = vld [vmem:[%s11 + $0x18] sm:$0xff]
  %v1491 = vld [vmem:[%s11 + $0x20] sm:$0xff]
  %v1492 = vld [vmem:[%s11 + $0x28] sm:$0xff]
  %v1493 = vld [vmem:[%s11 + $0x30] sm:$0xff]
  %v1494 = vld [vmem:[%s11 + $0x38] sm:$0xff]
  %vm1495 = vcmask 523264
  %v1497 = vsel %vm1495, %v1485, 0
  %v1500 = vsel %vm1495, %v1486, 0
  %1502 = vmatpush.msra.mxu0 0.0
  %1503 = vmatpush.msra.mxu0 0.0
  %1504 = vmatpush.msra.mxu0 0.0
  %1505 = vmatpush.msra.mxu0 0.0
  %1506 = vmatpush.msra.mxu0 0.0
  %1507 = vmatpush.msra.mxu0 0.0
  %1508 = vmatpush.msra.mxu0 0.0
  %1509 = vmatpush.msra.mxu0 0.0
  %1510 = vmatpush.msra.mxu0 %v1494
  %1511 = vmatpush.msra.mxu0 %v1493
  %1512 = vmatpush.msra.mxu0 %v1492
  %1513 = vmatpush.msra.mxu0 %v1491
  %1514 = vmatpush.msra.mxu0 %v1490
  %1515 = vmatpush.msra.mxu0 %v1489
  %1516 = vmatpush.msra.mxu0 %v1488
  %1517 = vmatpush.msra.mxu0 %v1487
  %1518 = vmatmul.f32.gmra.mxu0 %v1497
  %v1519 = vpop.f32.mrf.mxu0
  %v1520 = vadd.f32 0.0, %v1519
  %1521 = vmatmul.f32.gmra.mxu0 %v1500
  %v1522 = vpop.f32.mrf.mxu0
  %v1523 = vadd.f32 0.0, %v1522
  %1524 = vdwg.mxu0
  %v1525 = vadd.f32 %v1410, %v1520
  %v1526 = vadd.f32 %v1411, %v1523
  %1527 = vst.msk [vmem:[%s14] sm:$0xff] %vm59, %v1525
  %1528 = vst.msk [vmem:[%s14 + $0x8] sm:$0xff] %vm59, %v1526
  // Predicated region
  $region58: #{t5_forward_loss.7} parent=0 // pred_check
    _
  $region59: #{t5_forward_loss.7} parent=0 // pred_check_branch
    %1530 = sbr.rel (0) target = $region61
  $region60: #{t5_forward_loss.7} parent=0 // pred_region
    _
  $region61: #{t5_forward_loss.7} parent=0 // pred_fallthru
    _
  // Predicated region
  $region62: #{t5_forward_loss.7} parent=0 // pred_check
    _
  $region63: #{t5_forward_loss.7} parent=0 // pred_check_branch
    %1532 = sbr.rel (0) target = $region65
  $region64: #{t5_forward_loss.7} parent=0 // pred_region
    _
  $region65: #{t5_forward_loss.7} parent=0 // pred_fallthru
    _

</llo_original>
